<compile_context>
chip_gen: v7x
topology: tpu7x:2x2x1
jax: 0.10.0
libtpu: 0.0.40
codegen_flags: <defaults>
</compile_context>

<pallas_src>
import jax
import jax.numpy as jnp
from jax import lax
from jax.experimental import pallas as pl
from jax.experimental.pallas import tpu as pltpu

# Branch configs (kernel_width, dilation) matching conv1..conv6 of KDblock.
BRANCHES = ((1, 1), (2, 1), (3, 1), (4, 1), (2, 2), (3, 2))
N_TAPS = sum(kw for kw, _ in BRANCHES)   # 1+2+3+4+2+3 = 15
BN_EPS = 1e-5


def _kd_kernel(w_ref, shift_ref, x_ref, o_ref):
    """w_ref:     SMEM (N_TAPS*Cin*Cout,)   tap weights, BN scale folded in
       shift_ref: SMEM (6*Cout,)            per-(branch, out-channel) shift
       x_ref:     VMEM (Cin, TH, W)         row tile of the NCHW input (1 batch)
       o_ref:     VMEM (Cout, TH, W_total)  row tile of the concatenated output
    """
    cin = x_ref.shape[0]
    w_in = x_ref.shape[2]
    cout = o_ref.shape[0]

    col = 0
    tap0 = 0
    for b, (kw, dil) in enumerate(BRANCHES):
        wo = w_in - dil * (kw - 1)
        for co in range(cout):
            acc = None
            for k in range(kw):
                off = k * dil
                for ci in range(cin):
                    wgt = w_ref[((tap0 + k) * cin + ci) * cout + co]  # SMEM scalar
                    term = x_ref[ci, :, off:off + wo] * wgt
                    if acc is None:
                        # Fold conv bias + eval-mode BN shift into the first MAC.
                        acc = term + shift_ref[b * cout + co]
                    else:
                        acc = acc + term
            o_ref[co, :, col:col + wo] = acc
        col += wo
        tap0 += kw


def _vmem_capacity_bytes():
    try:
        return int(pltpu.get_tpu_info().vmem_capacity_bytes)
    except Exception:
        return 64 * 1024 * 1024  # conservative: v7x per-TensorCore VMEM


def _choose_row_tile(B, H, per_row_bytes, budget_bytes):
    """Largest H tile whose double-buffered in+out slabs fit the VMEM budget.
    Must be a multiple of 8 (sublane) or equal to H."""
    if H <= 8:
        return H
    cap = max(8, int(budget_bytes // max(1, 2 * per_row_bytes)))
    th = min(H, cap)
    if th < H:
        th = max(8, (th // 8) * 8)
    elif B == 1:
        # Single-batch: split H so v7x's two TensorCores both get grid steps.
        half = -(-H // 2)
        half = -(-half // 8) * 8
        if half < H:
            th = half
    return th


def kdblock_pallas(x_nchw, w_flat, shift_flat):
    """x_nchw: (B, Cin, H, W) float32. Returns (B, Cout, H, 6W-12) float32."""
    B, Cin, H, W = x_nchw.shape
    Cout = shift_flat.shape[0] // len(BRANCHES)
    branch_widths = tuple(W - d * (kw - 1) for kw, d in BRANCHES)
    if min(branch_widths) < 1:
        raise ValueError(f"W={W} too small for dilated taps {BRANCHES}")
    W_total = sum(branch_widths)

    vmem_cap = _vmem_capacity_bytes()
    per_row_bytes = 4 * (Cin * W + Cout * W_total)
    TH = _choose_row_tile(B, H, per_row_bytes, int(0.7 * vmem_cap))
    n_h = pl.cdiv(H, TH)

    needed = 2 * 4 * TH * (Cin * W + Cout * W_total)   # double-buffered tiles
    vmem_limit = int(min(0.9 * vmem_cap, max(32 * 1024 * 1024, 2 * needed)))

    flops = 2 * B * H * Cin * Cout * sum(
        kw * bw for (kw, _), bw in zip(BRANCHES, branch_widths))
    bytes_accessed = 4 * B * H * (Cin * W + Cout * W_total) \
        + 4 * (int(w_flat.size) + int(shift_flat.size))

    return pl.pallas_call(
        _kd_kernel,
        out_shape=jax.ShapeDtypeStruct((B, Cout, H, W_total), jnp.float32),
        grid=(B, n_h),
        in_specs=[
            pl.BlockSpec(memory_space=pltpu.MemorySpace.SMEM),      # w_flat
            pl.BlockSpec(memory_space=pltpu.MemorySpace.SMEM),      # shift_flat
            pl.BlockSpec((None, Cin, TH, W), lambda b, h: (b, 0, h, 0)),
        ],
        out_specs=pl.BlockSpec((None, Cout, TH, W_total),
                               lambda b, h: (b, 0, h, 0)),
        compiler_params=pltpu.CompilerParams(
            dimension_semantics=("parallel", "parallel"),
            vmem_limit_bytes=vmem_limit),
        cost_estimate=pl.CostEstimate(
            flops=flops, transcendentals=0, bytes_accessed=bytes_accessed),
    )(w_flat, shift_flat, x_nchw)


def make_params(key, cin, cout):
    """Deterministic synthetic parameters for the 6 conv+BN branches."""
    weights, biases, gammas, betas, rmeans, rvars = [], [], [], [], [], []
    for kw, _ in BRANCHES:
        key, k1, k2, k3, k4, k5, k6 = jax.random.split(key, 7)
        weights.append(0.1 * jax.random.normal(k1, (cout, cin, 1, kw), jnp.float32))
        biases.append(0.1 * jax.random.normal(k2, (cout,), jnp.float32))
        gammas.append(1.0 + 0.1 * jax.random.normal(k3, (cout,), jnp.float32))
        betas.append(0.1 * jax.random.normal(k4, (cout,), jnp.float32))
        rmeans.append(0.1 * jax.random.normal(k5, (cout,), jnp.float32))
        rvars.append(jax.nn.softplus(jax.random.normal(k6, (cout,), jnp.float32)) + 0.5)
    return weights, biases, gammas, betas, rmeans, rvars


def fold_params(weights, biases, gammas, betas, rmeans, rvars):
    """Fold eval-mode BN scale into the per-tap weights; keep only a per-branch
    per-channel shift.  Returns flat SMEM-friendly tables."""
    taps, shifts = [], []
    for i, (kw, _) in enumerate(BRANCHES):
        s = gammas[i] / jnp.sqrt(rvars[i] + BN_EPS)                  # (Cout,)
        shifts.append((biases[i] - rmeans[i]) * s + betas[i])        # (Cout,)
        for k in range(kw):
            # (Cin, Cout) tap with BN scale folded per output channel
            taps.append(weights[i][:, :, 0, k].T * s[None, :])
    w_flat = jnp.stack(taps, axis=0).reshape(-1)        # (N_TAPS*Cin*Cout,)
    shift_flat = jnp.stack(shifts, axis=0).reshape(-1)  # (6*Cout,)
    return w_flat, shift_flat


def kdblock_reference(x_nchw, weights, biases, gammas, betas, rmeans, rvars):
    """Pure-JAX reference (lax conv + eval-mode BN + concat along width)."""
    outs = []
    for i, (kw, dil) in enumerate(BRANCHES):
        y = lax.conv_general_dilated(
            x_nchw, weights[i], window_strides=(1, 1), padding='VALID',
            rhs_dilation=(1, dil),
            dimension_numbers=('NCHW', 'OIHW', 'NCHW'))
        y = y + biases[i][None, :, None, None]
        y = (y - rmeans[i][None, :, None, None]) / jnp.sqrt(
            rvars[i][None, :, None, None] + BN_EPS)
        y = y * gammas[i][None, :, None, None] + betas[i][None, :, None, None]
        outs.append(y)
    return jnp.concatenate(outs, axis=3)


if __name__ == "__main__":
    key = jax.random.PRNGKey(0)
    kx, kp = jax.random.split(key)

    B, Cin, Cout, H, W = 2, 3, 3, 8, 16
    x = jax.random.normal(kx, (B, Cin, H, W), jnp.float32)

    params = make_params(kp, Cin, Cout)
    w_flat, shift_flat = fold_params(*params)

    out = jax.jit(kdblock_pallas)(x, w_flat, shift_flat)
    out = jax.block_until_ready(out)

    ref = kdblock_reference(x, *params)
    assert out.shape == ref.shape == (B, Cout, H, 6 * W - 12), (out.shape, ref.shape)
    err = float(jnp.max(jnp.abs(out - ref)))
    assert err < 1e-4, err

    print("KERNEL_OK")
</pallas_src>

<mosaic_0001>
module attributes {stable_mosaic.version = 11 : i64} {
  func.func @_kd_kernel(%arg0: i32, %arg1: i32, %arg2: memref<135xf32, #tpu.memory_space<smem>>, %arg3: memref<18xf32, #tpu.memory_space<smem>>, %arg4: memref<1x3x8x16xf32, #tpu.memory_space<vmem>>, %arg5: memref<1x3x8x84xf32, #tpu.memory_space<vmem>>) attributes {dimension_semantics = [#tpu.dimension_semantics<parallel>, #tpu.dimension_semantics<parallel>], iteration_bounds = array<i64: 2, 1>, scalar_prefetch = 0 : i64, scratch_operands = 0 : i64, tpu.core_type = #tpu.core_type<tc>, window_params = [{transform_indices = @transform_0, window_bounds = array<i64: 135>}, {transform_indices = @transform_1, window_bounds = array<i64: 18>}, {transform_indices = @transform_2, window_bounds = array<i64: 1, 3, 8, 16>}, {transform_indices = @transform_3, window_bounds = array<i64: 1, 3, 8, 84>}]} {
    %c0 = arith.constant 0 : index
    %0 = memref.load %arg2[%c0] : memref<135xf32, #tpu.memory_space<smem>>
    %c0_0 = arith.constant 0 : index
    %c0_1 = arith.constant 0 : index
    %c0_2 = arith.constant 0 : index
    %c0_3 = arith.constant 0 : index
    %1 = vector.load %arg4[%c0_0, %c0_1, %c0_2, %c0_3] : memref<1x3x8x16xf32, #tpu.memory_space<vmem>>, vector<1x1x8x16xf32>
    %2 = vector.shape_cast %1 : vector<1x1x8x16xf32> to vector<8x16xf32>
    %3 = vector.broadcast %0 : f32 to vector<8x16xf32>
    %4 = arith.mulf %2, %3 : vector<8x16xf32>
    %c0_4 = arith.constant 0 : index
    %5 = memref.load %arg3[%c0_4] : memref<18xf32, #tpu.memory_space<smem>>
    %6 = vector.broadcast %5 : f32 to vector<8x16xf32>
    %7 = arith.addf %4, %6 : vector<8x16xf32>
    %c3 = arith.constant 3 : index
    %8 = memref.load %arg2[%c3] : memref<135xf32, #tpu.memory_space<smem>>
    %c0_5 = arith.constant 0 : index
    %c1 = arith.constant 1 : index
    %c0_6 = arith.constant 0 : index
    %c0_7 = arith.constant 0 : index
    %9 = vector.load %arg4[%c0_5, %c1, %c0_6, %c0_7] : memref<1x3x8x16xf32, #tpu.memory_space<vmem>>, vector<1x1x8x16xf32>
    %10 = vector.shape_cast %9 : vector<1x1x8x16xf32> to vector<8x16xf32>
    %11 = vector.broadcast %8 : f32 to vector<8x16xf32>
    %12 = arith.mulf %10, %11 : vector<8x16xf32>
    %13 = arith.addf %7, %12 : vector<8x16xf32>
    %c6 = arith.constant 6 : index
    %14 = memref.load %arg2[%c6] : memref<135xf32, #tpu.memory_space<smem>>
    %c0_8 = arith.constant 0 : index
    %c2 = arith.constant 2 : index
    %c0_9 = arith.constant 0 : index
    %c0_10 = arith.constant 0 : index
    %15 = vector.load %arg4[%c0_8, %c2, %c0_9, %c0_10] : memref<1x3x8x16xf32, #tpu.memory_space<vmem>>, vector<1x1x8x16xf32>
    %16 = vector.shape_cast %15 : vector<1x1x8x16xf32> to vector<8x16xf32>
    %17 = vector.broadcast %14 : f32 to vector<8x16xf32>
    %18 = arith.mulf %16, %17 : vector<8x16xf32>
    %19 = arith.addf %13, %18 : vector<8x16xf32>
    %c0_11 = arith.constant 0 : index
    %c0_12 = arith.constant 0 : index
    %c0_13 = arith.constant 0 : index
    %c0_14 = arith.constant 0 : index
    %20 = vector.load %arg5[%c0_11, %c0_12, %c0_13, %c0_14] : memref<1x3x8x84xf32, #tpu.memory_space<vmem>>, vector<1x1x8x16xf32>
    %21 = vector.shape_cast %20 : vector<1x1x8x16xf32> to vector<8x16xf32>
    %22 = vector.shape_cast %19 : vector<8x16xf32> to vector<1x1x8x16xf32>
    tpu.vector_store %arg5[%c0_11, %c0_12, %c0_13, %c0_14], %22 {strides = array<i32>} : memref<1x3x8x84xf32, #tpu.memory_space<vmem>>, vector<1x1x8x16xf32>,
    %c1_15 = arith.constant 1 : index
    %23 = memref.load %arg2[%c1_15] : memref<135xf32, #tpu.memory_space<smem>>
    %c0_16 = arith.constant 0 : index
    %c0_17 = arith.constant 0 : index
    %c0_18 = arith.constant 0 : index
    %c0_19 = arith.constant 0 : index
    %24 = vector.load %arg4[%c0_16, %c0_17, %c0_18, %c0_19] : memref<1x3x8x16xf32, #tpu.memory_space<vmem>>, vector<1x1x8x16xf32>
    %25 = vector.shape_cast %24 : vector<1x1x8x16xf32> to vector<8x16xf32>
    %26 = vector.broadcast %23 : f32 to vector<8x16xf32>
    %27 = arith.mulf %25, %26 : vector<8x16xf32>
    %c1_20 = arith.constant 1 : index
    %28 = memref.load %arg3[%c1_20] : memref<18xf32, #tpu.memory_space<smem>>
    %29 = vector.broadcast %28 : f32 to vector<8x16xf32>
    %30 = arith.addf %27, %29 : vector<8x16xf32>
    %c4 = arith.constant 4 : index
    %31 = memref.load %arg2[%c4] : memref<135xf32, #tpu.memory_space<smem>>
    %c0_21 = arith.constant 0 : index
    %c1_22 = arith.constant 1 : index
    %c0_23 = arith.constant 0 : index
    %c0_24 = arith.constant 0 : index
    %32 = vector.load %arg4[%c0_21, %c1_22, %c0_23, %c0_24] : memref<1x3x8x16xf32, #tpu.memory_space<vmem>>, vector<1x1x8x16xf32>
    %33 = vector.shape_cast %32 : vector<1x1x8x16xf32> to vector<8x16xf32>
    %34 = vector.broadcast %31 : f32 to vector<8x16xf32>
    %35 = arith.mulf %33, %34 : vector<8x16xf32>
    %36 = arith.addf %30, %35 : vector<8x16xf32>
    %c7 = arith.constant 7 : index
    %37 = memref.load %arg2[%c7] : memref<135xf32, #tpu.memory_space<smem>>
    %c0_25 = arith.constant 0 : index
    %c2_26 = arith.constant 2 : index
    %c0_27 = arith.constant 0 : index
    %c0_28 = arith.constant 0 : index
    %38 = vector.load %arg4[%c0_25, %c2_26, %c0_27, %c0_28] : memref<1x3x8x16xf32, #tpu.memory_space<vmem>>, vector<1x1x8x16xf32>
    %39 = vector.shape_cast %38 : vector<1x1x8x16xf32> to vector<8x16xf32>
    %40 = vector.broadcast %37 : f32 to vector<8x16xf32>
    %41 = arith.mulf %39, %40 : vector<8x16xf32>
    %42 = arith.addf %36, %41 : vector<8x16xf32>
    %c0_29 = arith.constant 0 : index
    %c1_30 = arith.constant 1 : index
    %c0_31 = arith.constant 0 : index
    %c0_32 = arith.constant 0 : index
    %43 = vector.load %arg5[%c0_29, %c1_30, %c0_31, %c0_32] : memref<1x3x8x84xf32, #tpu.memory_space<vmem>>, vector<1x1x8x16xf32>
    %44 = vector.shape_cast %43 : vector<1x1x8x16xf32> to vector<8x16xf32>
    %45 = vector.shape_cast %42 : vector<8x16xf32> to vector<1x1x8x16xf32>
    tpu.vector_store %arg5[%c0_29, %c1_30, %c0_31, %c0_32], %45 {strides = array<i32>} : memref<1x3x8x84xf32, #tpu.memory_space<vmem>>, vector<1x1x8x16xf32>,
    %c2_33 = arith.constant 2 : index
    %46 = memref.load %arg2[%c2_33] : memref<135xf32, #tpu.memory_space<smem>>
    %c0_34 = arith.constant 0 : index
    %c0_35 = arith.constant 0 : index
    %c0_36 = arith.constant 0 : index
    %c0_37 = arith.constant 0 : index
    %47 = vector.load %arg4[%c0_34, %c0_35, %c0_36, %c0_37] : memref<1x3x8x16xf32, #tpu.memory_space<vmem>>, vector<1x1x8x16xf32>
    %48 = vector.shape_cast %47 : vector<1x1x8x16xf32> to vector<8x16xf32>
    %49 = vector.broadcast %46 : f32 to vector<8x16xf32>
    %50 = arith.mulf %48, %49 : vector<8x16xf32>
    %c2_38 = arith.constant 2 : index
    %51 = memref.load %arg3[%c2_38] : memref<18xf32, #tpu.memory_space<smem>>
    %52 = vector.broadcast %51 : f32 to vector<8x16xf32>
    %53 = arith.addf %50, %52 : vector<8x16xf32>
    %c5 = arith.constant 5 : index
    %54 = memref.load %arg2[%c5] : memref<135xf32, #tpu.memory_space<smem>>
    %c0_39 = arith.constant 0 : index
    %c1_40 = arith.constant 1 : index
    %c0_41 = arith.constant 0 : index
    %c0_42 = arith.constant 0 : index
    %55 = vector.load %arg4[%c0_39, %c1_40, %c0_41, %c0_42] : memref<1x3x8x16xf32, #tpu.memory_space<vmem>>, vector<1x1x8x16xf32>
    %56 = vector.shape_cast %55 : vector<1x1x8x16xf32> to vector<8x16xf32>
    %57 = vector.broadcast %54 : f32 to vector<8x16xf32>
    %58 = arith.mulf %56, %57 : vector<8x16xf32>
    %59 = arith.addf %53, %58 : vector<8x16xf32>
    %c8 = arith.constant 8 : index
    %60 = memref.load %arg2[%c8] : memref<135xf32, #tpu.memory_space<smem>>
    %c0_43 = arith.constant 0 : index
    %c2_44 = arith.constant 2 : index
    %c0_45 = arith.constant 0 : index
    %c0_46 = arith.constant 0 : index
    %61 = vector.load %arg4[%c0_43, %c2_44, %c0_45, %c0_46] : memref<1x3x8x16xf32, #tpu.memory_space<vmem>>, vector<1x1x8x16xf32>
    %62 = vector.shape_cast %61 : vector<1x1x8x16xf32> to vector<8x16xf32>
    %63 = vector.broadcast %60 : f32 to vector<8x16xf32>
    %64 = arith.mulf %62, %63 : vector<8x16xf32>
    %65 = arith.addf %59, %64 : vector<8x16xf32>
    %c0_47 = arith.constant 0 : index
    %c2_48 = arith.constant 2 : index
    %c0_49 = arith.constant 0 : index
    %c0_50 = arith.constant 0 : index
    %66 = vector.load %arg5[%c0_47, %c2_48, %c0_49, %c0_50] : memref<1x3x8x84xf32, #tpu.memory_space<vmem>>, vector<1x1x8x16xf32>
    %67 = vector.shape_cast %66 : vector<1x1x8x16xf32> to vector<8x16xf32>
    %68 = vector.shape_cast %65 : vector<8x16xf32> to vector<1x1x8x16xf32>
    tpu.vector_store %arg5[%c0_47, %c2_48, %c0_49, %c0_50], %68 {strides = array<i32>} : memref<1x3x8x84xf32, #tpu.memory_space<vmem>>, vector<1x1x8x16xf32>,
    %c9 = arith.constant 9 : index
    %69 = memref.load %arg2[%c9] : memref<135xf32, #tpu.memory_space<smem>>
    %c0_51 = arith.constant 0 : index
    %c0_52 = arith.constant 0 : index
    %c0_53 = arith.constant 0 : index
    %c0_54 = arith.constant 0 : index
    %70 = vector.load %arg4[%c0_51, %c0_52, %c0_53, %c0_54] : memref<1x3x8x16xf32, #tpu.memory_space<vmem>>, vector<1x1x8x15xf32>
    %71 = vector.shape_cast %70 : vector<1x1x8x15xf32> to vector<8x15xf32>
    %72 = vector.broadcast %69 : f32 to vector<8x15xf32>
    %73 = arith.mulf %71, %72 : vector<8x15xf32>
    %c3_55 = arith.constant 3 : index
    %74 = memref.load %arg3[%c3_55] : memref<18xf32, #tpu.memory_space<smem>>
    %75 = vector.broadcast %74 : f32 to vector<8x15xf32>
    %76 = arith.addf %73, %75 : vector<8x15xf32>
    %c12 = arith.constant 12 : index
    %77 = memref.load %arg2[%c12] : memref<135xf32, #tpu.memory_space<smem>>
    %c0_56 = arith.constant 0 : index
    %c1_57 = arith.constant 1 : index
    %c0_58 = arith.constant 0 : index
    %c0_59 = arith.constant 0 : index
    %78 = vector.load %arg4[%c0_56, %c1_57, %c0_58, %c0_59] : memref<1x3x8x16xf32, #tpu.memory_space<vmem>>, vector<1x1x8x15xf32>
    %79 = vector.shape_cast %78 : vector<1x1x8x15xf32> to vector<8x15xf32>
    %80 = vector.broadcast %77 : f32 to vector<8x15xf32>
    %81 = arith.mulf %79, %80 : vector<8x15xf32>
    %82 = arith.addf %76, %81 : vector<8x15xf32>
    %c15 = arith.constant 15 : index
    %83 = memref.load %arg2[%c15] : memref<135xf32, #tpu.memory_space<smem>>
    %c0_60 = arith.constant 0 : index
    %c2_61 = arith.constant 2 : index
    %c0_62 = arith.constant 0 : index
    %c0_63 = arith.constant 0 : index
    %84 = vector.load %arg4[%c0_60, %c2_61, %c0_62, %c0_63] : memref<1x3x8x16xf32, #tpu.memory_space<vmem>>, vector<1x1x8x15xf32>
    %85 = vector.shape_cast %84 : vector<1x1x8x15xf32> to vector<8x15xf32>
    %86 = vector.broadcast %83 : f32 to vector<8x15xf32>
    %87 = arith.mulf %85, %86 : vector<8x15xf32>
    %88 = arith.addf %82, %87 : vector<8x15xf32>
    %c18 = arith.constant 18 : index
    %89 = memref.load %arg2[%c18] : memref<135xf32, #tpu.memory_space<smem>>
    %c0_64 = arith.constant 0 : index
    %c0_65 = arith.constant 0 : index
    %c0_66 = arith.constant 0 : index
    %c1_67 = arith.constant 1 : index
    %90 = vector.load %arg4[%c0_64, %c0_65, %c0_66, %c1_67] : memref<1x3x8x16xf32, #tpu.memory_space<vmem>>, vector<1x1x8x15xf32>
    %91 = vector.shape_cast %90 : vector<1x1x8x15xf32> to vector<8x15xf32>
    %92 = vector.broadcast %89 : f32 to vector<8x15xf32>
    %93 = arith.mulf %91, %92 : vector<8x15xf32>
    %94 = arith.addf %88, %93 : vector<8x15xf32>
    %c21 = arith.constant 21 : index
    %95 = memref.load %arg2[%c21] : memref<135xf32, #tpu.memory_space<smem>>
    %c0_68 = arith.constant 0 : index
    %c1_69 = arith.constant 1 : index
    %c0_70 = arith.constant 0 : index
    %c1_71 = arith.constant 1 : index
    %96 = vector.load %arg4[%c0_68, %c1_69, %c0_70, %c1_71] : memref<1x3x8x16xf32, #tpu.memory_space<vmem>>, vector<1x1x8x15xf32>
    %97 = vector.shape_cast %96 : vector<1x1x8x15xf32> to vector<8x15xf32>
    %98 = vector.broadcast %95 : f32 to vector<8x15xf32>
    %99 = arith.mulf %97, %98 : vector<8x15xf32>
    %100 = arith.addf %94, %99 : vector<8x15xf32>
    %c24 = arith.constant 24 : index
    %101 = memref.load %arg2[%c24] : memref<135xf32, #tpu.memory_space<smem>>
    %c0_72 = arith.constant 0 : index
    %c2_73 = arith.constant 2 : index
    %c0_74 = arith.constant 0 : index
    %c1_75 = arith.constant 1 : index
    %102 = vector.load %arg4[%c0_72, %c2_73, %c0_74, %c1_75] : memref<1x3x8x16xf32, #tpu.memory_space<vmem>>, vector<1x1x8x15xf32>
    %103 = vector.shape_cast %102 : vector<1x1x8x15xf32> to vector<8x15xf32>
    %104 = vector.broadcast %101 : f32 to vector<8x15xf32>
    %105 = arith.mulf %103, %104 : vector<8x15xf32>
    %106 = arith.addf %100, %105 : vector<8x15xf32>
    %c0_76 = arith.constant 0 : index
    %c0_77 = arith.constant 0 : index
    %c0_78 = arith.constant 0 : index
    %c16 = arith.constant 16 : index
    %107 = vector.load %arg5[%c0_76, %c0_77, %c0_78, %c16] : memref<1x3x8x84xf32, #tpu.memory_space<vmem>>, vector<1x1x8x15xf32>
    %108 = vector.shape_cast %107 : vector<1x1x8x15xf32> to vector<8x15xf32>
    %109 = vector.shape_cast %106 : vector<8x15xf32> to vector<1x1x8x15xf32>
    tpu.vector_store %arg5[%c0_76, %c0_77, %c0_78, %c16], %109 {strides = array<i32>} : memref<1x3x8x84xf32, #tpu.memory_space<vmem>>, vector<1x1x8x15xf32>,
    %c10 = arith.constant 10 : index
    %110 = memref.load %arg2[%c10] : memref<135xf32, #tpu.memory_space<smem>>
    %c0_79 = arith.constant 0 : index
    %c0_80 = arith.constant 0 : index
    %c0_81 = arith.constant 0 : index
    %c0_82 = arith.constant 0 : index
    %111 = vector.load %arg4[%c0_79, %c0_80, %c0_81, %c0_82] : memref<1x3x8x16xf32, #tpu.memory_space<vmem>>, vector<1x1x8x15xf32>
    %112 = vector.shape_cast %111 : vector<1x1x8x15xf32> to vector<8x15xf32>
    %113 = vector.broadcast %110 : f32 to vector<8x15xf32>
    %114 = arith.mulf %112, %113 : vector<8x15xf32>
    %c4_83 = arith.constant 4 : index
    %115 = memref.load %arg3[%c4_83] : memref<18xf32, #tpu.memory_space<smem>>
    %116 = vector.broadcast %115 : f32 to vector<8x15xf32>
    %117 = arith.addf %114, %116 : vector<8x15xf32>
    %c13 = arith.constant 13 : index
    %118 = memref.load %arg2[%c13] : memref<135xf32, #tpu.memory_space<smem>>
    %c0_84 = arith.constant 0 : index
    %c1_85 = arith.constant 1 : index
    %c0_86 = arith.constant 0 : index
    %c0_87 = arith.constant 0 : index
    %119 = vector.load %arg4[%c0_84, %c1_85, %c0_86, %c0_87] : memref<1x3x8x16xf32, #tpu.memory_space<vmem>>, vector<1x1x8x15xf32>
    %120 = vector.shape_cast %119 : vector<1x1x8x15xf32> to vector<8x15xf32>
    %121 = vector.broadcast %118 : f32 to vector<8x15xf32>
    %122 = arith.mulf %120, %121 : vector<8x15xf32>
    %123 = arith.addf %117, %122 : vector<8x15xf32>
    %c16_88 = arith.constant 16 : index
    %124 = memref.load %arg2[%c16_88] : memref<135xf32, #tpu.memory_space<smem>>
    %c0_89 = arith.constant 0 : index
    %c2_90 = arith.constant 2 : index
    %c0_91 = arith.constant 0 : index
    %c0_92 = arith.constant 0 : index
    %125 = vector.load %arg4[%c0_89, %c2_90, %c0_91, %c0_92] : memref<1x3x8x16xf32, #tpu.memory_space<vmem>>, vector<1x1x8x15xf32>
    %126 = vector.shape_cast %125 : vector<1x1x8x15xf32> to vector<8x15xf32>
    %127 = vector.broadcast %124 : f32 to vector<8x15xf32>
    %128 = arith.mulf %126, %127 : vector<8x15xf32>
    %129 = arith.addf %123, %128 : vector<8x15xf32>
    %c19 = arith.constant 19 : index
    %130 = memref.load %arg2[%c19] : memref<135xf32, #tpu.memory_space<smem>>
    %c0_93 = arith.constant 0 : index
    %c0_94 = arith.constant 0 : index
    %c0_95 = arith.constant 0 : index
    %c1_96 = arith.constant 1 : index
    %131 = vector.load %arg4[%c0_93, %c0_94, %c0_95, %c1_96] : memref<1x3x8x16xf32, #tpu.memory_space<vmem>>, vector<1x1x8x15xf32>
    %132 = vector.shape_cast %131 : vector<1x1x8x15xf32> to vector<8x15xf32>
    %133 = vector.broadcast %130 : f32 to vector<8x15xf32>
    %134 = arith.mulf %132, %133 : vector<8x15xf32>
    %135 = arith.addf %129, %134 : vector<8x15xf32>
    %c22 = arith.constant 22 : index
    %136 = memref.load %arg2[%c22] : memref<135xf32, #tpu.memory_space<smem>>
    %c0_97 = arith.constant 0 : index
    %c1_98 = arith.constant 1 : index
    %c0_99 = arith.constant 0 : index
    %c1_100 = arith.constant 1 : index
    %137 = vector.load %arg4[%c0_97, %c1_98, %c0_99, %c1_100] : memref<1x3x8x16xf32, #tpu.memory_space<vmem>>, vector<1x1x8x15xf32>
    %138 = vector.shape_cast %137 : vector<1x1x8x15xf32> to vector<8x15xf32>
    %139 = vector.broadcast %136 : f32 to vector<8x15xf32>
    %140 = arith.mulf %138, %139 : vector<8x15xf32>
    %141 = arith.addf %135, %140 : vector<8x15xf32>
    %c25 = arith.constant 25 : index
    %142 = memref.load %arg2[%c25] : memref<135xf32, #tpu.memory_space<smem>>
    %c0_101 = arith.constant 0 : index
    %c2_102 = arith.constant 2 : index
    %c0_103 = arith.constant 0 : index
    %c1_104 = arith.constant 1 : index
    %143 = vector.load %arg4[%c0_101, %c2_102, %c0_103, %c1_104] : memref<1x3x8x16xf32, #tpu.memory_space<vmem>>, vector<1x1x8x15xf32>
    %144 = vector.shape_cast %143 : vector<1x1x8x15xf32> to vector<8x15xf32>
    %145 = vector.broadcast %142 : f32 to vector<8x15xf32>
    %146 = arith.mulf %144, %145 : vector<8x15xf32>
    %147 = arith.addf %141, %146 : vector<8x15xf32>
    %c0_105 = arith.constant 0 : index
    %c1_106 = arith.constant 1 : index
    %c0_107 = arith.constant 0 : index
    %c16_108 = arith.constant 16 : index
    %148 = vector.load %arg5[%c0_105, %c1_106, %c0_107, %c16_108] : memref<1x3x8x84xf32, #tpu.memory_space<vmem>>, vector<1x1x8x15xf32>
    %149 = vector.shape_cast %148 : vector<1x1x8x15xf32> to vector<8x15xf32>
    %150 = vector.shape_cast %147 : vector<8x15xf32> to vector<1x1x8x15xf32>
    tpu.vector_store %arg5[%c0_105, %c1_106, %c0_107, %c16_108], %150 {strides = array<i32>} : memref<1x3x8x84xf32, #tpu.memory_space<vmem>>, vector<1x1x8x15xf32>,
    %c11 = arith.constant 11 : index
    %151 = memref.load %arg2[%c11] : memref<135xf32, #tpu.memory_space<smem>>
    %c0_109 = arith.constant 0 : index
    %c0_110 = arith.constant 0 : index
    %c0_111 = arith.constant 0 : index
    %c0_112 = arith.constant 0 : index
    %152 = vector.load %arg4[%c0_109, %c0_110, %c0_111, %c0_112] : memref<1x3x8x16xf32, #tpu.memory_space<vmem>>, vector<1x1x8x15xf32>
    %153 = vector.shape_cast %152 : vector<1x1x8x15xf32> to vector<8x15xf32>
    %154 = vector.broadcast %151 : f32 to vector<8x15xf32>
    %155 = arith.mulf %153, %154 : vector<8x15xf32>
    %c5_113 = arith.constant 5 : index
    %156 = memref.load %arg3[%c5_113] : memref<18xf32, #tpu.memory_space<smem>>
    %157 = vector.broadcast %156 : f32 to vector<8x15xf32>
    %158 = arith.addf %155, %157 : vector<8x15xf32>
    %c14 = arith.constant 14 : index
    %159 = memref.load %arg2[%c14] : memref<135xf32, #tpu.memory_space<smem>>
    %c0_114 = arith.constant 0 : index
    %c1_115 = arith.constant 1 : index
    %c0_116 = arith.constant 0 : index
    %c0_117 = arith.constant 0 : index
    %160 = vector.load %arg4[%c0_114, %c1_115, %c0_116, %c0_117] : memref<1x3x8x16xf32, #tpu.memory_space<vmem>>, vector<1x1x8x15xf32>
    %161 = vector.shape_cast %160 : vector<1x1x8x15xf32> to vector<8x15xf32>
    %162 = vector.broadcast %159 : f32 to vector<8x15xf32>
    %163 = arith.mulf %161, %162 : vector<8x15xf32>
    %164 = arith.addf %158, %163 : vector<8x15xf32>
    %c17 = arith.constant 17 : index
    %165 = memref.load %arg2[%c17] : memref<135xf32, #tpu.memory_space<smem>>
    %c0_118 = arith.constant 0 : index
    %c2_119 = arith.constant 2 : index
    %c0_120 = arith.constant 0 : index
    %c0_121 = arith.constant 0 : index
    %166 = vector.load %arg4[%c0_118, %c2_119, %c0_120, %c0_121] : memref<1x3x8x16xf32, #tpu.memory_space<vmem>>, vector<1x1x8x15xf32>
    %167 = vector.shape_cast %166 : vector<1x1x8x15xf32> to vector<8x15xf32>
    %168 = vector.broadcast %165 : f32 to vector<8x15xf32>
    %169 = arith.mulf %167, %168 : vector<8x15xf32>
    %170 = arith.addf %164, %169 : vector<8x15xf32>
    %c20 = arith.constant 20 : index
    %171 = memref.load %arg2[%c20] : memref<135xf32, #tpu.memory_space<smem>>
    %c0_122 = arith.constant 0 : index
    %c0_123 = arith.constant 0 : index
    %c0_124 = arith.constant 0 : index
    %c1_125 = arith.constant 1 : index
    %172 = vector.load %arg4[%c0_122, %c0_123, %c0_124, %c1_125] : memref<1x3x8x16xf32, #tpu.memory_space<vmem>>, vector<1x1x8x15xf32>
    %173 = vector.shape_cast %172 : vector<1x1x8x15xf32> to vector<8x15xf32>
    %174 = vector.broadcast %171 : f32 to vector<8x15xf32>
    %175 = arith.mulf %173, %174 : vector<8x15xf32>
    %176 = arith.addf %170, %175 : vector<8x15xf32>
    %c23 = arith.constant 23 : index
    %177 = memref.load %arg2[%c23] : memref<135xf32, #tpu.memory_space<smem>>
    %c0_126 = arith.constant 0 : index
    %c1_127 = arith.constant 1 : index
    %c0_128 = arith.constant 0 : index
    %c1_129 = arith.constant 1 : index
    %178 = vector.load %arg4[%c0_126, %c1_127, %c0_128, %c1_129] : memref<1x3x8x16xf32, #tpu.memory_space<vmem>>, vector<1x1x8x15xf32>
    %179 = vector.shape_cast %178 : vector<1x1x8x15xf32> to vector<8x15xf32>
    %180 = vector.broadcast %177 : f32 to vector<8x15xf32>
    %181 = arith.mulf %179, %180 : vector<8x15xf32>
    %182 = arith.addf %176, %181 : vector<8x15xf32>
    %c26 = arith.constant 26 : index
    %183 = memref.load %arg2[%c26] : memref<135xf32, #tpu.memory_space<smem>>
    %c0_130 = arith.constant 0 : index
    %c2_131 = arith.constant 2 : index
    %c0_132 = arith.constant 0 : index
    %c1_133 = arith.constant 1 : index
    %184 = vector.load %arg4[%c0_130, %c2_131, %c0_132, %c1_133] : memref<1x3x8x16xf32, #tpu.memory_space<vmem>>, vector<1x1x8x15xf32>
    %185 = vector.shape_cast %184 : vector<1x1x8x15xf32> to vector<8x15xf32>
    %186 = vector.broadcast %183 : f32 to vector<8x15xf32>
    %187 = arith.mulf %185, %186 : vector<8x15xf32>
    %188 = arith.addf %182, %187 : vector<8x15xf32>
    %c0_134 = arith.constant 0 : index
    %c2_135 = arith.constant 2 : index
    %c0_136 = arith.constant 0 : index
    %c16_137 = arith.constant 16 : index
    %189 = vector.load %arg5[%c0_134, %c2_135, %c0_136, %c16_137] : memref<1x3x8x84xf32, #tpu.memory_space<vmem>>, vector<1x1x8x15xf32>
    %190 = vector.shape_cast %189 : vector<1x1x8x15xf32> to vector<8x15xf32>
    %191 = vector.shape_cast %188 : vector<8x15xf32> to vector<1x1x8x15xf32>
    tpu.vector_store %arg5[%c0_134, %c2_135, %c0_136, %c16_137], %191 {strides = array<i32>} : memref<1x3x8x84xf32, #tpu.memory_space<vmem>>, vector<1x1x8x15xf32>,
    %c27 = arith.constant 27 : index
    %192 = memref.load %arg2[%c27] : memref<135xf32, #tpu.memory_space<smem>>
    %c0_138 = arith.constant 0 : index
    %c0_139 = arith.constant 0 : index
    %c0_140 = arith.constant 0 : index
    %c0_141 = arith.constant 0 : index
    %193 = vector.load %arg4[%c0_138, %c0_139, %c0_140, %c0_141] : memref<1x3x8x16xf32, #tpu.memory_space<vmem>>, vector<1x1x8x14xf32>
    %194 = vector.shape_cast %193 : vector<1x1x8x14xf32> to vector<8x14xf32>
    %195 = vector.broadcast %192 : f32 to vector<8x14xf32>
    %196 = arith.mulf %194, %195 : vector<8x14xf32>
    %c6_142 = arith.constant 6 : index
    %197 = memref.load %arg3[%c6_142] : memref<18xf32, #tpu.memory_space<smem>>
    %198 = vector.broadcast %197 : f32 to vector<8x14xf32>
    %199 = arith.addf %196, %198 : vector<8x14xf32>
    %c30 = arith.constant 30 : index
    %200 = memref.load %arg2[%c30] : memref<135xf32, #tpu.memory_space<smem>>
    %c0_143 = arith.constant 0 : index
    %c1_144 = arith.constant 1 : index
    %c0_145 = arith.constant 0 : index
    %c0_146 = arith.constant 0 : index
    %201 = vector.load %arg4[%c0_143, %c1_144, %c0_145, %c0_146] : memref<1x3x8x16xf32, #tpu.memory_space<vmem>>, vector<1x1x8x14xf32>
    %202 = vector.shape_cast %201 : vector<1x1x8x14xf32> to vector<8x14xf32>
    %203 = vector.broadcast %200 : f32 to vector<8x14xf32>
    %204 = arith.mulf %202, %203 : vector<8x14xf32>
    %205 = arith.addf %199, %204 : vector<8x14xf32>
    %c33 = arith.constant 33 : index
    %206 = memref.load %arg2[%c33] : memref<135xf32, #tpu.memory_space<smem>>
    %c0_147 = arith.constant 0 : index
    %c2_148 = arith.constant 2 : index
    %c0_149 = arith.constant 0 : index
    %c0_150 = arith.constant 0 : index
    %207 = vector.load %arg4[%c0_147, %c2_148, %c0_149, %c0_150] : memref<1x3x8x16xf32, #tpu.memory_space<vmem>>, vector<1x1x8x14xf32>
    %208 = vector.shape_cast %207 : vector<1x1x8x14xf32> to vector<8x14xf32>
    %209 = vector.broadcast %206 : f32 to vector<8x14xf32>
    %210 = arith.mulf %208, %209 : vector<8x14xf32>
    %211 = arith.addf %205, %210 : vector<8x14xf32>
    %c36 = arith.constant 36 : index
    %212 = memref.load %arg2[%c36] : memref<135xf32, #tpu.memory_space<smem>>
    %c0_151 = arith.constant 0 : index
    %c0_152 = arith.constant 0 : index
    %c0_153 = arith.constant 0 : index
    %c1_154 = arith.constant 1 : index
    %213 = vector.load %arg4[%c0_151, %c0_152, %c0_153, %c1_154] : memref<1x3x8x16xf32, #tpu.memory_space<vmem>>, vector<1x1x8x14xf32>
    %214 = vector.shape_cast %213 : vector<1x1x8x14xf32> to vector<8x14xf32>
    %215 = vector.broadcast %212 : f32 to vector<8x14xf32>
    %216 = arith.mulf %214, %215 : vector<8x14xf32>
    %217 = arith.addf %211, %216 : vector<8x14xf32>
    %c39 = arith.constant 39 : index
    %218 = memref.load %arg2[%c39] : memref<135xf32, #tpu.memory_space<smem>>
    %c0_155 = arith.constant 0 : index
    %c1_156 = arith.constant 1 : index
    %c0_157 = arith.constant 0 : index
    %c1_158 = arith.constant 1 : index
    %219 = vector.load %arg4[%c0_155, %c1_156, %c0_157, %c1_158] : memref<1x3x8x16xf32, #tpu.memory_space<vmem>>, vector<1x1x8x14xf32>
    %220 = vector.shape_cast %219 : vector<1x1x8x14xf32> to vector<8x14xf32>
    %221 = vector.broadcast %218 : f32 to vector<8x14xf32>
    %222 = arith.mulf %220, %221 : vector<8x14xf32>
    %223 = arith.addf %217, %222 : vector<8x14xf32>
    %c42 = arith.constant 42 : index
    %224 = memref.load %arg2[%c42] : memref<135xf32, #tpu.memory_space<smem>>
    %c0_159 = arith.constant 0 : index
    %c2_160 = arith.constant 2 : index
    %c0_161 = arith.constant 0 : index
    %c1_162 = arith.constant 1 : index
    %225 = vector.load %arg4[%c0_159, %c2_160, %c0_161, %c1_162] : memref<1x3x8x16xf32, #tpu.memory_space<vmem>>, vector<1x1x8x14xf32>
    %226 = vector.shape_cast %225 : vector<1x1x8x14xf32> to vector<8x14xf32>
    %227 = vector.broadcast %224 : f32 to vector<8x14xf32>
    %228 = arith.mulf %226, %227 : vector<8x14xf32>
    %229 = arith.addf %223, %228 : vector<8x14xf32>
    %c45 = arith.constant 45 : index
    %230 = memref.load %arg2[%c45] : memref<135xf32, #tpu.memory_space<smem>>
    %c0_163 = arith.constant 0 : index
    %c0_164 = arith.constant 0 : index
    %c0_165 = arith.constant 0 : index
    %c2_166 = arith.constant 2 : index
    %231 = vector.load %arg4[%c0_163, %c0_164, %c0_165, %c2_166] : memref<1x3x8x16xf32, #tpu.memory_space<vmem>>, vector<1x1x8x14xf32>
    %232 = vector.shape_cast %231 : vector<1x1x8x14xf32> to vector<8x14xf32>
    %233 = vector.broadcast %230 : f32 to vector<8x14xf32>
    %234 = arith.mulf %232, %233 : vector<8x14xf32>
    %235 = arith.addf %229, %234 : vector<8x14xf32>
    %c48 = arith.constant 48 : index
    %236 = memref.load %arg2[%c48] : memref<135xf32, #tpu.memory_space<smem>>
    %c0_167 = arith.constant 0 : index
    %c1_168 = arith.constant 1 : index
    %c0_169 = arith.constant 0 : index
    %c2_170 = arith.constant 2 : index
    %237 = vector.load %arg4[%c0_167, %c1_168, %c0_169, %c2_170] : memref<1x3x8x16xf32, #tpu.memory_space<vmem>>, vector<1x1x8x14xf32>
    %238 = vector.shape_cast %237 : vector<1x1x8x14xf32> to vector<8x14xf32>
    %239 = vector.broadcast %236 : f32 to vector<8x14xf32>
    %240 = arith.mulf %238, %239 : vector<8x14xf32>
    %241 = arith.addf %235, %240 : vector<8x14xf32>
    %c51 = arith.constant 51 : index
    %242 = memref.load %arg2[%c51] : memref<135xf32, #tpu.memory_space<smem>>
    %c0_171 = arith.constant 0 : index
    %c2_172 = arith.constant 2 : index
    %c0_173 = arith.constant 0 : index
    %c2_174 = arith.constant 2 : index
    %243 = vector.load %arg4[%c0_171, %c2_172, %c0_173, %c2_174] : memref<1x3x8x16xf32, #tpu.memory_space<vmem>>, vector<1x1x8x14xf32>
    %244 = vector.shape_cast %243 : vector<1x1x8x14xf32> to vector<8x14xf32>
    %245 = vector.broadcast %242 : f32 to vector<8x14xf32>
    %246 = arith.mulf %244, %245 : vector<8x14xf32>
    %247 = arith.addf %241, %246 : vector<8x14xf32>
    %c0_175 = arith.constant 0 : index
    %c0_176 = arith.constant 0 : index
    %c0_177 = arith.constant 0 : index
    %c31 = arith.constant 31 : index
    %248 = vector.load %arg5[%c0_175, %c0_176, %c0_177, %c31] : memref<1x3x8x84xf32, #tpu.memory_space<vmem>>, vector<1x1x8x14xf32>
    %249 = vector.shape_cast %248 : vector<1x1x8x14xf32> to vector<8x14xf32>
    %250 = vector.shape_cast %247 : vector<8x14xf32> to vector<1x1x8x14xf32>
    tpu.vector_store %arg5[%c0_175, %c0_176, %c0_177, %c31], %250 {strides = array<i32>} : memref<1x3x8x84xf32, #tpu.memory_space<vmem>>, vector<1x1x8x14xf32>,
    %c28 = arith.constant 28 : index
    %251 = memref.load %arg2[%c28] : memref<135xf32, #tpu.memory_space<smem>>
    %c0_178 = arith.constant 0 : index
    %c0_179 = arith.constant 0 : index
    %c0_180 = arith.constant 0 : index
    %c0_181 = arith.constant 0 : index
    %252 = vector.load %arg4[%c0_178, %c0_179, %c0_180, %c0_181] : memref<1x3x8x16xf32, #tpu.memory_space<vmem>>, vector<1x1x8x14xf32>
    %253 = vector.shape_cast %252 : vector<1x1x8x14xf32> to vector<8x14xf32>
    %254 = vector.broadcast %251 : f32 to vector<8x14xf32>
    %255 = arith.mulf %253, %254 : vector<8x14xf32>
    %c7_182 = arith.constant 7 : index
    %256 = memref.load %arg3[%c7_182] : memref<18xf32, #tpu.memory_space<smem>>
    %257 = vector.broadcast %256 : f32 to vector<8x14xf32>
    %258 = arith.addf %255, %257 : vector<8x14xf32>
    %c31_183 = arith.constant 31 : index
    %259 = memref.load %arg2[%c31_183] : memref<135xf32, #tpu.memory_space<smem>>
    %c0_184 = arith.constant 0 : index
    %c1_185 = arith.constant 1 : index
    %c0_186 = arith.constant 0 : index
    %c0_187 = arith.constant 0 : index
    %260 = vector.load %arg4[%c0_184, %c1_185, %c0_186, %c0_187] : memref<1x3x8x16xf32, #tpu.memory_space<vmem>>, vector<1x1x8x14xf32>
    %261 = vector.shape_cast %260 : vector<1x1x8x14xf32> to vector<8x14xf32>
    %262 = vector.broadcast %259 : f32 to vector<8x14xf32>
    %263 = arith.mulf %261, %262 : vector<8x14xf32>
    %264 = arith.addf %258, %263 : vector<8x14xf32>
    %c34 = arith.constant 34 : index
    %265 = memref.load %arg2[%c34] : memref<135xf32, #tpu.memory_space<smem>>
    %c0_188 = arith.constant 0 : index
    %c2_189 = arith.constant 2 : index
    %c0_190 = arith.constant 0 : index
    %c0_191 = arith.constant 0 : index
    %266 = vector.load %arg4[%c0_188, %c2_189, %c0_190, %c0_191] : memref<1x3x8x16xf32, #tpu.memory_space<vmem>>, vector<1x1x8x14xf32>
    %267 = vector.shape_cast %266 : vector<1x1x8x14xf32> to vector<8x14xf32>
    %268 = vector.broadcast %265 : f32 to vector<8x14xf32>
    %269 = arith.mulf %267, %268 : vector<8x14xf32>
    %270 = arith.addf %264, %269 : vector<8x14xf32>
    %c37 = arith.constant 37 : index
    %271 = memref.load %arg2[%c37] : memref<135xf32, #tpu.memory_space<smem>>
    %c0_192 = arith.constant 0 : index
    %c0_193 = arith.constant 0 : index
    %c0_194 = arith.constant 0 : index
    %c1_195 = arith.constant 1 : index
    %272 = vector.load %arg4[%c0_192, %c0_193, %c0_194, %c1_195] : memref<1x3x8x16xf32, #tpu.memory_space<vmem>>, vector<1x1x8x14xf32>
    %273 = vector.shape_cast %272 : vector<1x1x8x14xf32> to vector<8x14xf32>
    %274 = vector.broadcast %271 : f32 to vector<8x14xf32>
    %275 = arith.mulf %273, %274 : vector<8x14xf32>
    %276 = arith.addf %270, %275 : vector<8x14xf32>
    %c40 = arith.constant 40 : index
    %277 = memref.load %arg2[%c40] : memref<135xf32, #tpu.memory_space<smem>>
    %c0_196 = arith.constant 0 : index
    %c1_197 = arith.constant 1 : index
    %c0_198 = arith.constant 0 : index
    %c1_199 = arith.constant 1 : index
    %278 = vector.load %arg4[%c0_196, %c1_197, %c0_198, %c1_199] : memref<1x3x8x16xf32, #tpu.memory_space<vmem>>, vector<1x1x8x14xf32>
    %279 = vector.shape_cast %278 : vector<1x1x8x14xf32> to vector<8x14xf32>
    %280 = vector.broadcast %277 : f32 to vector<8x14xf32>
    %281 = arith.mulf %279, %280 : vector<8x14xf32>
    %282 = arith.addf %276, %281 : vector<8x14xf32>
    %c43 = arith.constant 43 : index
    %283 = memref.load %arg2[%c43] : memref<135xf32, #tpu.memory_space<smem>>
    %c0_200 = arith.constant 0 : index
    %c2_201 = arith.constant 2 : index
    %c0_202 = arith.constant 0 : index
    %c1_203 = arith.constant 1 : index
    %284 = vector.load %arg4[%c0_200, %c2_201, %c0_202, %c1_203] : memref<1x3x8x16xf32, #tpu.memory_space<vmem>>, vector<1x1x8x14xf32>
    %285 = vector.shape_cast %284 : vector<1x1x8x14xf32> to vector<8x14xf32>
    %286 = vector.broadcast %283 : f32 to vector<8x14xf32>
    %287 = arith.mulf %285, %286 : vector<8x14xf32>
    %288 = arith.addf %282, %287 : vector<8x14xf32>
    %c46 = arith.constant 46 : index
    %289 = memref.load %arg2[%c46] : memref<135xf32, #tpu.memory_space<smem>>
    %c0_204 = arith.constant 0 : index
    %c0_205 = arith.constant 0 : index
    %c0_206 = arith.constant 0 : index
    %c2_207 = arith.constant 2 : index
    %290 = vector.load %arg4[%c0_204, %c0_205, %c0_206, %c2_207] : memref<1x3x8x16xf32, #tpu.memory_space<vmem>>, vector<1x1x8x14xf32>
    %291 = vector.shape_cast %290 : vector<1x1x8x14xf32> to vector<8x14xf32>
    %292 = vector.broadcast %289 : f32 to vector<8x14xf32>
    %293 = arith.mulf %291, %292 : vector<8x14xf32>
    %294 = arith.addf %288, %293 : vector<8x14xf32>
    %c49 = arith.constant 49 : index
    %295 = memref.load %arg2[%c49] : memref<135xf32, #tpu.memory_space<smem>>
    %c0_208 = arith.constant 0 : index
    %c1_209 = arith.constant 1 : index
    %c0_210 = arith.constant 0 : index
    %c2_211 = arith.constant 2 : index
    %296 = vector.load %arg4[%c0_208, %c1_209, %c0_210, %c2_211] : memref<1x3x8x16xf32, #tpu.memory_space<vmem>>, vector<1x1x8x14xf32>
    %297 = vector.shape_cast %296 : vector<1x1x8x14xf32> to vector<8x14xf32>
    %298 = vector.broadcast %295 : f32 to vector<8x14xf32>
    %299 = arith.mulf %297, %298 : vector<8x14xf32>
    %300 = arith.addf %294, %299 : vector<8x14xf32>
    %c52 = arith.constant 52 : index
    %301 = memref.load %arg2[%c52] : memref<135xf32, #tpu.memory_space<smem>>
    %c0_212 = arith.constant 0 : index
    %c2_213 = arith.constant 2 : index
    %c0_214 = arith.constant 0 : index
    %c2_215 = arith.constant 2 : index
    %302 = vector.load %arg4[%c0_212, %c2_213, %c0_214, %c2_215] : memref<1x3x8x16xf32, #tpu.memory_space<vmem>>, vector<1x1x8x14xf32>
    %303 = vector.shape_cast %302 : vector<1x1x8x14xf32> to vector<8x14xf32>
    %304 = vector.broadcast %301 : f32 to vector<8x14xf32>
    %305 = arith.mulf %303, %304 : vector<8x14xf32>
    %306 = arith.addf %300, %305 : vector<8x14xf32>
    %c0_216 = arith.constant 0 : index
    %c1_217 = arith.constant 1 : index
    %c0_218 = arith.constant 0 : index
    %c31_219 = arith.constant 31 : index
    %307 = vector.load %arg5[%c0_216, %c1_217, %c0_218, %c31_219] : memref<1x3x8x84xf32, #tpu.memory_space<vmem>>, vector<1x1x8x14xf32>
    %308 = vector.shape_cast %307 : vector<1x1x8x14xf32> to vector<8x14xf32>
    %309 = vector.shape_cast %306 : vector<8x14xf32> to vector<1x1x8x14xf32>
    tpu.vector_store %arg5[%c0_216, %c1_217, %c0_218, %c31_219], %309 {strides = array<i32>} : memref<1x3x8x84xf32, #tpu.memory_space<vmem>>, vector<1x1x8x14xf32>,
    %c29 = arith.constant 29 : index
    %310 = memref.load %arg2[%c29] : memref<135xf32, #tpu.memory_space<smem>>
    %c0_220 = arith.constant 0 : index
    %c0_221 = arith.constant 0 : index
    %c0_222 = arith.constant 0 : index
    %c0_223 = arith.constant 0 : index
    %311 = vector.load %arg4[%c0_220, %c0_221, %c0_222, %c0_223] : memref<1x3x8x16xf32, #tpu.memory_space<vmem>>, vector<1x1x8x14xf32>
    %312 = vector.shape_cast %311 : vector<1x1x8x14xf32> to vector<8x14xf32>
    %313 = vector.broadcast %310 : f32 to vector<8x14xf32>
    %314 = arith.mulf %312, %313 : vector<8x14xf32>
    %c8_224 = arith.constant 8 : index
    %315 = memref.load %arg3[%c8_224] : memref<18xf32, #tpu.memory_space<smem>>
    %316 = vector.broadcast %315 : f32 to vector<8x14xf32>
    %317 = arith.addf %314, %316 : vector<8x14xf32>
    %c32 = arith.constant 32 : index
    %318 = memref.load %arg2[%c32] : memref<135xf32, #tpu.memory_space<smem>>
    %c0_225 = arith.constant 0 : index
    %c1_226 = arith.constant 1 : index
    %c0_227 = arith.constant 0 : index
    %c0_228 = arith.constant 0 : index
    %319 = vector.load %arg4[%c0_225, %c1_226, %c0_227, %c0_228] : memref<1x3x8x16xf32, #tpu.memory_space<vmem>>, vector<1x1x8x14xf32>
    %320 = vector.shape_cast %319 : vector<1x1x8x14xf32> to vector<8x14xf32>
    %321 = vector.broadcast %318 : f32 to vector<8x14xf32>
    %322 = arith.mulf %320, %321 : vector<8x14xf32>
    %323 = arith.addf %317, %322 : vector<8x14xf32>
    %c35 = arith.constant 35 : index
    %324 = memref.load %arg2[%c35] : memref<135xf32, #tpu.memory_space<smem>>
    %c0_229 = arith.constant 0 : index
    %c2_230 = arith.constant 2 : index
    %c0_231 = arith.constant 0 : index
    %c0_232 = arith.constant 0 : index
    %325 = vector.load %arg4[%c0_229, %c2_230, %c0_231, %c0_232] : memref<1x3x8x16xf32, #tpu.memory_space<vmem>>, vector<1x1x8x14xf32>
    %326 = vector.shape_cast %325 : vector<1x1x8x14xf32> to vector<8x14xf32>
    %327 = vector.broadcast %324 : f32 to vector<8x14xf32>
    %328 = arith.mulf %326, %327 : vector<8x14xf32>
    %329 = arith.addf %323, %328 : vector<8x14xf32>
    %c38 = arith.constant 38 : index
    %330 = memref.load %arg2[%c38] : memref<135xf32, #tpu.memory_space<smem>>
    %c0_233 = arith.constant 0 : index
    %c0_234 = arith.constant 0 : index
    %c0_235 = arith.constant 0 : index
    %c1_236 = arith.constant 1 : index
    %331 = vector.load %arg4[%c0_233, %c0_234, %c0_235, %c1_236] : memref<1x3x8x16xf32, #tpu.memory_space<vmem>>, vector<1x1x8x14xf32>
    %332 = vector.shape_cast %331 : vector<1x1x8x14xf32> to vector<8x14xf32>
    %333 = vector.broadcast %330 : f32 to vector<8x14xf32>
    %334 = arith.mulf %332, %333 : vector<8x14xf32>
    %335 = arith.addf %329, %334 : vector<8x14xf32>
    %c41 = arith.constant 41 : index
    %336 = memref.load %arg2[%c41] : memref<135xf32, #tpu.memory_space<smem>>
    %c0_237 = arith.constant 0 : index
    %c1_238 = arith.constant 1 : index
    %c0_239 = arith.constant 0 : index
    %c1_240 = arith.constant 1 : index
    %337 = vector.load %arg4[%c0_237, %c1_238, %c0_239, %c1_240] : memref<1x3x8x16xf32, #tpu.memory_space<vmem>>, vector<1x1x8x14xf32>
    %338 = vector.shape_cast %337 : vector<1x1x8x14xf32> to vector<8x14xf32>
    %339 = vector.broadcast %336 : f32 to vector<8x14xf32>
    %340 = arith.mulf %338, %339 : vector<8x14xf32>
    %341 = arith.addf %335, %340 : vector<8x14xf32>
    %c44 = arith.constant 44 : index
    %342 = memref.load %arg2[%c44] : memref<135xf32, #tpu.memory_space<smem>>
    %c0_241 = arith.constant 0 : index
    %c2_242 = arith.constant 2 : index
    %c0_243 = arith.constant 0 : index
    %c1_244 = arith.constant 1 : index
    %343 = vector.load %arg4[%c0_241, %c2_242, %c0_243, %c1_244] : memref<1x3x8x16xf32, #tpu.memory_space<vmem>>, vector<1x1x8x14xf32>
    %344 = vector.shape_cast %343 : vector<1x1x8x14xf32> to vector<8x14xf32>
    %345 = vector.broadcast %342 : f32 to vector<8x14xf32>
    %346 = arith.mulf %344, %345 : vector<8x14xf32>
    %347 = arith.addf %341, %346 : vector<8x14xf32>
    %c47 = arith.constant 47 : index
    %348 = memref.load %arg2[%c47] : memref<135xf32, #tpu.memory_space<smem>>
    %c0_245 = arith.constant 0 : index
    %c0_246 = arith.constant 0 : index
    %c0_247 = arith.constant 0 : index
    %c2_248 = arith.constant 2 : index
    %349 = vector.load %arg4[%c0_245, %c0_246, %c0_247, %c2_248] : memref<1x3x8x16xf32, #tpu.memory_space<vmem>>, vector<1x1x8x14xf32>
    %350 = vector.shape_cast %349 : vector<1x1x8x14xf32> to vector<8x14xf32>
    %351 = vector.broadcast %348 : f32 to vector<8x14xf32>
    %352 = arith.mulf %350, %351 : vector<8x14xf32>
    %353 = arith.addf %347, %352 : vector<8x14xf32>
    %c50 = arith.constant 50 : index
    %354 = memref.load %arg2[%c50] : memref<135xf32, #tpu.memory_space<smem>>
    %c0_249 = arith.constant 0 : index
    %c1_250 = arith.constant 1 : index
    %c0_251 = arith.constant 0 : index
    %c2_252 = arith.constant 2 : index
    %355 = vector.load %arg4[%c0_249, %c1_250, %c0_251, %c2_252] : memref<1x3x8x16xf32, #tpu.memory_space<vmem>>, vector<1x1x8x14xf32>
    %356 = vector.shape_cast %355 : vector<1x1x8x14xf32> to vector<8x14xf32>
    %357 = vector.broadcast %354 : f32 to vector<8x14xf32>
    %358 = arith.mulf %356, %357 : vector<8x14xf32>
    %359 = arith.addf %353, %358 : vector<8x14xf32>
    %c53 = arith.constant 53 : index
    %360 = memref.load %arg2[%c53] : memref<135xf32, #tpu.memory_space<smem>>
    %c0_253 = arith.constant 0 : index
    %c2_254 = arith.constant 2 : index
    %c0_255 = arith.constant 0 : index
    %c2_256 = arith.constant 2 : index
    %361 = vector.load %arg4[%c0_253, %c2_254, %c0_255, %c2_256] : memref<1x3x8x16xf32, #tpu.memory_space<vmem>>, vector<1x1x8x14xf32>
    %362 = vector.shape_cast %361 : vector<1x1x8x14xf32> to vector<8x14xf32>
    %363 = vector.broadcast %360 : f32 to vector<8x14xf32>
    %364 = arith.mulf %362, %363 : vector<8x14xf32>
    %365 = arith.addf %359, %364 : vector<8x14xf32>
    %c0_257 = arith.constant 0 : index
    %c2_258 = arith.constant 2 : index
    %c0_259 = arith.constant 0 : index
    %c31_260 = arith.constant 31 : index
    %366 = vector.load %arg5[%c0_257, %c2_258, %c0_259, %c31_260] : memref<1x3x8x84xf32, #tpu.memory_space<vmem>>, vector<1x1x8x14xf32>
    %367 = vector.shape_cast %366 : vector<1x1x8x14xf32> to vector<8x14xf32>
    %368 = vector.shape_cast %365 : vector<8x14xf32> to vector<1x1x8x14xf32>
    tpu.vector_store %arg5[%c0_257, %c2_258, %c0_259, %c31_260], %368 {strides = array<i32>} : memref<1x3x8x84xf32, #tpu.memory_space<vmem>>, vector<1x1x8x14xf32>,
    %c54 = arith.constant 54 : index
    %369 = memref.load %arg2[%c54] : memref<135xf32, #tpu.memory_space<smem>>
    %c0_261 = arith.constant 0 : index
    %c0_262 = arith.constant 0 : index
    %c0_263 = arith.constant 0 : index
    %c0_264 = arith.constant 0 : index
    %370 = vector.load %arg4[%c0_261, %c0_262, %c0_263, %c0_264] : memref<1x3x8x16xf32, #tpu.memory_space<vmem>>, vector<1x1x8x13xf32>
    %371 = vector.shape_cast %370 : vector<1x1x8x13xf32> to vector<8x13xf32>
    %372 = vector.broadcast %369 : f32 to vector<8x13xf32>
    %373 = arith.mulf %371, %372 : vector<8x13xf32>
    %c9_265 = arith.constant 9 : index
    %374 = memref.load %arg3[%c9_265] : memref<18xf32, #tpu.memory_space<smem>>
    %375 = vector.broadcast %374 : f32 to vector<8x13xf32>
    %376 = arith.addf %373, %375 : vector<8x13xf32>
    %c57 = arith.constant 57 : index
    %377 = memref.load %arg2[%c57] : memref<135xf32, #tpu.memory_space<smem>>
    %c0_266 = arith.constant 0 : index
    %c1_267 = arith.constant 1 : index
    %c0_268 = arith.constant 0 : index
    %c0_269 = arith.constant 0 : index
    %378 = vector.load %arg4[%c0_266, %c1_267, %c0_268, %c0_269] : memref<1x3x8x16xf32, #tpu.memory_space<vmem>>, vector<1x1x8x13xf32>
    %379 = vector.shape_cast %378 : vector<1x1x8x13xf32> to vector<8x13xf32>
    %380 = vector.broadcast %377 : f32 to vector<8x13xf32>
    %381 = arith.mulf %379, %380 : vector<8x13xf32>
    %382 = arith.addf %376, %381 : vector<8x13xf32>
    %c60 = arith.constant 60 : index
    %383 = memref.load %arg2[%c60] : memref<135xf32, #tpu.memory_space<smem>>
    %c0_270 = arith.constant 0 : index
    %c2_271 = arith.constant 2 : index
    %c0_272 = arith.constant 0 : index
    %c0_273 = arith.constant 0 : index
    %384 = vector.load %arg4[%c0_270, %c2_271, %c0_272, %c0_273] : memref<1x3x8x16xf32, #tpu.memory_space<vmem>>, vector<1x1x8x13xf32>
    %385 = vector.shape_cast %384 : vector<1x1x8x13xf32> to vector<8x13xf32>
    %386 = vector.broadcast %383 : f32 to vector<8x13xf32>
    %387 = arith.mulf %385, %386 : vector<8x13xf32>
    %388 = arith.addf %382, %387 : vector<8x13xf32>
    %c63 = arith.constant 63 : index
    %389 = memref.load %arg2[%c63] : memref<135xf32, #tpu.memory_space<smem>>
    %c0_274 = arith.constant 0 : index
    %c0_275 = arith.constant 0 : index
    %c0_276 = arith.constant 0 : index
    %c1_277 = arith.constant 1 : index
    %390 = vector.load %arg4[%c0_274, %c0_275, %c0_276, %c1_277] : memref<1x3x8x16xf32, #tpu.memory_space<vmem>>, vector<1x1x8x13xf32>
    %391 = vector.shape_cast %390 : vector<1x1x8x13xf32> to vector<8x13xf32>
    %392 = vector.broadcast %389 : f32 to vector<8x13xf32>
    %393 = arith.mulf %391, %392 : vector<8x13xf32>
    %394 = arith.addf %388, %393 : vector<8x13xf32>
    %c66 = arith.constant 66 : index
    %395 = memref.load %arg2[%c66] : memref<135xf32, #tpu.memory_space<smem>>
    %c0_278 = arith.constant 0 : index
    %c1_279 = arith.constant 1 : index
    %c0_280 = arith.constant 0 : index
    %c1_281 = arith.constant 1 : index
    %396 = vector.load %arg4[%c0_278, %c1_279, %c0_280, %c1_281] : memref<1x3x8x16xf32, #tpu.memory_space<vmem>>, vector<1x1x8x13xf32>
    %397 = vector.shape_cast %396 : vector<1x1x8x13xf32> to vector<8x13xf32>
    %398 = vector.broadcast %395 : f32 to vector<8x13xf32>
    %399 = arith.mulf %397, %398 : vector<8x13xf32>
    %400 = arith.addf %394, %399 : vector<8x13xf32>
    %c69 = arith.constant 69 : index
    %401 = memref.load %arg2[%c69] : memref<135xf32, #tpu.memory_space<smem>>
    %c0_282 = arith.constant 0 : index
    %c2_283 = arith.constant 2 : index
    %c0_284 = arith.constant 0 : index
    %c1_285 = arith.constant 1 : index
    %402 = vector.load %arg4[%c0_282, %c2_283, %c0_284, %c1_285] : memref<1x3x8x16xf32, #tpu.memory_space<vmem>>, vector<1x1x8x13xf32>
    %403 = vector.shape_cast %402 : vector<1x1x8x13xf32> to vector<8x13xf32>
    %404 = vector.broadcast %401 : f32 to vector<8x13xf32>
    %405 = arith.mulf %403, %404 : vector<8x13xf32>
    %406 = arith.addf %400, %405 : vector<8x13xf32>
    %c72 = arith.constant 72 : index
    %407 = memref.load %arg2[%c72] : memref<135xf32, #tpu.memory_space<smem>>
    %c0_286 = arith.constant 0 : index
    %c0_287 = arith.constant 0 : index
    %c0_288 = arith.constant 0 : index
    %c2_289 = arith.constant 2 : index
    %408 = vector.load %arg4[%c0_286, %c0_287, %c0_288, %c2_289] : memref<1x3x8x16xf32, #tpu.memory_space<vmem>>, vector<1x1x8x13xf32>
    %409 = vector.shape_cast %408 : vector<1x1x8x13xf32> to vector<8x13xf32>
    %410 = vector.broadcast %407 : f32 to vector<8x13xf32>
    %411 = arith.mulf %409, %410 : vector<8x13xf32>
    %412 = arith.addf %406, %411 : vector<8x13xf32>
    %c75 = arith.constant 75 : index
    %413 = memref.load %arg2[%c75] : memref<135xf32, #tpu.memory_space<smem>>
    %c0_290 = arith.constant 0 : index
    %c1_291 = arith.constant 1 : index
    %c0_292 = arith.constant 0 : index
    %c2_293 = arith.constant 2 : index
    %414 = vector.load %arg4[%c0_290, %c1_291, %c0_292, %c2_293] : memref<1x3x8x16xf32, #tpu.memory_space<vmem>>, vector<1x1x8x13xf32>
    %415 = vector.shape_cast %414 : vector<1x1x8x13xf32> to vector<8x13xf32>
    %416 = vector.broadcast %413 : f32 to vector<8x13xf32>
    %417 = arith.mulf %415, %416 : vector<8x13xf32>
    %418 = arith.addf %412, %417 : vector<8x13xf32>
    %c78 = arith.constant 78 : index
    %419 = memref.load %arg2[%c78] : memref<135xf32, #tpu.memory_space<smem>>
    %c0_294 = arith.constant 0 : index
    %c2_295 = arith.constant 2 : index
    %c0_296 = arith.constant 0 : index
    %c2_297 = arith.constant 2 : index
    %420 = vector.load %arg4[%c0_294, %c2_295, %c0_296, %c2_297] : memref<1x3x8x16xf32, #tpu.memory_space<vmem>>, vector<1x1x8x13xf32>
    %421 = vector.shape_cast %420 : vector<1x1x8x13xf32> to vector<8x13xf32>
    %422 = vector.broadcast %419 : f32 to vector<8x13xf32>
    %423 = arith.mulf %421, %422 : vector<8x13xf32>
    %424 = arith.addf %418, %423 : vector<8x13xf32>
    %c81 = arith.constant 81 : index
    %425 = memref.load %arg2[%c81] : memref<135xf32, #tpu.memory_space<smem>>
    %c0_298 = arith.constant 0 : index
    %c0_299 = arith.constant 0 : index
    %c0_300 = arith.constant 0 : index
    %c3_301 = arith.constant 3 : index
    %426 = vector.load %arg4[%c0_298, %c0_299, %c0_300, %c3_301] : memref<1x3x8x16xf32, #tpu.memory_space<vmem>>, vector<1x1x8x13xf32>
    %427 = vector.shape_cast %426 : vector<1x1x8x13xf32> to vector<8x13xf32>
    %428 = vector.broadcast %425 : f32 to vector<8x13xf32>
    %429 = arith.mulf %427, %428 : vector<8x13xf32>
    %430 = arith.addf %424, %429 : vector<8x13xf32>
    %c84 = arith.constant 84 : index
    %431 = memref.load %arg2[%c84] : memref<135xf32, #tpu.memory_space<smem>>
    %c0_302 = arith.constant 0 : index
    %c1_303 = arith.constant 1 : index
    %c0_304 = arith.constant 0 : index
    %c3_305 = arith.constant 3 : index
    %432 = vector.load %arg4[%c0_302, %c1_303, %c0_304, %c3_305] : memref<1x3x8x16xf32, #tpu.memory_space<vmem>>, vector<1x1x8x13xf32>
    %433 = vector.shape_cast %432 : vector<1x1x8x13xf32> to vector<8x13xf32>
    %434 = vector.broadcast %431 : f32 to vector<8x13xf32>
    %435 = arith.mulf %433, %434 : vector<8x13xf32>
    %436 = arith.addf %430, %435 : vector<8x13xf32>
    %c87 = arith.constant 87 : index
    %437 = memref.load %arg2[%c87] : memref<135xf32, #tpu.memory_space<smem>>
    %c0_306 = arith.constant 0 : index
    %c2_307 = arith.constant 2 : index
    %c0_308 = arith.constant 0 : index
    %c3_309 = arith.constant 3 : index
    %438 = vector.load %arg4[%c0_306, %c2_307, %c0_308, %c3_309] : memref<1x3x8x16xf32, #tpu.memory_space<vmem>>, vector<1x1x8x13xf32>
    %439 = vector.shape_cast %438 : vector<1x1x8x13xf32> to vector<8x13xf32>
    %440 = vector.broadcast %437 : f32 to vector<8x13xf32>
    %441 = arith.mulf %439, %440 : vector<8x13xf32>
    %442 = arith.addf %436, %441 : vector<8x13xf32>
    %c0_310 = arith.constant 0 : index
    %c0_311 = arith.constant 0 : index
    %c0_312 = arith.constant 0 : index
    %c45_313 = arith.constant 45 : index
    %443 = vector.load %arg5[%c0_310, %c0_311, %c0_312, %c45_313] : memref<1x3x8x84xf32, #tpu.memory_space<vmem>>, vector<1x1x8x13xf32>
    %444 = vector.shape_cast %443 : vector<1x1x8x13xf32> to vector<8x13xf32>
    %445 = vector.shape_cast %442 : vector<8x13xf32> to vector<1x1x8x13xf32>
    tpu.vector_store %arg5[%c0_310, %c0_311, %c0_312, %c45_313], %445 {strides = array<i32>} : memref<1x3x8x84xf32, #tpu.memory_space<vmem>>, vector<1x1x8x13xf32>,
    %c55 = arith.constant 55 : index
    %446 = memref.load %arg2[%c55] : memref<135xf32, #tpu.memory_space<smem>>
    %c0_314 = arith.constant 0 : index
    %c0_315 = arith.constant 0 : index
    %c0_316 = arith.constant 0 : index
    %c0_317 = arith.constant 0 : index
    %447 = vector.load %arg4[%c0_314, %c0_315, %c0_316, %c0_317] : memref<1x3x8x16xf32, #tpu.memory_space<vmem>>, vector<1x1x8x13xf32>
    %448 = vector.shape_cast %447 : vector<1x1x8x13xf32> to vector<8x13xf32>
    %449 = vector.broadcast %446 : f32 to vector<8x13xf32>
    %450 = arith.mulf %448, %449 : vector<8x13xf32>
    %c10_318 = arith.constant 10 : index
    %451 = memref.load %arg3[%c10_318] : memref<18xf32, #tpu.memory_space<smem>>
    %452 = vector.broadcast %451 : f32 to vector<8x13xf32>
    %453 = arith.addf %450, %452 : vector<8x13xf32>
    %c58 = arith.constant 58 : index
    %454 = memref.load %arg2[%c58] : memref<135xf32, #tpu.memory_space<smem>>
    %c0_319 = arith.constant 0 : index
    %c1_320 = arith.constant 1 : index
    %c0_321 = arith.constant 0 : index
    %c0_322 = arith.constant 0 : index
    %455 = vector.load %arg4[%c0_319, %c1_320, %c0_321, %c0_322] : memref<1x3x8x16xf32, #tpu.memory_space<vmem>>, vector<1x1x8x13xf32>
    %456 = vector.shape_cast %455 : vector<1x1x8x13xf32> to vector<8x13xf32>
    %457 = vector.broadcast %454 : f32 to vector<8x13xf32>
    %458 = arith.mulf %456, %457 : vector<8x13xf32>
    %459 = arith.addf %453, %458 : vector<8x13xf32>
    %c61 = arith.constant 61 : index
    %460 = memref.load %arg2[%c61] : memref<135xf32, #tpu.memory_space<smem>>
    %c0_323 = arith.constant 0 : index
    %c2_324 = arith.constant 2 : index
    %c0_325 = arith.constant 0 : index
    %c0_326 = arith.constant 0 : index
    %461 = vector.load %arg4[%c0_323, %c2_324, %c0_325, %c0_326] : memref<1x3x8x16xf32, #tpu.memory_space<vmem>>, vector<1x1x8x13xf32>
    %462 = vector.shape_cast %461 : vector<1x1x8x13xf32> to vector<8x13xf32>
    %463 = vector.broadcast %460 : f32 to vector<8x13xf32>
    %464 = arith.mulf %462, %463 : vector<8x13xf32>
    %465 = arith.addf %459, %464 : vector<8x13xf32>
    %c64 = arith.constant 64 : index
    %466 = memref.load %arg2[%c64] : memref<135xf32, #tpu.memory_space<smem>>
    %c0_327 = arith.constant 0 : index
    %c0_328 = arith.constant 0 : index
    %c0_329 = arith.constant 0 : index
    %c1_330 = arith.constant 1 : index
    %467 = vector.load %arg4[%c0_327, %c0_328, %c0_329, %c1_330] : memref<1x3x8x16xf32, #tpu.memory_space<vmem>>, vector<1x1x8x13xf32>
    %468 = vector.shape_cast %467 : vector<1x1x8x13xf32> to vector<8x13xf32>
    %469 = vector.broadcast %466 : f32 to vector<8x13xf32>
    %470 = arith.mulf %468, %469 : vector<8x13xf32>
    %471 = arith.addf %465, %470 : vector<8x13xf32>
    %c67 = arith.constant 67 : index
    %472 = memref.load %arg2[%c67] : memref<135xf32, #tpu.memory_space<smem>>
    %c0_331 = arith.constant 0 : index
    %c1_332 = arith.constant 1 : index
    %c0_333 = arith.constant 0 : index
    %c1_334 = arith.constant 1 : index
    %473 = vector.load %arg4[%c0_331, %c1_332, %c0_333, %c1_334] : memref<1x3x8x16xf32, #tpu.memory_space<vmem>>, vector<1x1x8x13xf32>
    %474 = vector.shape_cast %473 : vector<1x1x8x13xf32> to vector<8x13xf32>
    %475 = vector.broadcast %472 : f32 to vector<8x13xf32>
    %476 = arith.mulf %474, %475 : vector<8x13xf32>
    %477 = arith.addf %471, %476 : vector<8x13xf32>
    %c70 = arith.constant 70 : index
    %478 = memref.load %arg2[%c70] : memref<135xf32, #tpu.memory_space<smem>>
    %c0_335 = arith.constant 0 : index
    %c2_336 = arith.constant 2 : index
    %c0_337 = arith.constant 0 : index
    %c1_338 = arith.constant 1 : index
    %479 = vector.load %arg4[%c0_335, %c2_336, %c0_337, %c1_338] : memref<1x3x8x16xf32, #tpu.memory_space<vmem>>, vector<1x1x8x13xf32>
    %480 = vector.shape_cast %479 : vector<1x1x8x13xf32> to vector<8x13xf32>
    %481 = vector.broadcast %478 : f32 to vector<8x13xf32>
    %482 = arith.mulf %480, %481 : vector<8x13xf32>
    %483 = arith.addf %477, %482 : vector<8x13xf32>
    %c73 = arith.constant 73 : index
    %484 = memref.load %arg2[%c73] : memref<135xf32, #tpu.memory_space<smem>>
    %c0_339 = arith.constant 0 : index
    %c0_340 = arith.constant 0 : index
    %c0_341 = arith.constant 0 : index
    %c2_342 = arith.constant 2 : index
    %485 = vector.load %arg4[%c0_339, %c0_340, %c0_341, %c2_342] : memref<1x3x8x16xf32, #tpu.memory_space<vmem>>, vector<1x1x8x13xf32>
    %486 = vector.shape_cast %485 : vector<1x1x8x13xf32> to vector<8x13xf32>
    %487 = vector.broadcast %484 : f32 to vector<8x13xf32>
    %488 = arith.mulf %486, %487 : vector<8x13xf32>
    %489 = arith.addf %483, %488 : vector<8x13xf32>
    %c76 = arith.constant 76 : index
    %490 = memref.load %arg2[%c76] : memref<135xf32, #tpu.memory_space<smem>>
    %c0_343 = arith.constant 0 : index
    %c1_344 = arith.constant 1 : index
    %c0_345 = arith.constant 0 : index
    %c2_346 = arith.constant 2 : index
    %491 = vector.load %arg4[%c0_343, %c1_344, %c0_345, %c2_346] : memref<1x3x8x16xf32, #tpu.memory_space<vmem>>, vector<1x1x8x13xf32>
    %492 = vector.shape_cast %491 : vector<1x1x8x13xf32> to vector<8x13xf32>
    %493 = vector.broadcast %490 : f32 to vector<8x13xf32>
    %494 = arith.mulf %492, %493 : vector<8x13xf32>
    %495 = arith.addf %489, %494 : vector<8x13xf32>
    %c79 = arith.constant 79 : index
    %496 = memref.load %arg2[%c79] : memref<135xf32, #tpu.memory_space<smem>>
    %c0_347 = arith.constant 0 : index
    %c2_348 = arith.constant 2 : index
    %c0_349 = arith.constant 0 : index
    %c2_350 = arith.constant 2 : index
    %497 = vector.load %arg4[%c0_347, %c2_348, %c0_349, %c2_350] : memref<1x3x8x16xf32, #tpu.memory_space<vmem>>, vector<1x1x8x13xf32>
    %498 = vector.shape_cast %497 : vector<1x1x8x13xf32> to vector<8x13xf32>
    %499 = vector.broadcast %496 : f32 to vector<8x13xf32>
    %500 = arith.mulf %498, %499 : vector<8x13xf32>
    %501 = arith.addf %495, %500 : vector<8x13xf32>
    %c82 = arith.constant 82 : index
    %502 = memref.load %arg2[%c82] : memref<135xf32, #tpu.memory_space<smem>>
    %c0_351 = arith.constant 0 : index
    %c0_352 = arith.constant 0 : index
    %c0_353 = arith.constant 0 : index
    %c3_354 = arith.constant 3 : index
    %503 = vector.load %arg4[%c0_351, %c0_352, %c0_353, %c3_354] : memref<1x3x8x16xf32, #tpu.memory_space<vmem>>, vector<1x1x8x13xf32>
    %504 = vector.shape_cast %503 : vector<1x1x8x13xf32> to vector<8x13xf32>
    %505 = vector.broadcast %502 : f32 to vector<8x13xf32>
    %506 = arith.mulf %504, %505 : vector<8x13xf32>
    %507 = arith.addf %501, %506 : vector<8x13xf32>
    %c85 = arith.constant 85 : index
    %508 = memref.load %arg2[%c85] : memref<135xf32, #tpu.memory_space<smem>>
    %c0_355 = arith.constant 0 : index
    %c1_356 = arith.constant 1 : index
    %c0_357 = arith.constant 0 : index
    %c3_358 = arith.constant 3 : index
    %509 = vector.load %arg4[%c0_355, %c1_356, %c0_357, %c3_358] : memref<1x3x8x16xf32, #tpu.memory_space<vmem>>, vector<1x1x8x13xf32>
    %510 = vector.shape_cast %509 : vector<1x1x8x13xf32> to vector<8x13xf32>
    %511 = vector.broadcast %508 : f32 to vector<8x13xf32>
    %512 = arith.mulf %510, %511 : vector<8x13xf32>
    %513 = arith.addf %507, %512 : vector<8x13xf32>
    %c88 = arith.constant 88 : index
    %514 = memref.load %arg2[%c88] : memref<135xf32, #tpu.memory_space<smem>>
    %c0_359 = arith.constant 0 : index
    %c2_360 = arith.constant 2 : index
    %c0_361 = arith.constant 0 : index
    %c3_362 = arith.constant 3 : index
    %515 = vector.load %arg4[%c0_359, %c2_360, %c0_361, %c3_362] : memref<1x3x8x16xf32, #tpu.memory_space<vmem>>, vector<1x1x8x13xf32>
    %516 = vector.shape_cast %515 : vector<1x1x8x13xf32> to vector<8x13xf32>
    %517 = vector.broadcast %514 : f32 to vector<8x13xf32>
    %518 = arith.mulf %516, %517 : vector<8x13xf32>
    %519 = arith.addf %513, %518 : vector<8x13xf32>
    %c0_363 = arith.constant 0 : index
    %c1_364 = arith.constant 1 : index
    %c0_365 = arith.constant 0 : index
    %c45_366 = arith.constant 45 : index
    %520 = vector.load %arg5[%c0_363, %c1_364, %c0_365, %c45_366] : memref<1x3x8x84xf32, #tpu.memory_space<vmem>>, vector<1x1x8x13xf32>
    %521 = vector.shape_cast %520 : vector<1x1x8x13xf32> to vector<8x13xf32>
    %522 = vector.shape_cast %519 : vector<8x13xf32> to vector<1x1x8x13xf32>
    tpu.vector_store %arg5[%c0_363, %c1_364, %c0_365, %c45_366], %522 {strides = array<i32>} : memref<1x3x8x84xf32, #tpu.memory_space<vmem>>, vector<1x1x8x13xf32>,
    %c56 = arith.constant 56 : index
    %523 = memref.load %arg2[%c56] : memref<135xf32, #tpu.memory_space<smem>>
    %c0_367 = arith.constant 0 : index
    %c0_368 = arith.constant 0 : index
    %c0_369 = arith.constant 0 : index
    %c0_370 = arith.constant 0 : index
    %524 = vector.load %arg4[%c0_367, %c0_368, %c0_369, %c0_370] : memref<1x3x8x16xf32, #tpu.memory_space<vmem>>, vector<1x1x8x13xf32>
    %525 = vector.shape_cast %524 : vector<1x1x8x13xf32> to vector<8x13xf32>
    %526 = vector.broadcast %523 : f32 to vector<8x13xf32>
    %527 = arith.mulf %525, %526 : vector<8x13xf32>
    %c11_371 = arith.constant 11 : index
    %528 = memref.load %arg3[%c11_371] : memref<18xf32, #tpu.memory_space<smem>>
    %529 = vector.broadcast %528 : f32 to vector<8x13xf32>
    %530 = arith.addf %527, %529 : vector<8x13xf32>
    %c59 = arith.constant 59 : index
    %531 = memref.load %arg2[%c59] : memref<135xf32, #tpu.memory_space<smem>>
    %c0_372 = arith.constant 0 : index
    %c1_373 = arith.constant 1 : index
    %c0_374 = arith.constant 0 : index
    %c0_375 = arith.constant 0 : index
    %532 = vector.load %arg4[%c0_372, %c1_373, %c0_374, %c0_375] : memref<1x3x8x16xf32, #tpu.memory_space<vmem>>, vector<1x1x8x13xf32>
    %533 = vector.shape_cast %532 : vector<1x1x8x13xf32> to vector<8x13xf32>
    %534 = vector.broadcast %531 : f32 to vector<8x13xf32>
    %535 = arith.mulf %533, %534 : vector<8x13xf32>
    %536 = arith.addf %530, %535 : vector<8x13xf32>
    %c62 = arith.constant 62 : index
    %537 = memref.load %arg2[%c62] : memref<135xf32, #tpu.memory_space<smem>>
    %c0_376 = arith.constant 0 : index
    %c2_377 = arith.constant 2 : index
    %c0_378 = arith.constant 0 : index
    %c0_379 = arith.constant 0 : index
    %538 = vector.load %arg4[%c0_376, %c2_377, %c0_378, %c0_379] : memref<1x3x8x16xf32, #tpu.memory_space<vmem>>, vector<1x1x8x13xf32>
    %539 = vector.shape_cast %538 : vector<1x1x8x13xf32> to vector<8x13xf32>
    %540 = vector.broadcast %537 : f32 to vector<8x13xf32>
    %541 = arith.mulf %539, %540 : vector<8x13xf32>
    %542 = arith.addf %536, %541 : vector<8x13xf32>
    %c65 = arith.constant 65 : index
    %543 = memref.load %arg2[%c65] : memref<135xf32, #tpu.memory_space<smem>>
    %c0_380 = arith.constant 0 : index
    %c0_381 = arith.constant 0 : index
    %c0_382 = arith.constant 0 : index
    %c1_383 = arith.constant 1 : index
    %544 = vector.load %arg4[%c0_380, %c0_381, %c0_382, %c1_383] : memref<1x3x8x16xf32, #tpu.memory_space<vmem>>, vector<1x1x8x13xf32>
    %545 = vector.shape_cast %544 : vector<1x1x8x13xf32> to vector<8x13xf32>
    %546 = vector.broadcast %543 : f32 to vector<8x13xf32>
    %547 = arith.mulf %545, %546 : vector<8x13xf32>
    %548 = arith.addf %542, %547 : vector<8x13xf32>
    %c68 = arith.constant 68 : index
    %549 = memref.load %arg2[%c68] : memref<135xf32, #tpu.memory_space<smem>>
    %c0_384 = arith.constant 0 : index
    %c1_385 = arith.constant 1 : index
    %c0_386 = arith.constant 0 : index
    %c1_387 = arith.constant 1 : index
    %550 = vector.load %arg4[%c0_384, %c1_385, %c0_386, %c1_387] : memref<1x3x8x16xf32, #tpu.memory_space<vmem>>, vector<1x1x8x13xf32>
    %551 = vector.shape_cast %550 : vector<1x1x8x13xf32> to vector<8x13xf32>
    %552 = vector.broadcast %549 : f32 to vector<8x13xf32>
    %553 = arith.mulf %551, %552 : vector<8x13xf32>
    %554 = arith.addf %548, %553 : vector<8x13xf32>
    %c71 = arith.constant 71 : index
    %555 = memref.load %arg2[%c71] : memref<135xf32, #tpu.memory_space<smem>>
    %c0_388 = arith.constant 0 : index
    %c2_389 = arith.constant 2 : index
    %c0_390 = arith.constant 0 : index
    %c1_391 = arith.constant 1 : index
    %556 = vector.load %arg4[%c0_388, %c2_389, %c0_390, %c1_391] : memref<1x3x8x16xf32, #tpu.memory_space<vmem>>, vector<1x1x8x13xf32>
    %557 = vector.shape_cast %556 : vector<1x1x8x13xf32> to vector<8x13xf32>
    %558 = vector.broadcast %555 : f32 to vector<8x13xf32>
    %559 = arith.mulf %557, %558 : vector<8x13xf32>
    %560 = arith.addf %554, %559 : vector<8x13xf32>
    %c74 = arith.constant 74 : index
    %561 = memref.load %arg2[%c74] : memref<135xf32, #tpu.memory_space<smem>>
    %c0_392 = arith.constant 0 : index
    %c0_393 = arith.constant 0 : index
    %c0_394 = arith.constant 0 : index
    %c2_395 = arith.constant 2 : index
    %562 = vector.load %arg4[%c0_392, %c0_393, %c0_394, %c2_395] : memref<1x3x8x16xf32, #tpu.memory_space<vmem>>, vector<1x1x8x13xf32>
    %563 = vector.shape_cast %562 : vector<1x1x8x13xf32> to vector<8x13xf32>
    %564 = vector.broadcast %561 : f32 to vector<8x13xf32>
    %565 = arith.mulf %563, %564 : vector<8x13xf32>
    %566 = arith.addf %560, %565 : vector<8x13xf32>
    %c77 = arith.constant 77 : index
    %567 = memref.load %arg2[%c77] : memref<135xf32, #tpu.memory_space<smem>>
    %c0_396 = arith.constant 0 : index
    %c1_397 = arith.constant 1 : index
    %c0_398 = arith.constant 0 : index
    %c2_399 = arith.constant 2 : index
    %568 = vector.load %arg4[%c0_396, %c1_397, %c0_398, %c2_399] : memref<1x3x8x16xf32, #tpu.memory_space<vmem>>, vector<1x1x8x13xf32>
    %569 = vector.shape_cast %568 : vector<1x1x8x13xf32> to vector<8x13xf32>
    %570 = vector.broadcast %567 : f32 to vector<8x13xf32>
    %571 = arith.mulf %569, %570 : vector<8x13xf32>
    %572 = arith.addf %566, %571 : vector<8x13xf32>
    %c80 = arith.constant 80 : index
    %573 = memref.load %arg2[%c80] : memref<135xf32, #tpu.memory_space<smem>>
    %c0_400 = arith.constant 0 : index
    %c2_401 = arith.constant 2 : index
    %c0_402 = arith.constant 0 : index
    %c2_403 = arith.constant 2 : index
    %574 = vector.load %arg4[%c0_400, %c2_401, %c0_402, %c2_403] : memref<1x3x8x16xf32, #tpu.memory_space<vmem>>, vector<1x1x8x13xf32>
    %575 = vector.shape_cast %574 : vector<1x1x8x13xf32> to vector<8x13xf32>
    %576 = vector.broadcast %573 : f32 to vector<8x13xf32>
    %577 = arith.mulf %575, %576 : vector<8x13xf32>
    %578 = arith.addf %572, %577 : vector<8x13xf32>
    %c83 = arith.constant 83 : index
    %579 = memref.load %arg2[%c83] : memref<135xf32, #tpu.memory_space<smem>>
    %c0_404 = arith.constant 0 : index
    %c0_405 = arith.constant 0 : index
    %c0_406 = arith.constant 0 : index
    %c3_407 = arith.constant 3 : index
    %580 = vector.load %arg4[%c0_404, %c0_405, %c0_406, %c3_407] : memref<1x3x8x16xf32, #tpu.memory_space<vmem>>, vector<1x1x8x13xf32>
    %581 = vector.shape_cast %580 : vector<1x1x8x13xf32> to vector<8x13xf32>
    %582 = vector.broadcast %579 : f32 to vector<8x13xf32>
    %583 = arith.mulf %581, %582 : vector<8x13xf32>
    %584 = arith.addf %578, %583 : vector<8x13xf32>
    %c86 = arith.constant 86 : index
    %585 = memref.load %arg2[%c86] : memref<135xf32, #tpu.memory_space<smem>>
    %c0_408 = arith.constant 0 : index
    %c1_409 = arith.constant 1 : index
    %c0_410 = arith.constant 0 : index
    %c3_411 = arith.constant 3 : index
    %586 = vector.load %arg4[%c0_408, %c1_409, %c0_410, %c3_411] : memref<1x3x8x16xf32, #tpu.memory_space<vmem>>, vector<1x1x8x13xf32>
    %587 = vector.shape_cast %586 : vector<1x1x8x13xf32> to vector<8x13xf32>
    %588 = vector.broadcast %585 : f32 to vector<8x13xf32>
    %589 = arith.mulf %587, %588 : vector<8x13xf32>
    %590 = arith.addf %584, %589 : vector<8x13xf32>
    %c89 = arith.constant 89 : index
    %591 = memref.load %arg2[%c89] : memref<135xf32, #tpu.memory_space<smem>>
    %c0_412 = arith.constant 0 : index
    %c2_413 = arith.constant 2 : index
    %c0_414 = arith.constant 0 : index
    %c3_415 = arith.constant 3 : index
    %592 = vector.load %arg4[%c0_412, %c2_413, %c0_414, %c3_415] : memref<1x3x8x16xf32, #tpu.memory_space<vmem>>, vector<1x1x8x13xf32>
    %593 = vector.shape_cast %592 : vector<1x1x8x13xf32> to vector<8x13xf32>
    %594 = vector.broadcast %591 : f32 to vector<8x13xf32>
    %595 = arith.mulf %593, %594 : vector<8x13xf32>
    %596 = arith.addf %590, %595 : vector<8x13xf32>
    %c0_416 = arith.constant 0 : index
    %c2_417 = arith.constant 2 : index
    %c0_418 = arith.constant 0 : index
    %c45_419 = arith.constant 45 : index
    %597 = vector.load %arg5[%c0_416, %c2_417, %c0_418, %c45_419] : memref<1x3x8x84xf32, #tpu.memory_space<vmem>>, vector<1x1x8x13xf32>
    %598 = vector.shape_cast %597 : vector<1x1x8x13xf32> to vector<8x13xf32>
    %599 = vector.shape_cast %596 : vector<8x13xf32> to vector<1x1x8x13xf32>
    tpu.vector_store %arg5[%c0_416, %c2_417, %c0_418, %c45_419], %599 {strides = array<i32>} : memref<1x3x8x84xf32, #tpu.memory_space<vmem>>, vector<1x1x8x13xf32>,
    %c90 = arith.constant 90 : index
    %600 = memref.load %arg2[%c90] : memref<135xf32, #tpu.memory_space<smem>>
    %c0_420 = arith.constant 0 : index
    %c0_421 = arith.constant 0 : index
    %c0_422 = arith.constant 0 : index
    %c0_423 = arith.constant 0 : index
    %601 = vector.load %arg4[%c0_420, %c0_421, %c0_422, %c0_423] : memref<1x3x8x16xf32, #tpu.memory_space<vmem>>, vector<1x1x8x14xf32>
    %602 = vector.shape_cast %601 : vector<1x1x8x14xf32> to vector<8x14xf32>
    %603 = vector.broadcast %600 : f32 to vector<8x14xf32>
    %604 = arith.mulf %602, %603 : vector<8x14xf32>
    %c12_424 = arith.constant 12 : index
    %605 = memref.load %arg3[%c12_424] : memref<18xf32, #tpu.memory_space<smem>>
    %606 = vector.broadcast %605 : f32 to vector<8x14xf32>
    %607 = arith.addf %604, %606 : vector<8x14xf32>
    %c93 = arith.constant 93 : index
    %608 = memref.load %arg2[%c93] : memref<135xf32, #tpu.memory_space<smem>>
    %c0_425 = arith.constant 0 : index
    %c1_426 = arith.constant 1 : index
    %c0_427 = arith.constant 0 : index
    %c0_428 = arith.constant 0 : index
    %609 = vector.load %arg4[%c0_425, %c1_426, %c0_427, %c0_428] : memref<1x3x8x16xf32, #tpu.memory_space<vmem>>, vector<1x1x8x14xf32>
    %610 = vector.shape_cast %609 : vector<1x1x8x14xf32> to vector<8x14xf32>
    %611 = vector.broadcast %608 : f32 to vector<8x14xf32>
    %612 = arith.mulf %610, %611 : vector<8x14xf32>
    %613 = arith.addf %607, %612 : vector<8x14xf32>
    %c96 = arith.constant 96 : index
    %614 = memref.load %arg2[%c96] : memref<135xf32, #tpu.memory_space<smem>>
    %c0_429 = arith.constant 0 : index
    %c2_430 = arith.constant 2 : index
    %c0_431 = arith.constant 0 : index
    %c0_432 = arith.constant 0 : index
    %615 = vector.load %arg4[%c0_429, %c2_430, %c0_431, %c0_432] : memref<1x3x8x16xf32, #tpu.memory_space<vmem>>, vector<1x1x8x14xf32>
    %616 = vector.shape_cast %615 : vector<1x1x8x14xf32> to vector<8x14xf32>
    %617 = vector.broadcast %614 : f32 to vector<8x14xf32>
    %618 = arith.mulf %616, %617 : vector<8x14xf32>
    %619 = arith.addf %613, %618 : vector<8x14xf32>
    %c99 = arith.constant 99 : index
    %620 = memref.load %arg2[%c99] : memref<135xf32, #tpu.memory_space<smem>>
    %c0_433 = arith.constant 0 : index
    %c0_434 = arith.constant 0 : index
    %c0_435 = arith.constant 0 : index
    %c2_436 = arith.constant 2 : index
    %621 = vector.load %arg4[%c0_433, %c0_434, %c0_435, %c2_436] : memref<1x3x8x16xf32, #tpu.memory_space<vmem>>, vector<1x1x8x14xf32>
    %622 = vector.shape_cast %621 : vector<1x1x8x14xf32> to vector<8x14xf32>
    %623 = vector.broadcast %620 : f32 to vector<8x14xf32>
    %624 = arith.mulf %622, %623 : vector<8x14xf32>
    %625 = arith.addf %619, %624 : vector<8x14xf32>
    %c102 = arith.constant 102 : index
    %626 = memref.load %arg2[%c102] : memref<135xf32, #tpu.memory_space<smem>>
    %c0_437 = arith.constant 0 : index
    %c1_438 = arith.constant 1 : index
    %c0_439 = arith.constant 0 : index
    %c2_440 = arith.constant 2 : index
    %627 = vector.load %arg4[%c0_437, %c1_438, %c0_439, %c2_440] : memref<1x3x8x16xf32, #tpu.memory_space<vmem>>, vector<1x1x8x14xf32>
    %628 = vector.shape_cast %627 : vector<1x1x8x14xf32> to vector<8x14xf32>
    %629 = vector.broadcast %626 : f32 to vector<8x14xf32>
    %630 = arith.mulf %628, %629 : vector<8x14xf32>
    %631 = arith.addf %625, %630 : vector<8x14xf32>
    %c105 = arith.constant 105 : index
    %632 = memref.load %arg2[%c105] : memref<135xf32, #tpu.memory_space<smem>>
    %c0_441 = arith.constant 0 : index
    %c2_442 = arith.constant 2 : index
    %c0_443 = arith.constant 0 : index
    %c2_444 = arith.constant 2 : index
    %633 = vector.load %arg4[%c0_441, %c2_442, %c0_443, %c2_444] : memref<1x3x8x16xf32, #tpu.memory_space<vmem>>, vector<1x1x8x14xf32>
    %634 = vector.shape_cast %633 : vector<1x1x8x14xf32> to vector<8x14xf32>
    %635 = vector.broadcast %632 : f32 to vector<8x14xf32>
    %636 = arith.mulf %634, %635 : vector<8x14xf32>
    %637 = arith.addf %631, %636 : vector<8x14xf32>
    %c0_445 = arith.constant 0 : index
    %c0_446 = arith.constant 0 : index
    %c0_447 = arith.constant 0 : index
    %c58_448 = arith.constant 58 : index
    %638 = vector.load %arg5[%c0_445, %c0_446, %c0_447, %c58_448] : memref<1x3x8x84xf32, #tpu.memory_space<vmem>>, vector<1x1x8x14xf32>
    %639 = vector.shape_cast %638 : vector<1x1x8x14xf32> to vector<8x14xf32>
    %640 = vector.shape_cast %637 : vector<8x14xf32> to vector<1x1x8x14xf32>
    tpu.vector_store %arg5[%c0_445, %c0_446, %c0_447, %c58_448], %640 {strides = array<i32>} : memref<1x3x8x84xf32, #tpu.memory_space<vmem>>, vector<1x1x8x14xf32>,
    %c91 = arith.constant 91 : index
    %641 = memref.load %arg2[%c91] : memref<135xf32, #tpu.memory_space<smem>>
    %c0_449 = arith.constant 0 : index
    %c0_450 = arith.constant 0 : index
    %c0_451 = arith.constant 0 : index
    %c0_452 = arith.constant 0 : index
    %642 = vector.load %arg4[%c0_449, %c0_450, %c0_451, %c0_452] : memref<1x3x8x16xf32, #tpu.memory_space<vmem>>, vector<1x1x8x14xf32>
    %643 = vector.shape_cast %642 : vector<1x1x8x14xf32> to vector<8x14xf32>
    %644 = vector.broadcast %641 : f32 to vector<8x14xf32>
    %645 = arith.mulf %643, %644 : vector<8x14xf32>
    %c13_453 = arith.constant 13 : index
    %646 = memref.load %arg3[%c13_453] : memref<18xf32, #tpu.memory_space<smem>>
    %647 = vector.broadcast %646 : f32 to vector<8x14xf32>
    %648 = arith.addf %645, %647 : vector<8x14xf32>
    %c94 = arith.constant 94 : index
    %649 = memref.load %arg2[%c94] : memref<135xf32, #tpu.memory_space<smem>>
    %c0_454 = arith.constant 0 : index
    %c1_455 = arith.constant 1 : index
    %c0_456 = arith.constant 0 : index
    %c0_457 = arith.constant 0 : index
    %650 = vector.load %arg4[%c0_454, %c1_455, %c0_456, %c0_457] : memref<1x3x8x16xf32, #tpu.memory_space<vmem>>, vector<1x1x8x14xf32>
    %651 = vector.shape_cast %650 : vector<1x1x8x14xf32> to vector<8x14xf32>
    %652 = vector.broadcast %649 : f32 to vector<8x14xf32>
    %653 = arith.mulf %651, %652 : vector<8x14xf32>
    %654 = arith.addf %648, %653 : vector<8x14xf32>
    %c97 = arith.constant 97 : index
    %655 = memref.load %arg2[%c97] : memref<135xf32, #tpu.memory_space<smem>>
    %c0_458 = arith.constant 0 : index
    %c2_459 = arith.constant 2 : index
    %c0_460 = arith.constant 0 : index
    %c0_461 = arith.constant 0 : index
    %656 = vector.load %arg4[%c0_458, %c2_459, %c0_460, %c0_461] : memref<1x3x8x16xf32, #tpu.memory_space<vmem>>, vector<1x1x8x14xf32>
    %657 = vector.shape_cast %656 : vector<1x1x8x14xf32> to vector<8x14xf32>
    %658 = vector.broadcast %655 : f32 to vector<8x14xf32>
    %659 = arith.mulf %657, %658 : vector<8x14xf32>
    %660 = arith.addf %654, %659 : vector<8x14xf32>
    %c100 = arith.constant 100 : index
    %661 = memref.load %arg2[%c100] : memref<135xf32, #tpu.memory_space<smem>>
    %c0_462 = arith.constant 0 : index
    %c0_463 = arith.constant 0 : index
    %c0_464 = arith.constant 0 : index
    %c2_465 = arith.constant 2 : index
    %662 = vector.load %arg4[%c0_462, %c0_463, %c0_464, %c2_465] : memref<1x3x8x16xf32, #tpu.memory_space<vmem>>, vector<1x1x8x14xf32>
    %663 = vector.shape_cast %662 : vector<1x1x8x14xf32> to vector<8x14xf32>
    %664 = vector.broadcast %661 : f32 to vector<8x14xf32>
    %665 = arith.mulf %663, %664 : vector<8x14xf32>
    %666 = arith.addf %660, %665 : vector<8x14xf32>
    %c103 = arith.constant 103 : index
    %667 = memref.load %arg2[%c103] : memref<135xf32, #tpu.memory_space<smem>>
    %c0_466 = arith.constant 0 : index
    %c1_467 = arith.constant 1 : index
    %c0_468 = arith.constant 0 : index
    %c2_469 = arith.constant 2 : index
    %668 = vector.load %arg4[%c0_466, %c1_467, %c0_468, %c2_469] : memref<1x3x8x16xf32, #tpu.memory_space<vmem>>, vector<1x1x8x14xf32>
    %669 = vector.shape_cast %668 : vector<1x1x8x14xf32> to vector<8x14xf32>
    %670 = vector.broadcast %667 : f32 to vector<8x14xf32>
    %671 = arith.mulf %669, %670 : vector<8x14xf32>
    %672 = arith.addf %666, %671 : vector<8x14xf32>
    %c106 = arith.constant 106 : index
    %673 = memref.load %arg2[%c106] : memref<135xf32, #tpu.memory_space<smem>>
    %c0_470 = arith.constant 0 : index
    %c2_471 = arith.constant 2 : index
    %c0_472 = arith.constant 0 : index
    %c2_473 = arith.constant 2 : index
    %674 = vector.load %arg4[%c0_470, %c2_471, %c0_472, %c2_473] : memref<1x3x8x16xf32, #tpu.memory_space<vmem>>, vector<1x1x8x14xf32>
    %675 = vector.shape_cast %674 : vector<1x1x8x14xf32> to vector<8x14xf32>
    %676 = vector.broadcast %673 : f32 to vector<8x14xf32>
    %677 = arith.mulf %675, %676 : vector<8x14xf32>
    %678 = arith.addf %672, %677 : vector<8x14xf32>
    %c0_474 = arith.constant 0 : index
    %c1_475 = arith.constant 1 : index
    %c0_476 = arith.constant 0 : index
    %c58_477 = arith.constant 58 : index
    %679 = vector.load %arg5[%c0_474, %c1_475, %c0_476, %c58_477] : memref<1x3x8x84xf32, #tpu.memory_space<vmem>>, vector<1x1x8x14xf32>
    %680 = vector.shape_cast %679 : vector<1x1x8x14xf32> to vector<8x14xf32>
    %681 = vector.shape_cast %678 : vector<8x14xf32> to vector<1x1x8x14xf32>
    tpu.vector_store %arg5[%c0_474, %c1_475, %c0_476, %c58_477], %681 {strides = array<i32>} : memref<1x3x8x84xf32, #tpu.memory_space<vmem>>, vector<1x1x8x14xf32>,
    %c92 = arith.constant 92 : index
    %682 = memref.load %arg2[%c92] : memref<135xf32, #tpu.memory_space<smem>>
    %c0_478 = arith.constant 0 : index
    %c0_479 = arith.constant 0 : index
    %c0_480 = arith.constant 0 : index
    %c0_481 = arith.constant 0 : index
    %683 = vector.load %arg4[%c0_478, %c0_479, %c0_480, %c0_481] : memref<1x3x8x16xf32, #tpu.memory_space<vmem>>, vector<1x1x8x14xf32>
    %684 = vector.shape_cast %683 : vector<1x1x8x14xf32> to vector<8x14xf32>
    %685 = vector.broadcast %682 : f32 to vector<8x14xf32>
    %686 = arith.mulf %684, %685 : vector<8x14xf32>
    %c14_482 = arith.constant 14 : index
    %687 = memref.load %arg3[%c14_482] : memref<18xf32, #tpu.memory_space<smem>>
    %688 = vector.broadcast %687 : f32 to vector<8x14xf32>
    %689 = arith.addf %686, %688 : vector<8x14xf32>
    %c95 = arith.constant 95 : index
    %690 = memref.load %arg2[%c95] : memref<135xf32, #tpu.memory_space<smem>>
    %c0_483 = arith.constant 0 : index
    %c1_484 = arith.constant 1 : index
    %c0_485 = arith.constant 0 : index
    %c0_486 = arith.constant 0 : index
    %691 = vector.load %arg4[%c0_483, %c1_484, %c0_485, %c0_486] : memref<1x3x8x16xf32, #tpu.memory_space<vmem>>, vector<1x1x8x14xf32>
    %692 = vector.shape_cast %691 : vector<1x1x8x14xf32> to vector<8x14xf32>
    %693 = vector.broadcast %690 : f32 to vector<8x14xf32>
    %694 = arith.mulf %692, %693 : vector<8x14xf32>
    %695 = arith.addf %689, %694 : vector<8x14xf32>
    %c98 = arith.constant 98 : index
    %696 = memref.load %arg2[%c98] : memref<135xf32, #tpu.memory_space<smem>>
    %c0_487 = arith.constant 0 : index
    %c2_488 = arith.constant 2 : index
    %c0_489 = arith.constant 0 : index
    %c0_490 = arith.constant 0 : index
    %697 = vector.load %arg4[%c0_487, %c2_488, %c0_489, %c0_490] : memref<1x3x8x16xf32, #tpu.memory_space<vmem>>, vector<1x1x8x14xf32>
    %698 = vector.shape_cast %697 : vector<1x1x8x14xf32> to vector<8x14xf32>
    %699 = vector.broadcast %696 : f32 to vector<8x14xf32>
    %700 = arith.mulf %698, %699 : vector<8x14xf32>
    %701 = arith.addf %695, %700 : vector<8x14xf32>
    %c101 = arith.constant 101 : index
    %702 = memref.load %arg2[%c101] : memref<135xf32, #tpu.memory_space<smem>>
    %c0_491 = arith.constant 0 : index
    %c0_492 = arith.constant 0 : index
    %c0_493 = arith.constant 0 : index
    %c2_494 = arith.constant 2 : index
    %703 = vector.load %arg4[%c0_491, %c0_492, %c0_493, %c2_494] : memref<1x3x8x16xf32, #tpu.memory_space<vmem>>, vector<1x1x8x14xf32>
    %704 = vector.shape_cast %703 : vector<1x1x8x14xf32> to vector<8x14xf32>
    %705 = vector.broadcast %702 : f32 to vector<8x14xf32>
    %706 = arith.mulf %704, %705 : vector<8x14xf32>
    %707 = arith.addf %701, %706 : vector<8x14xf32>
    %c104 = arith.constant 104 : index
    %708 = memref.load %arg2[%c104] : memref<135xf32, #tpu.memory_space<smem>>
    %c0_495 = arith.constant 0 : index
    %c1_496 = arith.constant 1 : index
    %c0_497 = arith.constant 0 : index
    %c2_498 = arith.constant 2 : index
    %709 = vector.load %arg4[%c0_495, %c1_496, %c0_497, %c2_498] : memref<1x3x8x16xf32, #tpu.memory_space<vmem>>, vector<1x1x8x14xf32>
    %710 = vector.shape_cast %709 : vector<1x1x8x14xf32> to vector<8x14xf32>
    %711 = vector.broadcast %708 : f32 to vector<8x14xf32>
    %712 = arith.mulf %710, %711 : vector<8x14xf32>
    %713 = arith.addf %707, %712 : vector<8x14xf32>
    %c107 = arith.constant 107 : index
    %714 = memref.load %arg2[%c107] : memref<135xf32, #tpu.memory_space<smem>>
    %c0_499 = arith.constant 0 : index
    %c2_500 = arith.constant 2 : index
    %c0_501 = arith.constant 0 : index
    %c2_502 = arith.constant 2 : index
    %715 = vector.load %arg4[%c0_499, %c2_500, %c0_501, %c2_502] : memref<1x3x8x16xf32, #tpu.memory_space<vmem>>, vector<1x1x8x14xf32>
    %716 = vector.shape_cast %715 : vector<1x1x8x14xf32> to vector<8x14xf32>
    %717 = vector.broadcast %714 : f32 to vector<8x14xf32>
    %718 = arith.mulf %716, %717 : vector<8x14xf32>
    %719 = arith.addf %713, %718 : vector<8x14xf32>
    %c0_503 = arith.constant 0 : index
    %c2_504 = arith.constant 2 : index
    %c0_505 = arith.constant 0 : index
    %c58_506 = arith.constant 58 : index
    %720 = vector.load %arg5[%c0_503, %c2_504, %c0_505, %c58_506] : memref<1x3x8x84xf32, #tpu.memory_space<vmem>>, vector<1x1x8x14xf32>
    %721 = vector.shape_cast %720 : vector<1x1x8x14xf32> to vector<8x14xf32>
    %722 = vector.shape_cast %719 : vector<8x14xf32> to vector<1x1x8x14xf32>
    tpu.vector_store %arg5[%c0_503, %c2_504, %c0_505, %c58_506], %722 {strides = array<i32>} : memref<1x3x8x84xf32, #tpu.memory_space<vmem>>, vector<1x1x8x14xf32>,
    %c108 = arith.constant 108 : index
    %723 = memref.load %arg2[%c108] : memref<135xf32, #tpu.memory_space<smem>>
    %c0_507 = arith.constant 0 : index
    %c0_508 = arith.constant 0 : index
    %c0_509 = arith.constant 0 : index
    %c0_510 = arith.constant 0 : index
    %724 = vector.load %arg4[%c0_507, %c0_508, %c0_509, %c0_510] : memref<1x3x8x16xf32, #tpu.memory_space<vmem>>, vector<1x1x8x12xf32>
    %725 = vector.shape_cast %724 : vector<1x1x8x12xf32> to vector<8x12xf32>
    %726 = vector.broadcast %723 : f32 to vector<8x12xf32>
    %727 = arith.mulf %725, %726 : vector<8x12xf32>
    %c15_511 = arith.constant 15 : index
    %728 = memref.load %arg3[%c15_511] : memref<18xf32, #tpu.memory_space<smem>>
    %729 = vector.broadcast %728 : f32 to vector<8x12xf32>
    %730 = arith.addf %727, %729 : vector<8x12xf32>
    %c111 = arith.constant 111 : index
    %731 = memref.load %arg2[%c111] : memref<135xf32, #tpu.memory_space<smem>>
    %c0_512 = arith.constant 0 : index
    %c1_513 = arith.constant 1 : index
    %c0_514 = arith.constant 0 : index
    %c0_515 = arith.constant 0 : index
    %732 = vector.load %arg4[%c0_512, %c1_513, %c0_514, %c0_515] : memref<1x3x8x16xf32, #tpu.memory_space<vmem>>, vector<1x1x8x12xf32>
    %733 = vector.shape_cast %732 : vector<1x1x8x12xf32> to vector<8x12xf32>
    %734 = vector.broadcast %731 : f32 to vector<8x12xf32>
    %735 = arith.mulf %733, %734 : vector<8x12xf32>
    %736 = arith.addf %730, %735 : vector<8x12xf32>
    %c114 = arith.constant 114 : index
    %737 = memref.load %arg2[%c114] : memref<135xf32, #tpu.memory_space<smem>>
    %c0_516 = arith.constant 0 : index
    %c2_517 = arith.constant 2 : index
    %c0_518 = arith.constant 0 : index
    %c0_519 = arith.constant 0 : index
    %738 = vector.load %arg4[%c0_516, %c2_517, %c0_518, %c0_519] : memref<1x3x8x16xf32, #tpu.memory_space<vmem>>, vector<1x1x8x12xf32>
    %739 = vector.shape_cast %738 : vector<1x1x8x12xf32> to vector<8x12xf32>
    %740 = vector.broadcast %737 : f32 to vector<8x12xf32>
    %741 = arith.mulf %739, %740 : vector<8x12xf32>
    %742 = arith.addf %736, %741 : vector<8x12xf32>
    %c117 = arith.constant 117 : index
    %743 = memref.load %arg2[%c117] : memref<135xf32, #tpu.memory_space<smem>>
    %c0_520 = arith.constant 0 : index
    %c0_521 = arith.constant 0 : index
    %c0_522 = arith.constant 0 : index
    %c2_523 = arith.constant 2 : index
    %744 = vector.load %arg4[%c0_520, %c0_521, %c0_522, %c2_523] : memref<1x3x8x16xf32, #tpu.memory_space<vmem>>, vector<1x1x8x12xf32>
    %745 = vector.shape_cast %744 : vector<1x1x8x12xf32> to vector<8x12xf32>
    %746 = vector.broadcast %743 : f32 to vector<8x12xf32>
    %747 = arith.mulf %745, %746 : vector<8x12xf32>
    %748 = arith.addf %742, %747 : vector<8x12xf32>
    %c120 = arith.constant 120 : index
    %749 = memref.load %arg2[%c120] : memref<135xf32, #tpu.memory_space<smem>>
    %c0_524 = arith.constant 0 : index
    %c1_525 = arith.constant 1 : index
    %c0_526 = arith.constant 0 : index
    %c2_527 = arith.constant 2 : index
    %750 = vector.load %arg4[%c0_524, %c1_525, %c0_526, %c2_527] : memref<1x3x8x16xf32, #tpu.memory_space<vmem>>, vector<1x1x8x12xf32>
    %751 = vector.shape_cast %750 : vector<1x1x8x12xf32> to vector<8x12xf32>
    %752 = vector.broadcast %749 : f32 to vector<8x12xf32>
    %753 = arith.mulf %751, %752 : vector<8x12xf32>
    %754 = arith.addf %748, %753 : vector<8x12xf32>
    %c123 = arith.constant 123 : index
    %755 = memref.load %arg2[%c123] : memref<135xf32, #tpu.memory_space<smem>>
    %c0_528 = arith.constant 0 : index
    %c2_529 = arith.constant 2 : index
    %c0_530 = arith.constant 0 : index
    %c2_531 = arith.constant 2 : index
    %756 = vector.load %arg4[%c0_528, %c2_529, %c0_530, %c2_531] : memref<1x3x8x16xf32, #tpu.memory_space<vmem>>, vector<1x1x8x12xf32>
    %757 = vector.shape_cast %756 : vector<1x1x8x12xf32> to vector<8x12xf32>
    %758 = vector.broadcast %755 : f32 to vector<8x12xf32>
    %759 = arith.mulf %757, %758 : vector<8x12xf32>
    %760 = arith.addf %754, %759 : vector<8x12xf32>
    %c126 = arith.constant 126 : index
    %761 = memref.load %arg2[%c126] : memref<135xf32, #tpu.memory_space<smem>>
    %c0_532 = arith.constant 0 : index
    %c0_533 = arith.constant 0 : index
    %c0_534 = arith.constant 0 : index
    %c4_535 = arith.constant 4 : index
    %762 = vector.load %arg4[%c0_532, %c0_533, %c0_534, %c4_535] : memref<1x3x8x16xf32, #tpu.memory_space<vmem>>, vector<1x1x8x12xf32>
    %763 = vector.shape_cast %762 : vector<1x1x8x12xf32> to vector<8x12xf32>
    %764 = vector.broadcast %761 : f32 to vector<8x12xf32>
    %765 = arith.mulf %763, %764 : vector<8x12xf32>
    %766 = arith.addf %760, %765 : vector<8x12xf32>
    %c129 = arith.constant 129 : index
    %767 = memref.load %arg2[%c129] : memref<135xf32, #tpu.memory_space<smem>>
    %c0_536 = arith.constant 0 : index
    %c1_537 = arith.constant 1 : index
    %c0_538 = arith.constant 0 : index
    %c4_539 = arith.constant 4 : index
    %768 = vector.load %arg4[%c0_536, %c1_537, %c0_538, %c4_539] : memref<1x3x8x16xf32, #tpu.memory_space<vmem>>, vector<1x1x8x12xf32>
    %769 = vector.shape_cast %768 : vector<1x1x8x12xf32> to vector<8x12xf32>
    %770 = vector.broadcast %767 : f32 to vector<8x12xf32>
    %771 = arith.mulf %769, %770 : vector<8x12xf32>
    %772 = arith.addf %766, %771 : vector<8x12xf32>
    %c132 = arith.constant 132 : index
    %773 = memref.load %arg2[%c132] : memref<135xf32, #tpu.memory_space<smem>>
    %c0_540 = arith.constant 0 : index
    %c2_541 = arith.constant 2 : index
    %c0_542 = arith.constant 0 : index
    %c4_543 = arith.constant 4 : index
    %774 = vector.load %arg4[%c0_540, %c2_541, %c0_542, %c4_543] : memref<1x3x8x16xf32, #tpu.memory_space<vmem>>, vector<1x1x8x12xf32>
    %775 = vector.shape_cast %774 : vector<1x1x8x12xf32> to vector<8x12xf32>
    %776 = vector.broadcast %773 : f32 to vector<8x12xf32>
    %777 = arith.mulf %775, %776 : vector<8x12xf32>
    %778 = arith.addf %772, %777 : vector<8x12xf32>
    %c0_544 = arith.constant 0 : index
    %c0_545 = arith.constant 0 : index
    %c0_546 = arith.constant 0 : index
    %c72_547 = arith.constant 72 : index
    %779 = vector.load %arg5[%c0_544, %c0_545, %c0_546, %c72_547] : memref<1x3x8x84xf32, #tpu.memory_space<vmem>>, vector<1x1x8x12xf32>
    %780 = vector.shape_cast %779 : vector<1x1x8x12xf32> to vector<8x12xf32>
    %781 = vector.shape_cast %778 : vector<8x12xf32> to vector<1x1x8x12xf32>
    tpu.vector_store %arg5[%c0_544, %c0_545, %c0_546, %c72_547], %781 {strides = array<i32>} : memref<1x3x8x84xf32, #tpu.memory_space<vmem>>, vector<1x1x8x12xf32>,
    %c109 = arith.constant 109 : index
    %782 = memref.load %arg2[%c109] : memref<135xf32, #tpu.memory_space<smem>>
    %c0_548 = arith.constant 0 : index
    %c0_549 = arith.constant 0 : index
    %c0_550 = arith.constant 0 : index
    %c0_551 = arith.constant 0 : index
    %783 = vector.load %arg4[%c0_548, %c0_549, %c0_550, %c0_551] : memref<1x3x8x16xf32, #tpu.memory_space<vmem>>, vector<1x1x8x12xf32>
    %784 = vector.shape_cast %783 : vector<1x1x8x12xf32> to vector<8x12xf32>
    %785 = vector.broadcast %782 : f32 to vector<8x12xf32>
    %786 = arith.mulf %784, %785 : vector<8x12xf32>
    %c16_552 = arith.constant 16 : index
    %787 = memref.load %arg3[%c16_552] : memref<18xf32, #tpu.memory_space<smem>>
    %788 = vector.broadcast %787 : f32 to vector<8x12xf32>
    %789 = arith.addf %786, %788 : vector<8x12xf32>
    %c112 = arith.constant 112 : index
    %790 = memref.load %arg2[%c112] : memref<135xf32, #tpu.memory_space<smem>>
    %c0_553 = arith.constant 0 : index
    %c1_554 = arith.constant 1 : index
    %c0_555 = arith.constant 0 : index
    %c0_556 = arith.constant 0 : index
    %791 = vector.load %arg4[%c0_553, %c1_554, %c0_555, %c0_556] : memref<1x3x8x16xf32, #tpu.memory_space<vmem>>, vector<1x1x8x12xf32>
    %792 = vector.shape_cast %791 : vector<1x1x8x12xf32> to vector<8x12xf32>
    %793 = vector.broadcast %790 : f32 to vector<8x12xf32>
    %794 = arith.mulf %792, %793 : vector<8x12xf32>
    %795 = arith.addf %789, %794 : vector<8x12xf32>
    %c115 = arith.constant 115 : index
    %796 = memref.load %arg2[%c115] : memref<135xf32, #tpu.memory_space<smem>>
    %c0_557 = arith.constant 0 : index
    %c2_558 = arith.constant 2 : index
    %c0_559 = arith.constant 0 : index
    %c0_560 = arith.constant 0 : index
    %797 = vector.load %arg4[%c0_557, %c2_558, %c0_559, %c0_560] : memref<1x3x8x16xf32, #tpu.memory_space<vmem>>, vector<1x1x8x12xf32>
    %798 = vector.shape_cast %797 : vector<1x1x8x12xf32> to vector<8x12xf32>
    %799 = vector.broadcast %796 : f32 to vector<8x12xf32>
    %800 = arith.mulf %798, %799 : vector<8x12xf32>
    %801 = arith.addf %795, %800 : vector<8x12xf32>
    %c118 = arith.constant 118 : index
    %802 = memref.load %arg2[%c118] : memref<135xf32, #tpu.memory_space<smem>>
    %c0_561 = arith.constant 0 : index
    %c0_562 = arith.constant 0 : index
    %c0_563 = arith.constant 0 : index
    %c2_564 = arith.constant 2 : index
    %803 = vector.load %arg4[%c0_561, %c0_562, %c0_563, %c2_564] : memref<1x3x8x16xf32, #tpu.memory_space<vmem>>, vector<1x1x8x12xf32>
    %804 = vector.shape_cast %803 : vector<1x1x8x12xf32> to vector<8x12xf32>
    %805 = vector.broadcast %802 : f32 to vector<8x12xf32>
    %806 = arith.mulf %804, %805 : vector<8x12xf32>
    %807 = arith.addf %801, %806 : vector<8x12xf32>
    %c121 = arith.constant 121 : index
    %808 = memref.load %arg2[%c121] : memref<135xf32, #tpu.memory_space<smem>>
    %c0_565 = arith.constant 0 : index
    %c1_566 = arith.constant 1 : index
    %c0_567 = arith.constant 0 : index
    %c2_568 = arith.constant 2 : index
    %809 = vector.load %arg4[%c0_565, %c1_566, %c0_567, %c2_568] : memref<1x3x8x16xf32, #tpu.memory_space<vmem>>, vector<1x1x8x12xf32>
    %810 = vector.shape_cast %809 : vector<1x1x8x12xf32> to vector<8x12xf32>
    %811 = vector.broadcast %808 : f32 to vector<8x12xf32>
    %812 = arith.mulf %810, %811 : vector<8x12xf32>
    %813 = arith.addf %807, %812 : vector<8x12xf32>
    %c124 = arith.constant 124 : index
    %814 = memref.load %arg2[%c124] : memref<135xf32, #tpu.memory_space<smem>>
    %c0_569 = arith.constant 0 : index
    %c2_570 = arith.constant 2 : index
    %c0_571 = arith.constant 0 : index
    %c2_572 = arith.constant 2 : index
    %815 = vector.load %arg4[%c0_569, %c2_570, %c0_571, %c2_572] : memref<1x3x8x16xf32, #tpu.memory_space<vmem>>, vector<1x1x8x12xf32>
    %816 = vector.shape_cast %815 : vector<1x1x8x12xf32> to vector<8x12xf32>
    %817 = vector.broadcast %814 : f32 to vector<8x12xf32>
    %818 = arith.mulf %816, %817 : vector<8x12xf32>
    %819 = arith.addf %813, %818 : vector<8x12xf32>
    %c127 = arith.constant 127 : index
    %820 = memref.load %arg2[%c127] : memref<135xf32, #tpu.memory_space<smem>>
    %c0_573 = arith.constant 0 : index
    %c0_574 = arith.constant 0 : index
    %c0_575 = arith.constant 0 : index
    %c4_576 = arith.constant 4 : index
    %821 = vector.load %arg4[%c0_573, %c0_574, %c0_575, %c4_576] : memref<1x3x8x16xf32, #tpu.memory_space<vmem>>, vector<1x1x8x12xf32>
    %822 = vector.shape_cast %821 : vector<1x1x8x12xf32> to vector<8x12xf32>
    %823 = vector.broadcast %820 : f32 to vector<8x12xf32>
    %824 = arith.mulf %822, %823 : vector<8x12xf32>
    %825 = arith.addf %819, %824 : vector<8x12xf32>
    %c130 = arith.constant 130 : index
    %826 = memref.load %arg2[%c130] : memref<135xf32, #tpu.memory_space<smem>>
    %c0_577 = arith.constant 0 : index
    %c1_578 = arith.constant 1 : index
    %c0_579 = arith.constant 0 : index
    %c4_580 = arith.constant 4 : index
    %827 = vector.load %arg4[%c0_577, %c1_578, %c0_579, %c4_580] : memref<1x3x8x16xf32, #tpu.memory_space<vmem>>, vector<1x1x8x12xf32>
    %828 = vector.shape_cast %827 : vector<1x1x8x12xf32> to vector<8x12xf32>
    %829 = vector.broadcast %826 : f32 to vector<8x12xf32>
    %830 = arith.mulf %828, %829 : vector<8x12xf32>
    %831 = arith.addf %825, %830 : vector<8x12xf32>
    %c133 = arith.constant 133 : index
    %832 = memref.load %arg2[%c133] : memref<135xf32, #tpu.memory_space<smem>>
    %c0_581 = arith.constant 0 : index
    %c2_582 = arith.constant 2 : index
    %c0_583 = arith.constant 0 : index
    %c4_584 = arith.constant 4 : index
    %833 = vector.load %arg4[%c0_581, %c2_582, %c0_583, %c4_584] : memref<1x3x8x16xf32, #tpu.memory_space<vmem>>, vector<1x1x8x12xf32>
    %834 = vector.shape_cast %833 : vector<1x1x8x12xf32> to vector<8x12xf32>
    %835 = vector.broadcast %832 : f32 to vector<8x12xf32>
    %836 = arith.mulf %834, %835 : vector<8x12xf32>
    %837 = arith.addf %831, %836 : vector<8x12xf32>
    %c0_585 = arith.constant 0 : index
    %c1_586 = arith.constant 1 : index
    %c0_587 = arith.constant 0 : index
    %c72_588 = arith.constant 72 : index
    %838 = vector.load %arg5[%c0_585, %c1_586, %c0_587, %c72_588] : memref<1x3x8x84xf32, #tpu.memory_space<vmem>>, vector<1x1x8x12xf32>
    %839 = vector.shape_cast %838 : vector<1x1x8x12xf32> to vector<8x12xf32>
    %840 = vector.shape_cast %837 : vector<8x12xf32> to vector<1x1x8x12xf32>
    tpu.vector_store %arg5[%c0_585, %c1_586, %c0_587, %c72_588], %840 {strides = array<i32>} : memref<1x3x8x84xf32, #tpu.memory_space<vmem>>, vector<1x1x8x12xf32>,
    %c110 = arith.constant 110 : index
    %841 = memref.load %arg2[%c110] : memref<135xf32, #tpu.memory_space<smem>>
    %c0_589 = arith.constant 0 : index
    %c0_590 = arith.constant 0 : index
    %c0_591 = arith.constant 0 : index
    %c0_592 = arith.constant 0 : index
    %842 = vector.load %arg4[%c0_589, %c0_590, %c0_591, %c0_592] : memref<1x3x8x16xf32, #tpu.memory_space<vmem>>, vector<1x1x8x12xf32>
    %843 = vector.shape_cast %842 : vector<1x1x8x12xf32> to vector<8x12xf32>
    %844 = vector.broadcast %841 : f32 to vector<8x12xf32>
    %845 = arith.mulf %843, %844 : vector<8x12xf32>
    %c17_593 = arith.constant 17 : index
    %846 = memref.load %arg3[%c17_593] : memref<18xf32, #tpu.memory_space<smem>>
    %847 = vector.broadcast %846 : f32 to vector<8x12xf32>
    %848 = arith.addf %845, %847 : vector<8x12xf32>
    %c113 = arith.constant 113 : index
    %849 = memref.load %arg2[%c113] : memref<135xf32, #tpu.memory_space<smem>>
    %c0_594 = arith.constant 0 : index
    %c1_595 = arith.constant 1 : index
    %c0_596 = arith.constant 0 : index
    %c0_597 = arith.constant 0 : index
    %850 = vector.load %arg4[%c0_594, %c1_595, %c0_596, %c0_597] : memref<1x3x8x16xf32, #tpu.memory_space<vmem>>, vector<1x1x8x12xf32>
    %851 = vector.shape_cast %850 : vector<1x1x8x12xf32> to vector<8x12xf32>
    %852 = vector.broadcast %849 : f32 to vector<8x12xf32>
    %853 = arith.mulf %851, %852 : vector<8x12xf32>
    %854 = arith.addf %848, %853 : vector<8x12xf32>
    %c116 = arith.constant 116 : index
    %855 = memref.load %arg2[%c116] : memref<135xf32, #tpu.memory_space<smem>>
    %c0_598 = arith.constant 0 : index
    %c2_599 = arith.constant 2 : index
    %c0_600 = arith.constant 0 : index
    %c0_601 = arith.constant 0 : index
    %856 = vector.load %arg4[%c0_598, %c2_599, %c0_600, %c0_601] : memref<1x3x8x16xf32, #tpu.memory_space<vmem>>, vector<1x1x8x12xf32>
    %857 = vector.shape_cast %856 : vector<1x1x8x12xf32> to vector<8x12xf32>
    %858 = vector.broadcast %855 : f32 to vector<8x12xf32>
    %859 = arith.mulf %857, %858 : vector<8x12xf32>
    %860 = arith.addf %854, %859 : vector<8x12xf32>
    %c119 = arith.constant 119 : index
    %861 = memref.load %arg2[%c119] : memref<135xf32, #tpu.memory_space<smem>>
    %c0_602 = arith.constant 0 : index
    %c0_603 = arith.constant 0 : index
    %c0_604 = arith.constant 0 : index
    %c2_605 = arith.constant 2 : index
    %862 = vector.load %arg4[%c0_602, %c0_603, %c0_604, %c2_605] : memref<1x3x8x16xf32, #tpu.memory_space<vmem>>, vector<1x1x8x12xf32>
    %863 = vector.shape_cast %862 : vector<1x1x8x12xf32> to vector<8x12xf32>
    %864 = vector.broadcast %861 : f32 to vector<8x12xf32>
    %865 = arith.mulf %863, %864 : vector<8x12xf32>
    %866 = arith.addf %860, %865 : vector<8x12xf32>
    %c122 = arith.constant 122 : index
    %867 = memref.load %arg2[%c122] : memref<135xf32, #tpu.memory_space<smem>>
    %c0_606 = arith.constant 0 : index
    %c1_607 = arith.constant 1 : index
    %c0_608 = arith.constant 0 : index
    %c2_609 = arith.constant 2 : index
    %868 = vector.load %arg4[%c0_606, %c1_607, %c0_608, %c2_609] : memref<1x3x8x16xf32, #tpu.memory_space<vmem>>, vector<1x1x8x12xf32>
    %869 = vector.shape_cast %868 : vector<1x1x8x12xf32> to vector<8x12xf32>
    %870 = vector.broadcast %867 : f32 to vector<8x12xf32>
    %871 = arith.mulf %869, %870 : vector<8x12xf32>
    %872 = arith.addf %866, %871 : vector<8x12xf32>
    %c125 = arith.constant 125 : index
    %873 = memref.load %arg2[%c125] : memref<135xf32, #tpu.memory_space<smem>>
    %c0_610 = arith.constant 0 : index
    %c2_611 = arith.constant 2 : index
    %c0_612 = arith.constant 0 : index
    %c2_613 = arith.constant 2 : index
    %874 = vector.load %arg4[%c0_610, %c2_611, %c0_612, %c2_613] : memref<1x3x8x16xf32, #tpu.memory_space<vmem>>, vector<1x1x8x12xf32>
    %875 = vector.shape_cast %874 : vector<1x1x8x12xf32> to vector<8x12xf32>
    %876 = vector.broadcast %873 : f32 to vector<8x12xf32>
    %877 = arith.mulf %875, %876 : vector<8x12xf32>
    %878 = arith.addf %872, %877 : vector<8x12xf32>
    %c128 = arith.constant 128 : index
    %879 = memref.load %arg2[%c128] : memref<135xf32, #tpu.memory_space<smem>>
    %c0_614 = arith.constant 0 : index
    %c0_615 = arith.constant 0 : index
    %c0_616 = arith.constant 0 : index
    %c4_617 = arith.constant 4 : index
    %880 = vector.load %arg4[%c0_614, %c0_615, %c0_616, %c4_617] : memref<1x3x8x16xf32, #tpu.memory_space<vmem>>, vector<1x1x8x12xf32>
    %881 = vector.shape_cast %880 : vector<1x1x8x12xf32> to vector<8x12xf32>
    %882 = vector.broadcast %879 : f32 to vector<8x12xf32>
    %883 = arith.mulf %881, %882 : vector<8x12xf32>
    %884 = arith.addf %878, %883 : vector<8x12xf32>
    %c131 = arith.constant 131 : index
    %885 = memref.load %arg2[%c131] : memref<135xf32, #tpu.memory_space<smem>>
    %c0_618 = arith.constant 0 : index
    %c1_619 = arith.constant 1 : index
    %c0_620 = arith.constant 0 : index
    %c4_621 = arith.constant 4 : index
    %886 = vector.load %arg4[%c0_618, %c1_619, %c0_620, %c4_621] : memref<1x3x8x16xf32, #tpu.memory_space<vmem>>, vector<1x1x8x12xf32>
    %887 = vector.shape_cast %886 : vector<1x1x8x12xf32> to vector<8x12xf32>
    %888 = vector.broadcast %885 : f32 to vector<8x12xf32>
    %889 = arith.mulf %887, %888 : vector<8x12xf32>
    %890 = arith.addf %884, %889 : vector<8x12xf32>
    %c134 = arith.constant 134 : index
    %891 = memref.load %arg2[%c134] : memref<135xf32, #tpu.memory_space<smem>>
    %c0_622 = arith.constant 0 : index
    %c2_623 = arith.constant 2 : index
    %c0_624 = arith.constant 0 : index
    %c4_625 = arith.constant 4 : index
    %892 = vector.load %arg4[%c0_622, %c2_623, %c0_624, %c4_625] : memref<1x3x8x16xf32, #tpu.memory_space<vmem>>, vector<1x1x8x12xf32>
    %893 = vector.shape_cast %892 : vector<1x1x8x12xf32> to vector<8x12xf32>
    %894 = vector.broadcast %891 : f32 to vector<8x12xf32>
    %895 = arith.mulf %893, %894 : vector<8x12xf32>
    %896 = arith.addf %890, %895 : vector<8x12xf32>
    %c0_626 = arith.constant 0 : index
    %c2_627 = arith.constant 2 : index
    %c0_628 = arith.constant 0 : index
    %c72_629 = arith.constant 72 : index
    %897 = vector.load %arg5[%c0_626, %c2_627, %c0_628, %c72_629] : memref<1x3x8x84xf32, #tpu.memory_space<vmem>>, vector<1x1x8x12xf32>
    %898 = vector.shape_cast %897 : vector<1x1x8x12xf32> to vector<8x12xf32>
    %899 = vector.shape_cast %896 : vector<8x12xf32> to vector<1x1x8x12xf32>
    tpu.vector_store %arg5[%c0_626, %c2_627, %c0_628, %c72_629], %899 {strides = array<i32>} : memref<1x3x8x84xf32, #tpu.memory_space<vmem>>, vector<1x1x8x12xf32>,
    return
  }
  func.func @transform_0(%arg0: i32, %arg1: i32) -> i32 {
    %c0_i32 = arith.constant 0 : i32
    %c0_i32_0 = arith.constant 0 : i32
    return %c0_i32 : i32
  }
  func.func @transform_1(%arg0: i32, %arg1: i32) -> i32 {
    %c0_i32 = arith.constant 0 : i32
    %c0_i32_0 = arith.constant 0 : i32
    return %c0_i32 : i32
  }
  func.func @transform_2(%arg0: i32, %arg1: i32) -> (i32, i32, i32, i32) {
    %c0_i32 = arith.constant 0 : i32
    %c0_i32_0 = arith.constant 0 : i32
    %c0_i32_1 = arith.constant 0 : i32
    return %arg0, %c0_i32, %arg1, %c0_i32_0 : i32, i32, i32, i32
  }
  func.func @transform_3(%arg0: i32, %arg1: i32) -> (i32, i32, i32, i32) {
    %c0_i32 = arith.constant 0 : i32
    %c0_i32_0 = arith.constant 0 : i32
    %c0_i32_1 = arith.constant 0 : i32
    return %arg0, %c0_i32, %arg1, %c0_i32_0 : i32, i32, i32, i32
  }
}

</mosaic_0001>

<llo_original>
// kernel: kdblock_pallas.1
$region0: #{kdblock_pallas.1}
  #allocation0 [shape = 'u32[]', space=smem, size = 0x4, offset = 0x4, fixed_abs, tag = 'smem constant byte address 0x4 - core index']
  #allocation1 [shape = 'u32[144,128]{1,0:T(1,128)}', space=vmem, size = 0x12000, scoped, tag = 'internal scratch']
  %s0 = inlined_call_operand.vmem [shape: f32[135], index: 0, kind: input, shape index: {}]
  %s1 = inlined_call_operand.vmem [shape: f32[18], index: 1, kind: input, shape index: {}]
  %s2 = inlined_call_operand.hbm [shape: f32[2,3,8,16], index: 2, kind: input, shape index: {}]
  %s3 = inlined_call_operand.hbm [shape: f32[2,3,8,84], index: 3, kind: output, shape index: {}]
  %s4 = sld [smem:[#allocation0]]
  $region57: #{kdblock_pallas.1} parent=0
    _
  %s6 = ssub.s32 1, %s4
  %s7 = scalar_select 0, %s6, %s4
  $region1: #{kdblock_pallas.1} parent=0
    #allocation2 [shape = 'u8[1024]{0}', space=smem, size = 0x400, scoped, tag = 'input window, operand 0, single buffered']
    #allocation3 [shape = 's32[2]{0}', space=sflag, size = 0x8, scoped, tag = 'scoped memory for kdblock_pallas.1']
    #allocation4 [shape = 's32[2]{0}', space=sflag, size = 0x8, scoped, tag = 'scoped memory for kdblock_pallas.1']
    #allocation5 [shape = 's32[2]{0}', space=sflag, size = 0x8, scoped, tag = 'scoped memory for kdblock_pallas.1']
    #allocation6 [shape = 'u8[512]{0}', space=smem, size = 0x200, scoped, tag = 'input window, operand 1, single buffered']
    #allocation7 [shape = 's32[1]{0}', space=sflag, size = 0x4, scoped, tag = 'scoped memory for kdblock_pallas.1']
    #allocation8 [shape = 'u8[24576]{0}', space=vmem, size = 0x6000, scoped, tag = 'input window, operand 2']
    #allocation9 [shape = 'u8[24576]{0}', space=vmem, size = 0x6000, scoped, tag = 'output window, operand 0']
    %8 = vsyncpa [#allocation5], 0
    %9 = vsyncpa [#allocation7], 0
    %10 = vsyncpa [#allocation3], 0
    %s11 = scalar_lea.sflag [#allocation3], 1
    %12 = vsyncpa %s11, 0
    %13 = vsyncpa [#allocation4], 0
    %s14 = scalar_lea.sflag [#allocation4], 1
    %15 = vsyncpa %s14, 0
    loop: start=0, step=1, limit=4
    $region2: #{kdblock_pallas.1} parent=1 // loop_pre_header
      _
    $region3: #{kdblock_pallas.1} parent=1 // loop_header
      %s17 = sphi 0, %s21
      %p18 = scmp.ge.s32.totalorder %s17, 4
      %s24 = sphi 0, %s36
      %s25 = sphi 0, %s32
      %s26 = sphi 0, %s24
      %s27 = sphi 0, %s25
      %s28 = sphi 0, %s26
      %s29 = sphi 0, %s27
      %s37 = sphi 0, %s37
      %s39 = sphi 0, %s37
      %s40 = sphi 0, %s39
      %s54 = sphi 0, %s40
      %s58 = sphi 0, %s58
      %s60 = sphi 0, %s58
      %s61 = sphi 0, %s60
      %s75 = sphi 0, %s61
      %s83 = sphi 0, %s85
      %s86 = sphi 0, %s83
      %s87 = sphi 0, %s86
      %s103 = sphi 0, %s87
      %s111 = sphi 0, %s113
      %s114 = sphi 0, %s111
      %s115 = sphi 0, %s114
      %s131 = sphi 0, %s115
    $region4: #{kdblock_pallas.1} parent=1 // loop_header_branch
      %20 = sbr.rel (%p18) target = $region8
    $region5: #{kdblock_pallas.1} parent=1 // loop_body
      %s22 = ssub.s32 %s17, 1
      %s23 = ssub.s32 %s17, 2
      %s30 = sadd.s32 1, %s25
      %p31 = scmp.ge.s32.totalorder %s30, 1
      %s32 = scalar_select %p31, 0, %s30
      %s33 = sadd.s32 1, %s24
      %s34 = scalar_select %p31, %s33, %s24
      %p35 = scmp.ge.s32.totalorder %s34, 2
      %s36 = scalar_select %p35, 0, %s34
      %s38 = sadd.s32 %s37, 1
      %p41 = scmp.eq.s32.totalorder %s17, 1
      %p42 = scmp.ne.s32.totalorder %s37, %s39
      %p43 = scmp.eq.s32.totalorder %s17, 0
      %p44 = por %p42, %p43
      %p45 = scmp.ne.s32.totalorder %s37, %s39
      %p46 = scmp.eq.s32.totalorder %s22, 1
      %p47 = por %p45, %p46
      %p48 = scmp.ne.s32.totalorder %s39, %s40
      %p49 = scmp.eq.s32.totalorder %s22, 0
      %p50 = por %p48, %p49
      %p51 = scmp.ne.s32.totalorder %s39, %s40
      %p52 = scmp.eq.s32.totalorder %s23, 1
      %p53 = por %p51, %p52
      %p55 = scmp.ne.s32.totalorder %s40, %s54
      %p56 = scmp.eq.s32.totalorder %s23, 0
      %p57 = por %p55, %p56
      %s59 = sadd.s32 %s58, 1
      %p62 = scmp.eq.s32.totalorder %s17, 1
      %p63 = scmp.ne.s32.totalorder %s58, %s60
      %p64 = scmp.eq.s32.totalorder %s17, 0
      %p65 = por %p63, %p64
      %p66 = scmp.ne.s32.totalorder %s58, %s60
      %p67 = scmp.eq.s32.totalorder %s22, 1
      %p68 = por %p66, %p67
      %p69 = scmp.ne.s32.totalorder %s60, %s61
      %p70 = scmp.eq.s32.totalorder %s22, 0
      %p71 = por %p69, %p70
      %p72 = scmp.ne.s32.totalorder %s60, %s61
      %p73 = scmp.eq.s32.totalorder %s23, 1
      %p74 = por %p72, %p73
      %p76 = scmp.ne.s32.totalorder %s61, %s75
      %p77 = scmp.eq.s32.totalorder %s23, 0
      %p78 = por %p76, %p77
      %s79 = ssub.s32 %s24, %s36
      %s80 = ssub.s32 %s25, %s32
      %s81 = sor.u32 %s79, %s80
      %p82 = scmp.eq.s32.totalorder %s81, 0
      %s84 = sadd.s32 %s83, 1
      %s85 = scalar_select %p82, %s83, %s84
      %p88 = pneg %p82
      %p89 = scmp.eq.s32.totalorder %s17, 1
      %p90 = por %p88, %p89
      %p91 = scmp.ne.s32.totalorder %s83, %s86
      %p92 = scmp.eq.s32.totalorder %s17, 0
      %p93 = por %p91, %p92
      %p94 = scmp.ne.s32.totalorder %s83, %s86
      %p95 = scmp.eq.s32.totalorder %s22, 1
      %p96 = por %p94, %p95
      %p97 = scmp.ne.s32.totalorder %s86, %s87
      %p98 = scmp.eq.s32.totalorder %s22, 0
      %p99 = por %p97, %p98
      %p100 = scmp.ne.s32.totalorder %s86, %s87
      %p101 = scmp.eq.s32.totalorder %s23, 1
      %p102 = por %p100, %p101
      %p104 = scmp.ne.s32.totalorder %s87, %s103
      %p105 = scmp.eq.s32.totalorder %s23, 0
      %p106 = por %p104, %p105
      %s107 = ssub.s32 %s24, %s36
      %s108 = ssub.s32 %s25, %s32
      %s109 = sor.u32 %s107, %s108
      %p110 = scmp.eq.s32.totalorder %s109, 0
      %s112 = sadd.s32 %s111, 1
      %s113 = scalar_select %p110, %s111, %s112
      %p116 = pneg %p110
      %p117 = scmp.eq.s32.totalorder %s17, 1
      %p118 = por %p116, %p117
      %p119 = scmp.ne.s32.totalorder %s111, %s114
      %p120 = scmp.eq.s32.totalorder %s17, 0
      %p121 = por %p119, %p120
      %p122 = scmp.ne.s32.totalorder %s111, %s114
      %p123 = scmp.eq.s32.totalorder %s22, 1
      %p124 = por %p122, %p123
      %p125 = scmp.ne.s32.totalorder %s114, %s115
      %p126 = scmp.eq.s32.totalorder %s22, 0
      %p127 = por %p125, %p126
      %p128 = scmp.ne.s32.totalorder %s114, %s115
      %p129 = scmp.eq.s32.totalorder %s23, 1
      %p130 = por %p128, %p129
      %p132 = scmp.ne.s32.totalorder %s115, %s131
      %p133 = scmp.eq.s32.totalorder %s23, 0
      %p134 = por %p132, %p133
      %p135 = scmp.le.s32.totalorder 1, %s17
      %p136 = scmp.lt.s32.totalorder %s17, 3
      %p137 = pnand %p135, %p136
      %p138 = pneg %p137
      // Predicated region
      $region9: #{kdblock_pallas.1} parent=5 // pred_check
        _
      $region10: #{kdblock_pallas.1} parent=5 // pred_check_branch
        %140 = sbr.rel (%p137) target = $region12
      $region11: #{kdblock_pallas.1} parent=5 // pred_region
        %s141 = ssub.s32 %s17, 1
        // Predicated region
        $region13: #{kdblock_pallas.1} parent=11 // pred_check
          %p142 = pneg %p50
        $region14: #{kdblock_pallas.1} parent=11 // pred_check_branch
          %144 = sbr.rel (%p142) target = $region16
        $region15: #{kdblock_pallas.1} parent=11 // pred_region
          %s146 = ssub.s32 32, 32
          %147 = vsyncadd [#allocation5], %s146
          %s149 = sshll.u32 %s0, 4
          %s150 = int_to_ptr.vmem [resolvable:$true] %s149
          %152 = dma.vmem_to_smem %s150, 32, [#allocation2], [#allocation5]
        $region16: #{kdblock_pallas.1} parent=11 // pred_fallthru
          _
        // Predicated region
        $region17: #{kdblock_pallas.1} parent=11 // pred_check
          %p153 = pneg %p71
        $region18: #{kdblock_pallas.1} parent=11 // pred_check_branch
          %155 = sbr.rel (%p153) target = $region20
        $region19: #{kdblock_pallas.1} parent=11 // pred_region
          %s157 = ssub.s32 16, 16
          %158 = vsyncadd [#allocation7], %s157
          %s160 = sshll.u32 %s1, 4
          %s161 = int_to_ptr.vmem [resolvable:$true] %s160
          %163 = dma.vmem_to_smem %s161, 16, [#allocation6], [#allocation7]
        $region20: #{kdblock_pallas.1} parent=11 // pred_fallthru
          _
      $region12: #{kdblock_pallas.1} parent=5 // pred_fallthru
        _
      %p164 = scmp.lt.s32.totalorder %s17, 2
      // Predicated region
      $region21: #{kdblock_pallas.1} parent=5 // pred_check
        %p165 = pneg %p164
      $region22: #{kdblock_pallas.1} parent=5 // pred_check_branch
        %167 = sbr.rel (%p165) target = $region24
      $region23: #{kdblock_pallas.1} parent=5 // pred_region
        // Predicated region
        $region25: #{kdblock_pallas.1} parent=23 // pred_check
          %p168 = pneg %p93
        $region26: #{kdblock_pallas.1} parent=23 // pred_check_branch
          %170 = sbr.rel (%p168) target = $region28
        $region27: #{kdblock_pallas.1} parent=23 // pred_region
          %s171 = sand.u32 %s83, 1
          %s172 = scalar_lea.sflag [#allocation3], %s171
          %s173 = sand.u32 %s83, 1
          %s174 = smul.addr %s173, 24
          %s175 = scalar_lea.vmem [#allocation8], %s174
          %s177 = ssub.s32 384, 384
          %178 = vsyncadd %s172, %s177
          %s179 = smul.addr %s24, 3
          %s180 = sadd.s32 %s25, %s179
          %s181 = smul.addr %s180, 128
          %s182 = scalar_lea.hbm %s2, %s181
          %s183 = sshll.u32 %s175, 4
          %s184 = int_to_ptr.vmem [resolvable:$true] %s183
          %189 = dma.hbm_to_vmem [thread:$0]  %s182, 384, %s184, %s172, 128, 128, 8
        $region28: #{kdblock_pallas.1} parent=23 // pred_fallthru
          _
      $region24: #{kdblock_pallas.1} parent=5 // pred_fallthru
        _
      %p190 = scmp.le.s32.totalorder 1, %s17
      %p191 = scmp.lt.s32.totalorder %s17, 3
      %p192 = pnand %p190, %p191
      %p193 = pneg %p192
      // Predicated region
      $region29: #{kdblock_pallas.1} parent=5 // pred_check
        _
      $region30: #{kdblock_pallas.1} parent=5 // pred_check_branch
        %195 = sbr.rel (%p192) target = $region32
      $region31: #{kdblock_pallas.1} parent=5 // pred_region
        %s196 = ssub.s32 %s17, 1
        // Predicated region
        $region33: #{kdblock_pallas.1} parent=31 // pred_check
          %p197 = pneg %p50
        $region34: #{kdblock_pallas.1} parent=31 // pred_check_branch
          %199 = sbr.rel (%p197) target = $region36
        $region35: #{kdblock_pallas.1} parent=31 // pred_region
          %200 = dma.done [#allocation5], 32
        $region36: #{kdblock_pallas.1} parent=31 // pred_fallthru
          _
        // Predicated region
        $region37: #{kdblock_pallas.1} parent=31 // pred_check
          %p201 = pneg %p71
        $region38: #{kdblock_pallas.1} parent=31 // pred_check_branch
          %203 = sbr.rel (%p201) target = $region40
        $region39: #{kdblock_pallas.1} parent=31 // pred_region
          %204 = dma.done [#allocation7], 16
        $region40: #{kdblock_pallas.1} parent=31 // pred_fallthru
          _
        %s205 = sand.u32 %s86, 1
        %s206 = scalar_lea.sflag [#allocation3], %s205
        %s207 = sand.u32 %s86, 1
        %s208 = smul.addr %s207, 24
        %s209 = scalar_lea.vmem [#allocation8], %s208
        // Predicated region
        $region41: #{kdblock_pallas.1} parent=31 // pred_check
          %p210 = pneg %p99
        $region42: #{kdblock_pallas.1} parent=31 // pred_check_branch
          %212 = sbr.rel (%p210) target = $region44
        $region43: #{kdblock_pallas.1} parent=31 // pred_region
          %213 = dma.done %s206, 384
        $region44: #{kdblock_pallas.1} parent=31 // pred_fallthru
          _
        %214 = sfence
        %p215 = pneg %p50
        %p216 = pneg %p47
        %p217 = pneg %p71
        %p218 = pneg %p68
        %s219 = sand.u32 %s86, 1
        %s220 = scalar_lea.sflag [#allocation3], %s219
        %s221 = sand.u32 %s86, 1
        %s222 = smul.addr %s221, 24
        %s223 = scalar_lea.vmem [#allocation8], %s222
        %p224 = pneg %p99
        %p225 = pneg %p96
        %p226 = pneg %p127
        %p227 = pneg %p124
        %s228 = sand.u32 %s114, 1
        %s229 = scalar_lea.sflag [#allocation4], %s228
        %s230 = sand.u32 %s114, 1
        %s231 = smul.addr %s230, 24
        %s232 = scalar_lea.vmem [#allocation9], %s231
        %s233 = sld [smem:[#allocation2]]
        %v234 = vld [vmem:[%s209] sm:$0xff]
        %v235 = vstv %s233
        %v236 = vmul.f32 %v234, %v235
        %s237 = sld [smem:[#allocation6]]
        %v238 = vstv %s237
        %v239 = vadd.f32 %v236, %v238
        %s240 = sld [smem:[#allocation2 + $0x3]]
        %s241 = scalar_lea.vmem %s209, 8 [#allocation8]
        %v242 = vld [vmem:[%s241] sm:$0xff]
        %v243 = vstv %s240
        %v244 = vmul.f32 %v242, %v243
        %v245 = vadd.f32 %v239, %v244
        %s246 = sld [smem:[#allocation2 + $0x6]]
        %s247 = scalar_lea.vmem %s209, 16 [#allocation8]
        %v248 = vld [vmem:[%s247] sm:$0xff]
        %v249 = vstv %s246
        %v250 = vmul.f32 %v248, %v249
        %v251 = vadd.f32 %v245, %v250
        %vm252 = vcmask 130048
        %253 = vst.msk [vmem:[%s232] sm:$0xff] %vm252, %v251
        %s254 = sld [smem:[#allocation2 + $0x1]]
        %v255 = vld [vmem:[%s209] sm:$0xff]
        %v256 = vstv %s254
        %v257 = vmul.f32 %v255, %v256
        %s258 = sld [smem:[#allocation6 + $0x1]]
        %v259 = vstv %s258
        %v260 = vadd.f32 %v257, %v259
        %s261 = sld [smem:[#allocation2 + $0x4]]
        %v262 = vld [vmem:[%s241] sm:$0xff]
        %v263 = vstv %s261
        %v264 = vmul.f32 %v262, %v263
        %v265 = vadd.f32 %v260, %v264
        %s266 = sld [smem:[#allocation2 + $0x7]]
        %v267 = vld [vmem:[%s247] sm:$0xff]
        %v268 = vstv %s266
        %v269 = vmul.f32 %v267, %v268
        %v270 = vadd.f32 %v265, %v269
        %s271 = scalar_lea.vmem %s232, 8 [#allocation9]
        %272 = vst.msk [vmem:[%s271] sm:$0xff] %vm252, %v270
        %s273 = sld [smem:[#allocation2 + $0x2]]
        %v274 = vld [vmem:[%s209] sm:$0xff]
        %v275 = vstv %s273
        %v276 = vmul.f32 %v274, %v275
        %s277 = sld [smem:[#allocation6 + $0x2]]
        %v278 = vstv %s277
        %v279 = vadd.f32 %v276, %v278
        %s280 = sld [smem:[#allocation2 + $0x5]]
        %v281 = vld [vmem:[%s241] sm:$0xff]
        %v282 = vstv %s280
        %v283 = vmul.f32 %v281, %v282
        %v284 = vadd.f32 %v279, %v283
        %s285 = sld [smem:[#allocation2 + $0x8]]
        %v286 = vld [vmem:[%s247] sm:$0xff]
        %v287 = vstv %s285
        %v288 = vmul.f32 %v286, %v287
        %v289 = vadd.f32 %v284, %v288
        %s290 = scalar_lea.vmem %s232, 16 [#allocation9]
        %291 = vst.msk [vmem:[%s290] sm:$0xff] %vm252, %v289
        %s292 = sld [smem:[#allocation2 + $0x9]]
        %v293 = vld [vmem:[%s209] sm:$0xff]
        %v294 = vstv %s292
        %v295 = vmul.f32 %v293, %v294
        %s296 = sld [smem:[#allocation6 + $0x3]]
        %v297 = vstv %s296
        %v298 = vadd.f32 %v295, %v297
        %s299 = sld [smem:[#allocation2 + $0xc]]
        %v300 = vld [vmem:[%s241] sm:$0xff]
        %v301 = vstv %s299
        %v302 = vmul.f32 %v300, %v301
        %v303 = vadd.f32 %v298, %v302
        %s304 = sld [smem:[#allocation2 + $0xf]]
        %v305 = vld [vmem:[%s247] sm:$0xff]
        %v306 = vstv %s304
        %v307 = vmul.f32 %v305, %v306
        %v308 = vadd.f32 %v303, %v307
        %s309 = sld [smem:[#allocation2 + $0x12]]
        %v310 = vstv %s309
        %v311 = vmul.f32 %v293, %v310
        %313 = vrot.lane.b32.xlu0 %v311, 127
        %v314 = vpop.permute.xlu0 %313
        %v316 = vadd.f32 %v308, %v314
        %s317 = sld [smem:[#allocation2 + $0x15]]
        %v318 = vstv %s317
        %v319 = vmul.f32 %v300, %v318
        %321 = vrot.lane.b32.xlu0 %v319, 127
        %v322 = vpop.permute.xlu0 %321
        %v324 = vadd.f32 %v316, %v322
        %s325 = sld [smem:[#allocation2 + $0x18]]
        %v326 = vstv %s325
        %v327 = vmul.f32 %v305, %v326
        %329 = vrot.lane.b32.xlu0 %v327, 127
        %v330 = vpop.permute.xlu0 %329
        %v332 = vadd.f32 %v324, %v330
        %334 = vrot.lane.b32.xlu0 %v332, 16
        %v335 = vpop.permute.xlu0 %334
        %vm337 = vcmask 253056
        %338 = vst.msk [vmem:[%s232] sm:$0xff] %vm337, %v335
        %s339 = sld [smem:[#allocation2 + $0xa]]
        %v340 = vld [vmem:[%s209] sm:$0xff]
        %v341 = vstv %s339
        %v342 = vmul.f32 %v340, %v341
        %s343 = sld [smem:[#allocation6 + $0x4]]
        %v344 = vstv %s343
        %v345 = vadd.f32 %v342, %v344
        %s346 = sld [smem:[#allocation2 + $0xd]]
        %v347 = vld [vmem:[%s241] sm:$0xff]
        %v348 = vstv %s346
        %v349 = vmul.f32 %v347, %v348
        %v350 = vadd.f32 %v345, %v349
        %s351 = sld [smem:[#allocation2 + $0x10]]
        %v352 = vld [vmem:[%s247] sm:$0xff]
        %v353 = vstv %s351
        %v354 = vmul.f32 %v352, %v353
        %v355 = vadd.f32 %v350, %v354
        %s356 = sld [smem:[#allocation2 + $0x13]]
        %v357 = vstv %s356
        %v358 = vmul.f32 %v340, %v357
        %360 = vrot.lane.b32.xlu0 %v358, 127
        %v361 = vpop.permute.xlu0 %360
        %v363 = vadd.f32 %v355, %v361
        %s364 = sld [smem:[#allocation2 + $0x16]]
        %v365 = vstv %s364
        %v366 = vmul.f32 %v347, %v365
        %368 = vrot.lane.b32.xlu0 %v366, 127
        %v369 = vpop.permute.xlu0 %368
        %v371 = vadd.f32 %v363, %v369
        %s372 = sld [smem:[#allocation2 + $0x19]]
        %v373 = vstv %s372
        %v374 = vmul.f32 %v352, %v373
        %376 = vrot.lane.b32.xlu0 %v374, 127
        %v377 = vpop.permute.xlu0 %376
        %v379 = vadd.f32 %v371, %v377
        %381 = vrot.lane.b32.xlu0 %v379, 16
        %v382 = vpop.permute.xlu0 %381
        %384 = vst.msk [vmem:[%s271] sm:$0xff] %vm337, %v382
        %s385 = sld [smem:[#allocation2 + $0xb]]
        %v386 = vld [vmem:[%s209] sm:$0xff]
        %v387 = vstv %s385
        %v388 = vmul.f32 %v386, %v387
        %s389 = sld [smem:[#allocation6 + $0x5]]
        %v390 = vstv %s389
        %v391 = vadd.f32 %v388, %v390
        %s392 = sld [smem:[#allocation2 + $0xe]]
        %v393 = vld [vmem:[%s241] sm:$0xff]
        %v394 = vstv %s392
        %v395 = vmul.f32 %v393, %v394
        %v396 = vadd.f32 %v391, %v395
        %s397 = sld [smem:[#allocation2 + $0x11]]
        %v398 = vld [vmem:[%s247] sm:$0xff]
        %v399 = vstv %s397
        %v400 = vmul.f32 %v398, %v399
        %v401 = vadd.f32 %v396, %v400
        %s402 = sld [smem:[#allocation2 + $0x14]]
        %v403 = vstv %s402
        %v404 = vmul.f32 %v386, %v403
        %406 = vrot.lane.b32.xlu0 %v404, 127
        %v407 = vpop.permute.xlu0 %406
        %v409 = vadd.f32 %v401, %v407
        %s410 = sld [smem:[#allocation2 + $0x17]]
        %v411 = vstv %s410
        %v412 = vmul.f32 %v393, %v411
        %414 = vrot.lane.b32.xlu0 %v412, 127
        %v415 = vpop.permute.xlu0 %414
        %v417 = vadd.f32 %v409, %v415
        %s418 = sld [smem:[#allocation2 + $0x1a]]
        %v419 = vstv %s418
        %v420 = vmul.f32 %v398, %v419
        %422 = vrot.lane.b32.xlu0 %v420, 127
        %v423 = vpop.permute.xlu0 %422
        %v425 = vadd.f32 %v417, %v423
        %427 = vrot.lane.b32.xlu0 %v425, 16
        %v428 = vpop.permute.xlu0 %427
        %430 = vst.msk [vmem:[%s290] sm:$0xff] %vm337, %v428
        %s431 = sld [smem:[#allocation2 + $0x1b]]
        %v432 = vld [vmem:[%s209] sm:$0xff]
        %v433 = vstv %s431
        %v434 = vmul.f32 %v432, %v433
        %s435 = sld [smem:[#allocation6 + $0x6]]
        %v436 = vstv %s435
        %v437 = vadd.f32 %v434, %v436
        %s438 = sld [smem:[#allocation2 + $0x1e]]
        %v439 = vld [vmem:[%s241] sm:$0xff]
        %v440 = vstv %s438
        %v441 = vmul.f32 %v439, %v440
        %v442 = vadd.f32 %v437, %v441
        %s443 = sld [smem:[#allocation2 + $0x21]]
        %v444 = vld [vmem:[%s247] sm:$0xff]
        %v445 = vstv %s443
        %v446 = vmul.f32 %v444, %v445
        %v447 = vadd.f32 %v442, %v446
        %s448 = sld [smem:[#allocation2 + $0x24]]
        %v449 = vstv %s448
        %v450 = vmul.f32 %v432, %v449
        %452 = vrot.lane.b32.xlu0 %v450, 127
        %v453 = vpop.permute.xlu0 %452
        %v455 = vadd.f32 %v447, %v453
        %s456 = sld [smem:[#allocation2 + $0x27]]
        %v457 = vstv %s456
        %v458 = vmul.f32 %v439, %v457
        %460 = vrot.lane.b32.xlu0 %v458, 127
        %v461 = vpop.permute.xlu0 %460
        %v463 = vadd.f32 %v455, %v461
        %s464 = sld [smem:[#allocation2 + $0x2a]]
        %v465 = vstv %s464
        %v466 = vmul.f32 %v444, %v465
        %468 = vrot.lane.b32.xlu0 %v466, 127
        %v469 = vpop.permute.xlu0 %468
        %v471 = vadd.f32 %v463, %v469
        %s472 = sld [smem:[#allocation2 + $0x2d]]
        %v473 = vstv %s472
        %v474 = vmul.f32 %v432, %v473
        %476 = vrot.lane.b32.xlu0 %v474, 126
        %v477 = vpop.permute.xlu0 %476
        %v479 = vadd.f32 %v471, %v477
        %s480 = sld [smem:[#allocation2 + $0x30]]
        %v481 = vstv %s480
        %v482 = vmul.f32 %v439, %v481
        %484 = vrot.lane.b32.xlu0 %v482, 126
        %v485 = vpop.permute.xlu0 %484
        %v487 = vadd.f32 %v479, %v485
        %s488 = sld [smem:[#allocation2 + $0x33]]
        %v489 = vstv %s488
        %v490 = vmul.f32 %v444, %v489
        %492 = vrot.lane.b32.xlu0 %v490, 126
        %v493 = vpop.permute.xlu0 %492
        %v495 = vadd.f32 %v487, %v493
        %497 = vrot.lane.b32.xlu0 %v495, 31
        %v498 = vpop.permute.xlu0 %497
        %vm500 = vcmask 367864
        %501 = vst.msk [vmem:[%s232] sm:$0xff] %vm500, %v498
        %s502 = sld [smem:[#allocation2 + $0x1c]]
        %v503 = vld [vmem:[%s209] sm:$0xff]
        %v504 = vstv %s502
        %v505 = vmul.f32 %v503, %v504
        %s506 = sld [smem:[#allocation6 + $0x7]]
        %v507 = vstv %s506
        %v508 = vadd.f32 %v505, %v507
        %s509 = sld [smem:[#allocation2 + $0x1f]]
        %v510 = vld [vmem:[%s241] sm:$0xff]
        %v511 = vstv %s509
        %v512 = vmul.f32 %v510, %v511
        %v513 = vadd.f32 %v508, %v512
        %s514 = sld [smem:[#allocation2 + $0x22]]
        %v515 = vld [vmem:[%s247] sm:$0xff]
        %v516 = vstv %s514
        %v517 = vmul.f32 %v515, %v516
        %v518 = vadd.f32 %v513, %v517
        %s519 = sld [smem:[#allocation2 + $0x25]]
        %v520 = vstv %s519
        %v521 = vmul.f32 %v503, %v520
        %523 = vrot.lane.b32.xlu0 %v521, 127
        %v524 = vpop.permute.xlu0 %523
        %v526 = vadd.f32 %v518, %v524
        %s527 = sld [smem:[#allocation2 + $0x28]]
        %v528 = vstv %s527
        %v529 = vmul.f32 %v510, %v528
        %531 = vrot.lane.b32.xlu0 %v529, 127
        %v532 = vpop.permute.xlu0 %531
        %v534 = vadd.f32 %v526, %v532
        %s535 = sld [smem:[#allocation2 + $0x2b]]
        %v536 = vstv %s535
        %v537 = vmul.f32 %v515, %v536
        %539 = vrot.lane.b32.xlu0 %v537, 127
        %v540 = vpop.permute.xlu0 %539
        %v542 = vadd.f32 %v534, %v540
        %s543 = sld [smem:[#allocation2 + $0x2e]]
        %v544 = vstv %s543
        %v545 = vmul.f32 %v503, %v544
        %547 = vrot.lane.b32.xlu0 %v545, 126
        %v548 = vpop.permute.xlu0 %547
        %v550 = vadd.f32 %v542, %v548
        %s551 = sld [smem:[#allocation2 + $0x31]]
        %v552 = vstv %s551
        %v553 = vmul.f32 %v510, %v552
        %555 = vrot.lane.b32.xlu0 %v553, 126
        %v556 = vpop.permute.xlu0 %555
        %v558 = vadd.f32 %v550, %v556
        %s559 = sld [smem:[#allocation2 + $0x34]]
        %v560 = vstv %s559
        %v561 = vmul.f32 %v515, %v560
        %563 = vrot.lane.b32.xlu0 %v561, 126
        %v564 = vpop.permute.xlu0 %563
        %v566 = vadd.f32 %v558, %v564
        %568 = vrot.lane.b32.xlu0 %v566, 31
        %v569 = vpop.permute.xlu0 %568
        %571 = vst.msk [vmem:[%s271] sm:$0xff] %vm500, %v569
        %s572 = sld [smem:[#allocation2 + $0x1d]]
        %v573 = vld [vmem:[%s209] sm:$0xff]
        %v574 = vstv %s572
        %v575 = vmul.f32 %v573, %v574
        %s576 = sld [smem:[#allocation6 + $0x8]]
        %v577 = vstv %s576
        %v578 = vadd.f32 %v575, %v577
        %s579 = sld [smem:[#allocation2 + $0x20]]
        %v580 = vld [vmem:[%s241] sm:$0xff]
        %v581 = vstv %s579
        %v582 = vmul.f32 %v580, %v581
        %v583 = vadd.f32 %v578, %v582
        %s584 = sld [smem:[#allocation2 + $0x23]]
        %v585 = vld [vmem:[%s247] sm:$0xff]
        %v586 = vstv %s584
        %v587 = vmul.f32 %v585, %v586
        %v588 = vadd.f32 %v583, %v587
        %s589 = sld [smem:[#allocation2 + $0x26]]
        %v590 = vstv %s589
        %v591 = vmul.f32 %v573, %v590
        %593 = vrot.lane.b32.xlu0 %v591, 127
        %v594 = vpop.permute.xlu0 %593
        %v596 = vadd.f32 %v588, %v594
        %s597 = sld [smem:[#allocation2 + $0x29]]
        %v598 = vstv %s597
        %v599 = vmul.f32 %v580, %v598
        %601 = vrot.lane.b32.xlu0 %v599, 127
        %v602 = vpop.permute.xlu0 %601
        %v604 = vadd.f32 %v596, %v602
        %s605 = sld [smem:[#allocation2 + $0x2c]]
        %v606 = vstv %s605
        %v607 = vmul.f32 %v585, %v606
        %609 = vrot.lane.b32.xlu0 %v607, 127
        %v610 = vpop.permute.xlu0 %609
        %v612 = vadd.f32 %v604, %v610
        %s613 = sld [smem:[#allocation2 + $0x2f]]
        %v614 = vstv %s613
        %v615 = vmul.f32 %v573, %v614
        %617 = vrot.lane.b32.xlu0 %v615, 126
        %v618 = vpop.permute.xlu0 %617
        %v620 = vadd.f32 %v612, %v618
        %s621 = sld [smem:[#allocation2 + $0x32]]
        %v622 = vstv %s621
        %v623 = vmul.f32 %v580, %v622
        %625 = vrot.lane.b32.xlu0 %v623, 126
        %v626 = vpop.permute.xlu0 %625
        %v628 = vadd.f32 %v620, %v626
        %s629 = sld [smem:[#allocation2 + $0x35]]
        %v630 = vstv %s629
        %v631 = vmul.f32 %v585, %v630
        %633 = vrot.lane.b32.xlu0 %v631, 126
        %v634 = vpop.permute.xlu0 %633
        %v636 = vadd.f32 %v628, %v634
        %638 = vrot.lane.b32.xlu0 %v636, 31
        %v639 = vpop.permute.xlu0 %638
        %641 = vst.msk [vmem:[%s290] sm:$0xff] %vm500, %v639
        %s642 = sld [smem:[#allocation2 + $0x36]]
        %v643 = vld [vmem:[%s209] sm:$0xff]
        %v644 = vstv %s642
        %v645 = vmul.f32 %v643, %v644
        %s646 = sld [smem:[#allocation6 + $0x9]]
        %v647 = vstv %s646
        %v648 = vadd.f32 %v645, %v647
        %s649 = sld [smem:[#allocation2 + $0x39]]
        %v650 = vld [vmem:[%s241] sm:$0xff]
        %v651 = vstv %s649
        %v652 = vmul.f32 %v650, %v651
        %v653 = vadd.f32 %v648, %v652
        %s654 = sld [smem:[#allocation2 + $0x3c]]
        %v655 = vld [vmem:[%s247] sm:$0xff]
        %v656 = vstv %s654
        %v657 = vmul.f32 %v655, %v656
        %v658 = vadd.f32 %v653, %v657
        %s659 = sld [smem:[#allocation2 + $0x3f]]
        %v660 = vstv %s659
        %v661 = vmul.f32 %v643, %v660
        %663 = vrot.lane.b32.xlu0 %v661, 127
        %v664 = vpop.permute.xlu0 %663
        %v666 = vadd.f32 %v658, %v664
        %s667 = sld [smem:[#allocation2 + $0x42]]
        %v668 = vstv %s667
        %v669 = vmul.f32 %v650, %v668
        %671 = vrot.lane.b32.xlu0 %v669, 127
        %v672 = vpop.permute.xlu0 %671
        %v674 = vadd.f32 %v666, %v672
        %s675 = sld [smem:[#allocation2 + $0x45]]
        %v676 = vstv %s675
        %v677 = vmul.f32 %v655, %v676
        %679 = vrot.lane.b32.xlu0 %v677, 127
        %v680 = vpop.permute.xlu0 %679
        %v682 = vadd.f32 %v674, %v680
        %s683 = sld [smem:[#allocation2 + $0x48]]
        %v684 = vstv %s683
        %v685 = vmul.f32 %v643, %v684
        %687 = vrot.lane.b32.xlu0 %v685, 126
        %v688 = vpop.permute.xlu0 %687
        %v690 = vadd.f32 %v682, %v688
        %s691 = sld [smem:[#allocation2 + $0x4b]]
        %v692 = vstv %s691
        %v693 = vmul.f32 %v650, %v692
        %695 = vrot.lane.b32.xlu0 %v693, 126
        %v696 = vpop.permute.xlu0 %695
        %v698 = vadd.f32 %v690, %v696
        %s699 = sld [smem:[#allocation2 + $0x4e]]
        %v700 = vstv %s699
        %v701 = vmul.f32 %v655, %v700
        %703 = vrot.lane.b32.xlu0 %v701, 126
        %v704 = vpop.permute.xlu0 %703
        %v706 = vadd.f32 %v698, %v704
        %s707 = sld [smem:[#allocation2 + $0x51]]
        %v708 = vstv %s707
        %v709 = vmul.f32 %v643, %v708
        %711 = vrot.lane.b32.xlu0 %v709, 125
        %v712 = vpop.permute.xlu0 %711
        %v714 = vadd.f32 %v706, %v712
        %s715 = sld [smem:[#allocation2 + $0x54]]
        %v716 = vstv %s715
        %v717 = vmul.f32 %v650, %v716
        %719 = vrot.lane.b32.xlu0 %v717, 125
        %v720 = vpop.permute.xlu0 %719
        %v722 = vadd.f32 %v714, %v720
        %s723 = sld [smem:[#allocation2 + $0x57]]
        %v724 = vstv %s723
        %v725 = vmul.f32 %v655, %v724
        %727 = vrot.lane.b32.xlu0 %v725, 125
        %v728 = vpop.permute.xlu0 %727
        %v730 = vadd.f32 %v722, %v728
        %732 = vrot.lane.b32.xlu0 %v730, 45
        %v733 = vpop.permute.xlu0 %732
        %vm735 = vcmask 474472
        %736 = vst.msk [vmem:[%s232] sm:$0xff] %vm735, %v733
        %s737 = sld [smem:[#allocation2 + $0x37]]
        %v738 = vld [vmem:[%s209] sm:$0xff]
        %v739 = vstv %s737
        %v740 = vmul.f32 %v738, %v739
        %s741 = sld [smem:[#allocation6 + $0xa]]
        %v742 = vstv %s741
        %v743 = vadd.f32 %v740, %v742
        %s744 = sld [smem:[#allocation2 + $0x3a]]
        %v745 = vld [vmem:[%s241] sm:$0xff]
        %v746 = vstv %s744
        %v747 = vmul.f32 %v745, %v746
        %v748 = vadd.f32 %v743, %v747
        %s749 = sld [smem:[#allocation2 + $0x3d]]
        %v750 = vld [vmem:[%s247] sm:$0xff]
        %v751 = vstv %s749
        %v752 = vmul.f32 %v750, %v751
        %v753 = vadd.f32 %v748, %v752
        %s754 = sld [smem:[#allocation2 + $0x40]]
        %v755 = vstv %s754
        %v756 = vmul.f32 %v738, %v755
        %758 = vrot.lane.b32.xlu0 %v756, 127
        %v759 = vpop.permute.xlu0 %758
        %v761 = vadd.f32 %v753, %v759
        %s762 = sld [smem:[#allocation2 + $0x43]]
        %v763 = vstv %s762
        %v764 = vmul.f32 %v745, %v763
        %766 = vrot.lane.b32.xlu0 %v764, 127
        %v767 = vpop.permute.xlu0 %766
        %v769 = vadd.f32 %v761, %v767
        %s770 = sld [smem:[#allocation2 + $0x46]]
        %v771 = vstv %s770
        %v772 = vmul.f32 %v750, %v771
        %774 = vrot.lane.b32.xlu0 %v772, 127
        %v775 = vpop.permute.xlu0 %774
        %v777 = vadd.f32 %v769, %v775
        %s778 = sld [smem:[#allocation2 + $0x49]]
        %v779 = vstv %s778
        %v780 = vmul.f32 %v738, %v779
        %782 = vrot.lane.b32.xlu0 %v780, 126
        %v783 = vpop.permute.xlu0 %782
        %v785 = vadd.f32 %v777, %v783
        %s786 = sld [smem:[#allocation2 + $0x4c]]
        %v787 = vstv %s786
        %v788 = vmul.f32 %v745, %v787
        %790 = vrot.lane.b32.xlu0 %v788, 126
        %v791 = vpop.permute.xlu0 %790
        %v793 = vadd.f32 %v785, %v791
        %s794 = sld [smem:[#allocation2 + $0x4f]]
        %v795 = vstv %s794
        %v796 = vmul.f32 %v750, %v795
        %798 = vrot.lane.b32.xlu0 %v796, 126
        %v799 = vpop.permute.xlu0 %798
        %v801 = vadd.f32 %v793, %v799
        %s802 = sld [smem:[#allocation2 + $0x52]]
        %v803 = vstv %s802
        %v804 = vmul.f32 %v738, %v803
        %806 = vrot.lane.b32.xlu0 %v804, 125
        %v807 = vpop.permute.xlu0 %806
        %v809 = vadd.f32 %v801, %v807
        %s810 = sld [smem:[#allocation2 + $0x55]]
        %v811 = vstv %s810
        %v812 = vmul.f32 %v745, %v811
        %814 = vrot.lane.b32.xlu0 %v812, 125
        %v815 = vpop.permute.xlu0 %814
        %v817 = vadd.f32 %v809, %v815
        %s818 = sld [smem:[#allocation2 + $0x58]]
        %v819 = vstv %s818
        %v820 = vmul.f32 %v750, %v819
        %822 = vrot.lane.b32.xlu0 %v820, 125
        %v823 = vpop.permute.xlu0 %822
        %v825 = vadd.f32 %v817, %v823
        %827 = vrot.lane.b32.xlu0 %v825, 45
        %v828 = vpop.permute.xlu0 %827
        %830 = vst.msk [vmem:[%s271] sm:$0xff] %vm735, %v828
        %s831 = sld [smem:[#allocation2 + $0x38]]
        %v832 = vld [vmem:[%s209] sm:$0xff]
        %v833 = vstv %s831
        %v834 = vmul.f32 %v832, %v833
        %s835 = sld [smem:[#allocation6 + $0xb]]
        %v836 = vstv %s835
        %v837 = vadd.f32 %v834, %v836
        %s838 = sld [smem:[#allocation2 + $0x3b]]
        %v839 = vld [vmem:[%s241] sm:$0xff]
        %v840 = vstv %s838
        %v841 = vmul.f32 %v839, %v840
        %v842 = vadd.f32 %v837, %v841
        %s843 = sld [smem:[#allocation2 + $0x3e]]
        %v844 = vld [vmem:[%s247] sm:$0xff]
        %v845 = vstv %s843
        %v846 = vmul.f32 %v844, %v845
        %v847 = vadd.f32 %v842, %v846
        %s848 = sld [smem:[#allocation2 + $0x41]]
        %v849 = vstv %s848
        %v850 = vmul.f32 %v832, %v849
        %852 = vrot.lane.b32.xlu0 %v850, 127
        %v853 = vpop.permute.xlu0 %852
        %v855 = vadd.f32 %v847, %v853
        %s856 = sld [smem:[#allocation2 + $0x44]]
        %v857 = vstv %s856
        %v858 = vmul.f32 %v839, %v857
        %860 = vrot.lane.b32.xlu0 %v858, 127
        %v861 = vpop.permute.xlu0 %860
        %v863 = vadd.f32 %v855, %v861
        %s864 = sld [smem:[#allocation2 + $0x47]]
        %v865 = vstv %s864
        %v866 = vmul.f32 %v844, %v865
        %868 = vrot.lane.b32.xlu0 %v866, 127
        %v869 = vpop.permute.xlu0 %868
        %v871 = vadd.f32 %v863, %v869
        %s872 = sld [smem:[#allocation2 + $0x4a]]
        %v873 = vstv %s872
        %v874 = vmul.f32 %v832, %v873
        %876 = vrot.lane.b32.xlu0 %v874, 126
        %v877 = vpop.permute.xlu0 %876
        %v879 = vadd.f32 %v871, %v877
        %s880 = sld [smem:[#allocation2 + $0x4d]]
        %v881 = vstv %s880
        %v882 = vmul.f32 %v839, %v881
        %884 = vrot.lane.b32.xlu0 %v882, 126
        %v885 = vpop.permute.xlu0 %884
        %v887 = vadd.f32 %v879, %v885
        %s888 = sld [smem:[#allocation2 + $0x50]]
        %v889 = vstv %s888
        %v890 = vmul.f32 %v844, %v889
        %892 = vrot.lane.b32.xlu0 %v890, 126
        %v893 = vpop.permute.xlu0 %892
        %v895 = vadd.f32 %v887, %v893
        %s896 = sld [smem:[#allocation2 + $0x53]]
        %v897 = vstv %s896
        %v898 = vmul.f32 %v832, %v897
        %900 = vrot.lane.b32.xlu0 %v898, 125
        %v901 = vpop.permute.xlu0 %900
        %v903 = vadd.f32 %v895, %v901
        %s904 = sld [smem:[#allocation2 + $0x56]]
        %v905 = vstv %s904
        %v906 = vmul.f32 %v839, %v905
        %908 = vrot.lane.b32.xlu0 %v906, 125
        %v909 = vpop.permute.xlu0 %908
        %v911 = vadd.f32 %v903, %v909
        %s912 = sld [smem:[#allocation2 + $0x59]]
        %v913 = vstv %s912
        %v914 = vmul.f32 %v844, %v913
        %916 = vrot.lane.b32.xlu0 %v914, 125
        %v917 = vpop.permute.xlu0 %916
        %v919 = vadd.f32 %v911, %v917
        %921 = vrot.lane.b32.xlu0 %v919, 45
        %v922 = vpop.permute.xlu0 %921
        %924 = vst.msk [vmem:[%s290] sm:$0xff] %vm735, %v922
        %s925 = sld [smem:[#allocation2 + $0x5a]]
        %v926 = vld [vmem:[%s209] sm:$0xff]
        %v927 = vstv %s925
        %v928 = vmul.f32 %v926, %v927
        %s929 = sld [smem:[#allocation6 + $0xc]]
        %v930 = vstv %s929
        %v931 = vadd.f32 %v928, %v930
        %s932 = sld [smem:[#allocation2 + $0x5d]]
        %v933 = vld [vmem:[%s241] sm:$0xff]
        %v934 = vstv %s932
        %v935 = vmul.f32 %v933, %v934
        %v936 = vadd.f32 %v931, %v935
        %s937 = sld [smem:[#allocation2 + $0x60]]
        %v938 = vld [vmem:[%s247] sm:$0xff]
        %v939 = vstv %s937
        %v940 = vmul.f32 %v938, %v939
        %v941 = vadd.f32 %v936, %v940
        %s942 = sld [smem:[#allocation2 + $0x63]]
        %v943 = vstv %s942
        %v944 = vmul.f32 %v926, %v943
        %946 = vrot.lane.b32.xlu0 %v944, 126
        %v947 = vpop.permute.xlu0 %946
        %v949 = vadd.f32 %v941, %v947
        %s950 = sld [smem:[#allocation2 + $0x66]]
        %v951 = vstv %s950
        %v952 = vmul.f32 %v933, %v951
        %954 = vrot.lane.b32.xlu0 %v952, 126
        %v955 = vpop.permute.xlu0 %954
        %v957 = vadd.f32 %v949, %v955
        %s958 = sld [smem:[#allocation2 + $0x69]]
        %v959 = vstv %s958
        %v960 = vmul.f32 %v938, %v959
        %962 = vrot.lane.b32.xlu0 %v960, 126
        %v963 = vpop.permute.xlu0 %962
        %v965 = vadd.f32 %v957, %v963
        %967 = vrot.lane.b32.xlu0 %v965, 58
        %v968 = vpop.permute.xlu0 %967
        %vm970 = vcmask 589264
        %971 = vst.msk [vmem:[%s232] sm:$0xff] %vm970, %v968
        %s972 = sld [smem:[#allocation2 + $0x5b]]
        %v973 = vld [vmem:[%s209] sm:$0xff]
        %v974 = vstv %s972
        %v975 = vmul.f32 %v973, %v974
        %s976 = sld [smem:[#allocation6 + $0xd]]
        %v977 = vstv %s976
        %v978 = vadd.f32 %v975, %v977
        %s979 = sld [smem:[#allocation2 + $0x5e]]
        %v980 = vld [vmem:[%s241] sm:$0xff]
        %v981 = vstv %s979
        %v982 = vmul.f32 %v980, %v981
        %v983 = vadd.f32 %v978, %v982
        %s984 = sld [smem:[#allocation2 + $0x61]]
        %v985 = vld [vmem:[%s247] sm:$0xff]
        %v986 = vstv %s984
        %v987 = vmul.f32 %v985, %v986
        %v988 = vadd.f32 %v983, %v987
        %s989 = sld [smem:[#allocation2 + $0x64]]
        %v990 = vstv %s989
        %v991 = vmul.f32 %v973, %v990
        %993 = vrot.lane.b32.xlu0 %v991, 126
        %v994 = vpop.permute.xlu0 %993
        %v996 = vadd.f32 %v988, %v994
        %s997 = sld [smem:[#allocation2 + $0x67]]
        %v998 = vstv %s997
        %v999 = vmul.f32 %v980, %v998
        %1001 = vrot.lane.b32.xlu0 %v999, 126
        %v1002 = vpop.permute.xlu0 %1001
        %v1004 = vadd.f32 %v996, %v1002
        %s1005 = sld [smem:[#allocation2 + $0x6a]]
        %v1006 = vstv %s1005
        %v1007 = vmul.f32 %v985, %v1006
        %1009 = vrot.lane.b32.xlu0 %v1007, 126
        %v1010 = vpop.permute.xlu0 %1009
        %v1012 = vadd.f32 %v1004, %v1010
        %1014 = vrot.lane.b32.xlu0 %v1012, 58
        %v1015 = vpop.permute.xlu0 %1014
        %1017 = vst.msk [vmem:[%s271] sm:$0xff] %vm970, %v1015
        %s1018 = sld [smem:[#allocation2 + $0x5c]]
        %v1019 = vld [vmem:[%s209] sm:$0xff]
        %v1020 = vstv %s1018
        %v1021 = vmul.f32 %v1019, %v1020
        %s1022 = sld [smem:[#allocation6 + $0xe]]
        %v1023 = vstv %s1022
        %v1024 = vadd.f32 %v1021, %v1023
        %s1025 = sld [smem:[#allocation2 + $0x5f]]
        %v1026 = vld [vmem:[%s241] sm:$0xff]
        %v1027 = vstv %s1025
        %v1028 = vmul.f32 %v1026, %v1027
        %v1029 = vadd.f32 %v1024, %v1028
        %s1030 = sld [smem:[#allocation2 + $0x62]]
        %v1031 = vld [vmem:[%s247] sm:$0xff]
        %v1032 = vstv %s1030
        %v1033 = vmul.f32 %v1031, %v1032
        %v1034 = vadd.f32 %v1029, %v1033
        %s1035 = sld [smem:[#allocation2 + $0x65]]
        %v1036 = vstv %s1035
        %v1037 = vmul.f32 %v1019, %v1036
        %1039 = vrot.lane.b32.xlu0 %v1037, 126
        %v1040 = vpop.permute.xlu0 %1039
        %v1042 = vadd.f32 %v1034, %v1040
        %s1043 = sld [smem:[#allocation2 + $0x68]]
        %v1044 = vstv %s1043
        %v1045 = vmul.f32 %v1026, %v1044
        %1047 = vrot.lane.b32.xlu0 %v1045, 126
        %v1048 = vpop.permute.xlu0 %1047
        %v1050 = vadd.f32 %v1042, %v1048
        %s1051 = sld [smem:[#allocation2 + $0x6b]]
        %v1052 = vstv %s1051
        %v1053 = vmul.f32 %v1031, %v1052
        %1055 = vrot.lane.b32.xlu0 %v1053, 126
        %v1056 = vpop.permute.xlu0 %1055
        %v1058 = vadd.f32 %v1050, %v1056
        %1060 = vrot.lane.b32.xlu0 %v1058, 58
        %v1061 = vpop.permute.xlu0 %1060
        %1063 = vst.msk [vmem:[%s290] sm:$0xff] %vm970, %v1061
        %s1064 = sld [smem:[#allocation2 + $0x6c]]
        %v1065 = vld [vmem:[%s209] sm:$0xff]
        %v1066 = vstv %s1064
        %v1067 = vmul.f32 %v1065, %v1066
        %s1068 = sld [smem:[#allocation6 + $0xf]]
        %v1069 = vstv %s1068
        %v1070 = vadd.f32 %v1067, %v1069
        %s1071 = sld [smem:[#allocation2 + $0x6f]]
        %v1072 = vld [vmem:[%s241] sm:$0xff]
        %v1073 = vstv %s1071
        %v1074 = vmul.f32 %v1072, %v1073
        %v1075 = vadd.f32 %v1070, %v1074
        %s1076 = sld [smem:[#allocation2 + $0x72]]
        %v1077 = vld [vmem:[%s247] sm:$0xff]
        %v1078 = vstv %s1076
        %v1079 = vmul.f32 %v1077, %v1078
        %v1080 = vadd.f32 %v1075, %v1079
        %s1081 = sld [smem:[#allocation2 + $0x75]]
        %v1082 = vstv %s1081
        %v1083 = vmul.f32 %v1065, %v1082
        %1085 = vrot.lane.b32.xlu0 %v1083, 126
        %v1086 = vpop.permute.xlu0 %1085
        %v1088 = vadd.f32 %v1080, %v1086
        %s1089 = sld [smem:[#allocation2 + $0x78]]
        %v1090 = vstv %s1089
        %v1091 = vmul.f32 %v1072, %v1090
        %1093 = vrot.lane.b32.xlu0 %v1091, 126
        %v1094 = vpop.permute.xlu0 %1093
        %v1096 = vadd.f32 %v1088, %v1094
        %s1097 = sld [smem:[#allocation2 + $0x7b]]
        %v1098 = vstv %s1097
        %v1099 = vmul.f32 %v1077, %v1098
        %1101 = vrot.lane.b32.xlu0 %v1099, 126
        %v1102 = vpop.permute.xlu0 %1101
        %v1104 = vadd.f32 %v1096, %v1102
        %s1105 = sld [smem:[#allocation2 + $0x7e]]
        %v1106 = vstv %s1105
        %v1107 = vmul.f32 %v1065, %v1106
        %1109 = vrot.lane.b32.xlu0 %v1107, 124
        %v1110 = vpop.permute.xlu0 %1109
        %v1112 = vadd.f32 %v1104, %v1110
        %s1113 = sld [smem:[#allocation2 + $0x81]]
        %v1114 = vstv %s1113
        %v1115 = vmul.f32 %v1072, %v1114
        %1117 = vrot.lane.b32.xlu0 %v1115, 124
        %v1118 = vpop.permute.xlu0 %1117
        %v1120 = vadd.f32 %v1112, %v1118
        %s1121 = sld [smem:[#allocation2 + $0x84]]
        %v1122 = vstv %s1121
        %v1123 = vmul.f32 %v1077, %v1122
        %1125 = vrot.lane.b32.xlu0 %v1123, 124
        %v1126 = vpop.permute.xlu0 %1125
        %v1128 = vadd.f32 %v1120, %v1126
        %1130 = vrot.lane.b32.xlu0 %v1128, 72
        %v1131 = vpop.permute.xlu0 %1130
        %vm1133 = vcmask 687680
        %1134 = vst.msk [vmem:[%s232] sm:$0xff] %vm1133, %v1131
        %s1135 = sld [smem:[#allocation2 + $0x6d]]
        %v1136 = vld [vmem:[%s209] sm:$0xff]
        %v1137 = vstv %s1135
        %v1138 = vmul.f32 %v1136, %v1137
        %s1139 = sld [smem:[#allocation6 + $0x10]]
        %v1140 = vstv %s1139
        %v1141 = vadd.f32 %v1138, %v1140
        %s1142 = sld [smem:[#allocation2 + $0x70]]
        %v1143 = vld [vmem:[%s241] sm:$0xff]
        %v1144 = vstv %s1142
        %v1145 = vmul.f32 %v1143, %v1144
        %v1146 = vadd.f32 %v1141, %v1145
        %s1147 = sld [smem:[#allocation2 + $0x73]]
        %v1148 = vld [vmem:[%s247] sm:$0xff]
        %v1149 = vstv %s1147
        %v1150 = vmul.f32 %v1148, %v1149
        %v1151 = vadd.f32 %v1146, %v1150
        %s1152 = sld [smem:[#allocation2 + $0x76]]
        %v1153 = vstv %s1152
        %v1154 = vmul.f32 %v1136, %v1153
        %1156 = vrot.lane.b32.xlu0 %v1154, 126
        %v1157 = vpop.permute.xlu0 %1156
        %v1159 = vadd.f32 %v1151, %v1157
        %s1160 = sld [smem:[#allocation2 + $0x79]]
        %v1161 = vstv %s1160
        %v1162 = vmul.f32 %v1143, %v1161
        %1164 = vrot.lane.b32.xlu0 %v1162, 126
        %v1165 = vpop.permute.xlu0 %1164
        %v1167 = vadd.f32 %v1159, %v1165
        %s1168 = sld [smem:[#allocation2 + $0x7c]]
        %v1169 = vstv %s1168
        %v1170 = vmul.f32 %v1148, %v1169
        %1172 = vrot.lane.b32.xlu0 %v1170, 126
        %v1173 = vpop.permute.xlu0 %1172
        %v1175 = vadd.f32 %v1167, %v1173
        %s1176 = sld [smem:[#allocation2 + $0x7f]]
        %v1177 = vstv %s1176
        %v1178 = vmul.f32 %v1136, %v1177
        %1180 = vrot.lane.b32.xlu0 %v1178, 124
        %v1181 = vpop.permute.xlu0 %1180
        %v1183 = vadd.f32 %v1175, %v1181
        %s1184 = sld [smem:[#allocation2 + $0x82]]
        %v1185 = vstv %s1184
        %v1186 = vmul.f32 %v1143, %v1185
        %1188 = vrot.lane.b32.xlu0 %v1186, 124
        %v1189 = vpop.permute.xlu0 %1188
        %v1191 = vadd.f32 %v1183, %v1189
        %s1192 = sld [smem:[#allocation2 + $0x85]]
        %v1193 = vstv %s1192
        %v1194 = vmul.f32 %v1148, %v1193
        %1196 = vrot.lane.b32.xlu0 %v1194, 124
        %v1197 = vpop.permute.xlu0 %1196
        %v1199 = vadd.f32 %v1191, %v1197
        %1201 = vrot.lane.b32.xlu0 %v1199, 72
        %v1202 = vpop.permute.xlu0 %1201
        %1204 = vst.msk [vmem:[%s271] sm:$0xff] %vm1133, %v1202
        %s1205 = sld [smem:[#allocation2 + $0x6e]]
        %v1206 = vld [vmem:[%s209] sm:$0xff]
        %v1207 = vstv %s1205
        %v1208 = vmul.f32 %v1206, %v1207
        %s1209 = sld [smem:[#allocation6 + $0x11]]
        %v1210 = vstv %s1209
        %v1211 = vadd.f32 %v1208, %v1210
        %s1212 = sld [smem:[#allocation2 + $0x71]]
        %v1213 = vld [vmem:[%s241] sm:$0xff]
        %v1214 = vstv %s1212
        %v1215 = vmul.f32 %v1213, %v1214
        %v1216 = vadd.f32 %v1211, %v1215
        %s1217 = sld [smem:[#allocation2 + $0x74]]
        %v1218 = vld [vmem:[%s247] sm:$0xff]
        %v1219 = vstv %s1217
        %v1220 = vmul.f32 %v1218, %v1219
        %v1221 = vadd.f32 %v1216, %v1220
        %s1222 = sld [smem:[#allocation2 + $0x77]]
        %v1223 = vstv %s1222
        %v1224 = vmul.f32 %v1206, %v1223
        %1226 = vrot.lane.b32.xlu0 %v1224, 126
        %v1227 = vpop.permute.xlu0 %1226
        %v1229 = vadd.f32 %v1221, %v1227
        %s1230 = sld [smem:[#allocation2 + $0x7a]]
        %v1231 = vstv %s1230
        %v1232 = vmul.f32 %v1213, %v1231
        %1234 = vrot.lane.b32.xlu0 %v1232, 126
        %v1235 = vpop.permute.xlu0 %1234
        %v1237 = vadd.f32 %v1229, %v1235
        %s1238 = sld [smem:[#allocation2 + $0x7d]]
        %v1239 = vstv %s1238
        %v1240 = vmul.f32 %v1218, %v1239
        %1242 = vrot.lane.b32.xlu0 %v1240, 126
        %v1243 = vpop.permute.xlu0 %1242
        %v1245 = vadd.f32 %v1237, %v1243
        %s1246 = sld [smem:[#allocation2 + $0x80]]
        %v1247 = vstv %s1246
        %v1248 = vmul.f32 %v1206, %v1247
        %1250 = vrot.lane.b32.xlu0 %v1248, 124
        %v1251 = vpop.permute.xlu0 %1250
        %v1253 = vadd.f32 %v1245, %v1251
        %s1254 = sld [smem:[#allocation2 + $0x83]]
        %v1255 = vstv %s1254
        %v1256 = vmul.f32 %v1213, %v1255
        %1258 = vrot.lane.b32.xlu0 %v1256, 124
        %v1259 = vpop.permute.xlu0 %1258
        %v1261 = vadd.f32 %v1253, %v1259
        %s1262 = sld [smem:[#allocation2 + $0x86]]
        %v1263 = vstv %s1262
        %v1264 = vmul.f32 %v1218, %v1263
        %1266 = vrot.lane.b32.xlu0 %v1264, 124
        %v1267 = vpop.permute.xlu0 %1266
        %v1269 = vadd.f32 %v1261, %v1267
        %1271 = vrot.lane.b32.xlu0 %v1269, 72
        %v1272 = vpop.permute.xlu0 %1271
        %1274 = vst.msk [vmem:[%s290] sm:$0xff] %vm1133, %v1272
        %s1275 = sand.u32 %s114, 1
        %s1276 = scalar_lea.sflag [#allocation4], %s1275
        %s1277 = sand.u32 %s114, 1
        %s1278 = smul.addr %s1277, 24
        %s1279 = scalar_lea.vmem [#allocation9], %s1278
        // Predicated region
        $region45: #{kdblock_pallas.1} parent=31 // pred_check
          %p1280 = pneg %p124
        $region46: #{kdblock_pallas.1} parent=31 // pred_check_branch
          %1282 = sbr.rel (%p1280) target = $region48
        $region47: #{kdblock_pallas.1} parent=31 // pred_region
          %s1284 = ssub.s32 384, 384
          %1285 = vsyncadd %s1276, %s1284
          %s1286 = smul.addr %s26, 3
          %s1287 = sadd.s32 %s27, %s1286
          %s1288 = smul.addr %s1287, 128
          %s1289 = scalar_lea.hbm %s3, %s1288
          %s1290 = sshll.u32 %s1279, 4
          %s1291 = int_to_ptr.vmem [resolvable:$true] %s1290
          %1296 = dma.vmem_to_hbm [thread:$0]  %s1291, 384, %s1289, %s1276, 128, 128, 8
        $region48: #{kdblock_pallas.1} parent=31 // pred_fallthru
          _
      $region32: #{kdblock_pallas.1} parent=5 // pred_fallthru
        _
      %p1297 = scmp.le.s32.totalorder 2, %s17
      // Predicated region
      $region49: #{kdblock_pallas.1} parent=5 // pred_check
        %p1298 = pneg %p1297
      $region50: #{kdblock_pallas.1} parent=5 // pred_check_branch
        %1300 = sbr.rel (%p1298) target = $region52
      $region51: #{kdblock_pallas.1} parent=5 // pred_region
        %s1301 = ssub.s32 %s17, 2
        // Predicated region
        $region53: #{kdblock_pallas.1} parent=51 // pred_check
          %p1302 = pneg %p130
        $region54: #{kdblock_pallas.1} parent=51 // pred_check_branch
          %1304 = sbr.rel (%p1302) target = $region56
        $region55: #{kdblock_pallas.1} parent=51 // pred_region
          %s1305 = sand.u32 %s115, 1
          %s1306 = scalar_lea.sflag [#allocation4], %s1305
          %s1307 = sand.u32 %s115, 1
          %s1308 = smul.addr %s1307, 24
          %s1309 = scalar_lea.vmem [#allocation9], %s1308
          %1310 = dma.done %s1306, 384
        $region56: #{kdblock_pallas.1} parent=51 // pred_fallthru
          _
      $region52: #{kdblock_pallas.1} parent=5 // pred_fallthru
        _
    $region6: #{kdblock_pallas.1} parent=1 // loop_footer
      %s21 = sadd.s32 1, %s17
    $region7: #{kdblock_pallas.1} parent=1 // loop_footer_branch
      %16 = sbr.rel target = $region3
    $region8: #{kdblock_pallas.1} parent=1 // loop_exit
      _
    %1311 = vsyncpa [#allocation3], 1
    %s1312 = scalar_lea.sflag [#allocation3], 1
    %1313 = vsyncpa %s1312, 1
    %1314 = vsyncpa [#allocation4], 1
    %s1315 = scalar_lea.sflag [#allocation4], 1
    %1316 = vsyncpa %s1315, 1
    %1317 = vsyncpa [#allocation5], 1
    %s1318 = scalar_lea.sflag [#allocation5], 1
    %1319 = vsyncpa %s1318, 1
    %1320 = vsyncpa [#allocation7], 1

</llo_original>
